<compile_context>
chip_gen: v7x
topology: tpu7x:2x2x1
jax: 0.10.0
libtpu: 0.0.40
codegen_flags: <defaults>
</compile_context>

<pallas_src>
import jax
import jax.numpy as jnp
from jax import lax
from jax.experimental import pallas as pl
from jax.experimental.pallas import tpu as pltpu


# --------------------------------------------------------------------------
# tiling helpers (VMEM-aware)
# --------------------------------------------------------------------------
def _largest_divisor_leq(n, cap):
    cap = max(1, min(n, cap))
    for d in range(cap, 0, -1):
        if n % d == 0:
            return d
    return 1


def _row_tile(H, W, Cin, Cout, budget_bytes=12 << 20):
    """Input-image rows processed per grid step of the conv kernel.

    Approximate live f32 VMEM per input pixel in that kernel:
      x blocks (double-buffered): 2*Cin ; shifted views: 3*Cin ;
      y blocks (double-buffered): 2*(2*2*Cout) ; o_even/o_odd temporaries: 2*2*Cout.
    """
    per_pix_bytes = 4 * (5 * Cin + 12 * Cout)
    cap = max(1, budget_bytes // (per_pix_bytes * max(W, 1)))
    return _largest_divisor_leq(H, cap)


def _spatial_tile(S, Cout, budget_bytes=8 << 20):
    """Flattened-spatial chunk for the BN+ReLU+transpose kernel.

    Must be a multiple of 128 (lane-dense NCHW stores and the (8,128) block
    rule) unless it covers the whole axis.
    """
    per_pos_bytes = 4 * Cout * 4          # in slab + out slab, double-buffered
    cap = max(128, budget_bytes // per_pos_bytes)
    if S <= cap:
        return S
    d = cap - (cap % 128)
    while d >= 128:
        if S % d == 0:
            return d
        d -= 128
    return S                              # rare shapes: fall back to one block


# --------------------------------------------------------------------------
# Kernel 1: fused transposed-conv (channel matmuls + parity scatter)
#           + BatchNorm sum / sum-of-squares epilogue
# --------------------------------------------------------------------------
def _convt_stats_kernel(x_ref, xh_ref, we_ref, wo_ref, y_ref, s_ref, q_ref):
    # x_ref : (1, th, W, Cin)        current row-tile of the NHWC input
    # xh_ref: (1, 1,  W, Cin)        halo row (first row below the tile, clamped)
    # we_ref: (2, Cin, 2*Cout)       weights for even output rows  [ee | eo]
    # wo_ref: (4, Cin, 2*Cout)       weights for odd  output rows  [oe | oo]
    # y_ref : (1, th, 2, W, 2*Cout)  conv out, dims (i, row-parity, j, (col-parity, c))
    # s_ref : (1, 1, 2*Cout)         running per-(col-parity, channel) sum
    # q_ref : (1, 1, 2*Cout)         running per-(col-parity, channel) sum of squares
    h = pl.program_id(1)
    nh = pl.num_programs(1)

    x00 = x_ref[0]                           # (th, W, Cin)  = x[i, j]
    th, W, Cin = x00.shape

    halo = xh_ref[0, 0]                      # (W, Cin)      = x[i0 + th, j]
    halo = halo * jnp.where(h == nh - 1, 0.0, 1.0)   # image bottom edge -> zeros

    if th == 1:
        x10 = halo[None]                     # x[i+1, j]
    else:
        x10 = jnp.concatenate([x00[1:], halo[None]], axis=0)

    def shift_w(a):                          # a[:, j] <- a[:, j+1], zero at j = W-1
        if W == 1:
            return jnp.zeros_like(a)
        return jnp.concatenate([a[:, 1:, :], jnp.zeros_like(a[:, :1, :])], axis=1)

    x01 = shift_w(x00)                       # x[i,   j+1]
    x11 = shift_w(x10)                       # x[i+1, j+1]

    m = th * W
    x00f = x00.reshape(m, Cin)
    x01f = x01.reshape(m, Cin)
    x10f = x10.reshape(m, Cin)
    x11f = x11.reshape(m, Cin)

    f32 = jnp.float32
    # even output rows (2i):   columns [ee | eo]
    o_even = (jnp.dot(x00f, we_ref[0], preferred_element_type=f32) +
              jnp.dot(x01f, we_ref[1], preferred_element_type=f32))
    # odd output rows (2i+1):  columns [oe | oo]
    o_odd = (jnp.dot(x00f, wo_ref[0], preferred_element_type=f32) +
             jnp.dot(x01f, wo_ref[1], preferred_element_type=f32) +
             jnp.dot(x10f, wo_ref[2], preferred_element_type=f32) +
             jnp.dot(x11f, wo_ref[3], preferred_element_type=f32))

    two_c = o_even.shape[1]
    y_ref[0, :, 0, :, :] = o_even.reshape(th, W, two_c).astype(y_ref.dtype)
    y_ref[0, :, 1, :, :] = o_odd.reshape(th, W, two_c).astype(y_ref.dtype)

    # ---- BatchNorm statistics epilogue (no extra HBM read pass) ----
    @pl.when(h == 0)
    def _():
        s_ref[...] = jnp.zeros_like(s_ref)
        q_ref[...] = jnp.zeros_like(q_ref)

    s_ref[0] += (jnp.sum(o_even, axis=0, keepdims=True) +
                 jnp.sum(o_odd, axis=0, keepdims=True))
    q_ref[0] += (jnp.sum(o_even * o_even, axis=0, keepdims=True) +
                 jnp.sum(o_odd * o_odd, axis=0, keepdims=True))


# --------------------------------------------------------------------------
# Kernel 2: normalize + ReLU + channels-last -> channels-first (NCHW) write
# --------------------------------------------------------------------------
def _bn_relu_nchw_kernel(y_ref, sc_ref, sh_ref, o_ref):
    # y_ref : (1, ts, Cout)   channels-last conv slab (ts flattened spatial positions)
    # sc_ref: (1, Cout)       per-channel scale
    # sh_ref: (1, Cout)       per-channel shift
    # o_ref : (1, Cout, ts)   channels-first output slab (spatial on lanes -> dense)
    v = y_ref[0]                                              # (ts, Cout)
    v = jnp.maximum(v * sc_ref[...] + sh_ref[...], 0.0)
    o_ref[0] = v.T.astype(o_ref.dtype)                        # (Cout, ts)


# --------------------------------------------------------------------------
# Full forward
# --------------------------------------------------------------------------
def basic2d_trans(x, weight, gamma, beta, eps=1e-5):
    """x: (N, Cin, H, W); weight: (Cin, Cout, 3, 3) (PyTorch ConvTranspose2d layout)."""
    N, Cin, H, W = x.shape
    Cout = weight.shape[1]
    Ho, Wo = 2 * H, 2 * W
    two_c = 2 * Cout
    f32 = jnp.float32

    # ---- layout prep (tiny, XLA): NHWC input + parity-grouped weights ----
    x_nhwc = jnp.transpose(x, (0, 2, 3, 1)).astype(f32)       # (N, H, W, Cin)

    w = weight.astype(f32)                                    # (Cin, Cout, ky, kx)
    z = jnp.zeros((Cin, Cout), f32)
    wt = lambda a, b: w[:, :, a, b]
    # out[2i,   2j  ] = x[i,j]w11
    # out[2i,   2j+1] = x[i,j]w12 + x[i,j+1]w10
    # out[2i+1, 2j  ] = x[i,j]w21 + x[i+1,j]w01
    # out[2i+1, 2j+1] = x[i,j]w22 + x[i,j+1]w20 + x[i+1,j]w02 + x[i+1,j+1]w00
    we = jnp.stack([jnp.concatenate([wt(1, 1), wt(1, 2)], axis=1),   # from x[i, j]
                    jnp.concatenate([z,        wt(1, 0)], axis=1)],  # from x[i, j+1]
                   axis=0)                                           # (2, Cin, 2*Cout)
    wo = jnp.stack([jnp.concatenate([wt(2, 1), wt(2, 2)], axis=1),   # from x[i, j]
                    jnp.concatenate([z,        wt(2, 0)], axis=1),   # from x[i, j+1]
                    jnp.concatenate([wt(0, 1), wt(0, 2)], axis=1),   # from x[i+1, j]
                    jnp.concatenate([z,        wt(0, 0)], axis=1)],  # from x[i+1, j+1]
                   axis=0)                                           # (4, Cin, 2*Cout)

    th = _row_tile(H, W, Cin, Cout)                           # rows per grid step
    nh = H // th

    y, ssum, ssq = pl.pallas_call(
        _convt_stats_kernel,
        out_shape=(jax.ShapeDtypeStruct((N, H, 2, W, two_c), f32),
                   jax.ShapeDtypeStruct((N, 1, two_c), f32),
                   jax.ShapeDtypeStruct((N, 1, two_c), f32)),
        grid_spec=pltpu.PrefetchScalarGridSpec(
            num_scalar_prefetch=0,
            grid=(N, nh),
            in_specs=[
                pl.BlockSpec((1, th, W, Cin), lambda n, h: (n, h, 0, 0)),
                pl.BlockSpec((1, 1, W, Cin),
                             lambda n, h: (n, jnp.minimum((h + 1) * th, H - 1), 0, 0)),
                pl.BlockSpec((2, Cin, two_c), lambda n, h: (0, 0, 0)),
                pl.BlockSpec((4, Cin, two_c), lambda n, h: (0, 0, 0)),
            ],
            out_specs=[
                pl.BlockSpec((1, th, 2, W, two_c), lambda n, h: (n, h, 0, 0, 0)),
                pl.BlockSpec((1, 1, two_c), lambda n, h: (n, 0, 0)),
                pl.BlockSpec((1, 1, two_c), lambda n, h: (n, 0, 0)),
            ],
        ),
        compiler_params=pltpu.CompilerParams(
            dimension_semantics=("parallel", "arbitrary"),
            vmem_limit_bytes=32 * 1024 * 1024),
    )(x_nhwc, x_nhwc, we, wo)

    # ---- BatchNorm batch statistics finalize (tiny, XLA) ----
    count = N * Ho * Wo
    ch_sum = ssum.reshape(N, 2, Cout).sum(axis=(0, 1))
    ch_ssq = ssq.reshape(N, 2, Cout).sum(axis=(0, 1))
    mean = ch_sum / count
    var = jnp.maximum(ch_ssq / count - mean * mean, 0.0)      # biased var, clamped
    inv_std = 1.0 / jnp.sqrt(var + eps)
    g = gamma.astype(f32)
    b = beta.astype(f32)
    scale = (g * inv_std).reshape(1, Cout)
    shift = (b - mean * g * inv_std).reshape(1, Cout)

    # ---- normalize + ReLU + NHWC->NCHW, fused ----
    S = Ho * Wo
    y3 = y.reshape(N, S, Cout)          # free reshape: channels-last conv output
    ts = _spatial_tile(S, Cout)

    out3 = pl.pallas_call(
        _bn_relu_nchw_kernel,
        out_shape=jax.ShapeDtypeStruct((N, Cout, S), f32),
        grid_spec=pltpu.PrefetchScalarGridSpec(
            num_scalar_prefetch=0,
            grid=(N, S // ts),
            in_specs=[pl.BlockSpec((1, ts, Cout), lambda n, s: (n, s, 0)),
                      pl.BlockSpec((1, Cout), lambda n, s: (0, 0)),
                      pl.BlockSpec((1, Cout), lambda n, s: (0, 0))],
            out_specs=pl.BlockSpec((1, Cout, ts), lambda n, s: (n, 0, s)),
        ),
        compiler_params=pltpu.CompilerParams(
            dimension_semantics=("parallel", "parallel"),
            vmem_limit_bytes=32 * 1024 * 1024),
    )(y3, scale, shift)

    return out3.reshape(N, Cout, Ho, Wo)                      # NCHW, free reshape


# --------------------------------------------------------------------------
# Pure-JAX reference (sanity check)
# --------------------------------------------------------------------------
def _reference(x, weight, gamma, beta, eps=1e-5):
    # ConvTranspose2d(k=3, s=2, p=1, op=1) == dilated conv with flipped kernel.
    w_flip = jnp.flip(weight, (2, 3)).transpose(1, 0, 2, 3)   # (Cout, Cin, 3, 3)
    conv = lax.conv_general_dilated(
        x.astype(jnp.float32), w_flip.astype(jnp.float32),
        window_strides=(1, 1), padding=((1, 2), (1, 2)),
        lhs_dilation=(2, 2),
        dimension_numbers=('NCHW', 'OIHW', 'NCHW'))
    mean = jnp.mean(conv, axis=(0, 2, 3), keepdims=True)
    var = jnp.mean((conv - mean) ** 2, axis=(0, 2, 3), keepdims=True)
    g = gamma.reshape(1, -1, 1, 1)
    b = beta.reshape(1, -1, 1, 1)
    bn = (conv - mean) / jnp.sqrt(var + eps) * g + b
    return jnp.maximum(bn, 0.0)


if __name__ == "__main__":
    N, Cin, Cout, H, W = 2, 4, 8, 16, 16

    key = jax.random.PRNGKey(0)
    kx, kw = jax.random.split(key)
    x = jax.random.normal(kx, (N, Cin, H, W), dtype=jnp.float32)
    # ConvTranspose2d weight: (in_channels, out_channels, kH, kW)
    bound = 1.0 / (Cin * 3 * 3) ** 0.5
    weight = jax.random.uniform(kw, (Cin, Cout, 3, 3), dtype=jnp.float32,
                                minval=-bound, maxval=bound)
    gamma = jnp.ones((Cout,), dtype=jnp.float32)   # BatchNorm2d init
    beta = jnp.zeros((Cout,), dtype=jnp.float32)

    fwd = jax.jit(basic2d_trans)
    out = fwd(x, weight, gamma, beta)
    out = jax.block_until_ready(out)

    assert out.shape == (N, Cout, 2 * H, 2 * W), out.shape

    ref = _reference(x, weight, gamma, beta)
    max_err = float(jnp.max(jnp.abs(out - ref)))
    assert max_err < 1e-2, f"mismatch vs reference: {max_err}"

    print("KERNEL_OK")
</pallas_src>

<mosaic_0001>
module attributes {stable_mosaic.version = 11 : i64} {
  func.func @_convt_stats_kernel(%arg0: i32, %arg1: i32, %arg2: memref<1x16x16x4xf32, #tpu.memory_space<vmem>>, %arg3: memref<1x1x16x4xf32, #tpu.memory_space<vmem>>, %arg4: memref<2x4x16xf32, #tpu.memory_space<vmem>>, %arg5: memref<4x4x16xf32, #tpu.memory_space<vmem>>, %arg6: memref<1x16x2x16x16xf32, #tpu.memory_space<vmem>>, %arg7: memref<1x1x16xf32, #tpu.memory_space<vmem>>, %arg8: memref<1x1x16xf32, #tpu.memory_space<vmem>>) attributes {dimension_semantics = [#tpu.dimension_semantics<parallel>, #tpu.dimension_semantics<arbitrary>], iteration_bounds = array<i64: 2, 1>, scalar_prefetch = 0 : i64, scratch_operands = 0 : i64, tpu.core_type = #tpu.core_type<tc>, window_params = [{transform_indices = @transform_0, window_bounds = array<i64: 1, 16, 16, 4>}, {transform_indices = @transform_1, window_bounds = array<i64: 1, 1, 16, 4>}, {pipeline_mode = #tpu.pipeline_mode<synchronous>, transform_indices = @transform_2, window_bounds = array<i64: 2, 4, 16>}, {pipeline_mode = #tpu.pipeline_mode<synchronous>, transform_indices = @transform_3, window_bounds = array<i64: 4, 4, 16>}, {transform_indices = @transform_4, window_bounds = array<i64: 1, 16, 2, 16, 16>}, {transform_indices = @transform_5, window_bounds = array<i64: 1, 1, 16>}, {transform_indices = @transform_6, window_bounds = array<i64: 1, 1, 16>}]} {
    %c0 = arith.constant 0 : index
    %c0_0 = arith.constant 0 : index
    %c0_1 = arith.constant 0 : index
    %c0_2 = arith.constant 0 : index
    %0 = vector.load %arg2[%c0, %c0_0, %c0_1, %c0_2] : memref<1x16x16x4xf32, #tpu.memory_space<vmem>>, vector<1x16x16x4xf32>
    %1 = vector.shape_cast %0 : vector<1x16x16x4xf32> to vector<16x16x4xf32>
    %c0_3 = arith.constant 0 : index
    %c0_4 = arith.constant 0 : index
    %c0_5 = arith.constant 0 : index
    %c0_6 = arith.constant 0 : index
    %2 = vector.load %arg3[%c0_3, %c0_4, %c0_5, %c0_6] : memref<1x1x16x4xf32, #tpu.memory_space<vmem>>, vector<1x1x16x4xf32>
    %3 = vector.shape_cast %2 : vector<1x1x16x4xf32> to vector<16x4xf32>
    %c0_i32 = arith.constant 0 : i32
    %4 = arith.cmpi eq, %arg1, %c0_i32 : i32
    %cst = arith.constant 0.000000e+00 : f32
    %cst_7 = arith.constant 1.000000e+00 : f32
    %5 = arith.select %4, %cst, %cst_7 : f32
    %6 = vector.broadcast %5 : f32 to vector<16x4xf32>
    %7 = arith.mulf %3, %6 : vector<16x4xf32>
    %8 = vector.extract_strided_slice %1 {offsets = [1, 0, 0], sizes = [15, 16, 4], strides = [1, 1, 1]} : vector<16x16x4xf32> to vector<15x16x4xf32>
    %9 = vector.shape_cast %7 : vector<16x4xf32> to vector<1x16x4xf32>
    %10 = tpu.concatenate %8, %9 in 0 : vector<15x16x4xf32>, vector<1x16x4xf32> -> vector<16x16x4xf32>
    %11 = vector.extract_strided_slice %1 {offsets = [0, 1, 0], sizes = [16, 15, 4], strides = [1, 1, 1]} : vector<16x16x4xf32> to vector<16x15x4xf32>
    %cst_8 = arith.constant 0.000000e+00 : f32
    %12 = vector.broadcast %cst_8 : f32 to vector<16x1x4xf32>
    %13 = tpu.concatenate %11, %12 in 1 : vector<16x15x4xf32>, vector<16x1x4xf32> -> vector<16x16x4xf32>
    %14 = vector.extract_strided_slice %10 {offsets = [0, 1, 0], sizes = [16, 15, 4], strides = [1, 1, 1]} : vector<16x16x4xf32> to vector<16x15x4xf32>
    %cst_9 = arith.constant 0.000000e+00 : f32
    %15 = vector.broadcast %cst_9 : f32 to vector<16x1x4xf32>
    %16 = tpu.concatenate %14, %15 in 1 : vector<16x15x4xf32>, vector<16x1x4xf32> -> vector<16x16x4xf32>
    %17 = vector.shape_cast %1 : vector<16x16x4xf32> to vector<256x4xf32>
    %18 = vector.shape_cast %13 : vector<16x16x4xf32> to vector<256x4xf32>
    %19 = vector.shape_cast %10 : vector<16x16x4xf32> to vector<256x4xf32>
    %20 = vector.shape_cast %16 : vector<16x16x4xf32> to vector<256x4xf32>
    %c0_10 = arith.constant 0 : index
    %c0_11 = arith.constant 0 : index
    %c0_12 = arith.constant 0 : index
    %21 = vector.load %arg4[%c0_10, %c0_11, %c0_12] : memref<2x4x16xf32, #tpu.memory_space<vmem>>, vector<1x4x16xf32>
    %22 = vector.shape_cast %21 : vector<1x4x16xf32> to vector<4x16xf32>
    %cst_13 = arith.constant dense<0.000000e+00> : vector<256x16xf32>
    %23 = tpu.matmul %17, %22, %cst_13 {dimension_numbers = #tpu.dot_dimension_numbers<[1], [0], [0], [1], [0, 0, 1, 1], [], []>} : vector<256x4xf32>, vector<4x16xf32>, vector<256x16xf32> -> vector<256x16xf32>
    %c1 = arith.constant 1 : index
    %c0_14 = arith.constant 0 : index
    %c0_15 = arith.constant 0 : index
    %24 = vector.load %arg4[%c1, %c0_14, %c0_15] : memref<2x4x16xf32, #tpu.memory_space<vmem>>, vector<1x4x16xf32>
    %25 = vector.shape_cast %24 : vector<1x4x16xf32> to vector<4x16xf32>
    %cst_16 = arith.constant dense<0.000000e+00> : vector<256x16xf32>
    %26 = tpu.matmul %18, %25, %cst_16 {dimension_numbers = #tpu.dot_dimension_numbers<[1], [0], [0], [1], [0, 0, 1, 1], [], []>} : vector<256x4xf32>, vector<4x16xf32>, vector<256x16xf32> -> vector<256x16xf32>
    %27 = arith.addf %23, %26 : vector<256x16xf32>
    %c0_17 = arith.constant 0 : index
    %c0_18 = arith.constant 0 : index
    %c0_19 = arith.constant 0 : index
    %28 = vector.load %arg5[%c0_17, %c0_18, %c0_19] : memref<4x4x16xf32, #tpu.memory_space<vmem>>, vector<1x4x16xf32>
    %29 = vector.shape_cast %28 : vector<1x4x16xf32> to vector<4x16xf32>
    %cst_20 = arith.constant dense<0.000000e+00> : vector<256x16xf32>
    %30 = tpu.matmul %17, %29, %cst_20 {dimension_numbers = #tpu.dot_dimension_numbers<[1], [0], [0], [1], [0, 0, 1, 1], [], []>} : vector<256x4xf32>, vector<4x16xf32>, vector<256x16xf32> -> vector<256x16xf32>
    %c1_21 = arith.constant 1 : index
    %c0_22 = arith.constant 0 : index
    %c0_23 = arith.constant 0 : index
    %31 = vector.load %arg5[%c1_21, %c0_22, %c0_23] : memref<4x4x16xf32, #tpu.memory_space<vmem>>, vector<1x4x16xf32>
    %32 = vector.shape_cast %31 : vector<1x4x16xf32> to vector<4x16xf32>
    %cst_24 = arith.constant dense<0.000000e+00> : vector<256x16xf32>
    %33 = tpu.matmul %18, %32, %cst_24 {dimension_numbers = #tpu.dot_dimension_numbers<[1], [0], [0], [1], [0, 0, 1, 1], [], []>} : vector<256x4xf32>, vector<4x16xf32>, vector<256x16xf32> -> vector<256x16xf32>
    %34 = arith.addf %30, %33 : vector<256x16xf32>
    %c2 = arith.constant 2 : index
    %c0_25 = arith.constant 0 : index
    %c0_26 = arith.constant 0 : index
    %35 = vector.load %arg5[%c2, %c0_25, %c0_26] : memref<4x4x16xf32, #tpu.memory_space<vmem>>, vector<1x4x16xf32>
    %36 = vector.shape_cast %35 : vector<1x4x16xf32> to vector<4x16xf32>
    %cst_27 = arith.constant dense<0.000000e+00> : vector<256x16xf32>
    %37 = tpu.matmul %19, %36, %cst_27 {dimension_numbers = #tpu.dot_dimension_numbers<[1], [0], [0], [1], [0, 0, 1, 1], [], []>} : vector<256x4xf32>, vector<4x16xf32>, vector<256x16xf32> -> vector<256x16xf32>
    %38 = arith.addf %34, %37 : vector<256x16xf32>
    %c3 = arith.constant 3 : index
    %c0_28 = arith.constant 0 : index
    %c0_29 = arith.constant 0 : index
    %39 = vector.load %arg5[%c3, %c0_28, %c0_29] : memref<4x4x16xf32, #tpu.memory_space<vmem>>, vector<1x4x16xf32>
    %40 = vector.shape_cast %39 : vector<1x4x16xf32> to vector<4x16xf32>
    %cst_30 = arith.constant dense<0.000000e+00> : vector<256x16xf32>
    %41 = tpu.matmul %20, %40, %cst_30 {dimension_numbers = #tpu.dot_dimension_numbers<[1], [0], [0], [1], [0, 0, 1, 1], [], []>} : vector<256x4xf32>, vector<4x16xf32>, vector<256x16xf32> -> vector<256x16xf32>
    %42 = arith.addf %38, %41 : vector<256x16xf32>
    %43 = vector.shape_cast %27 : vector<256x16xf32> to vector<16x16x16xf32>
    %c0_31 = arith.constant 0 : index
    %c0_32 = arith.constant 0 : index
    %c0_33 = arith.constant 0 : index
    %c0_34 = arith.constant 0 : index
    %c0_35 = arith.constant 0 : index
    %44 = vector.load %arg6[%c0_31, %c0_32, %c0_33, %c0_34, %c0_35] : memref<1x16x2x16x16xf32, #tpu.memory_space<vmem>>, vector<1x16x1x16x16xf32>
    %45 = vector.shape_cast %44 : vector<1x16x1x16x16xf32> to vector<16x16x16xf32>
    %46 = vector.shape_cast %43 : vector<16x16x16xf32> to vector<1x16x1x16x16xf32>
    tpu.vector_store %arg6[%c0_31, %c0_32, %c0_33, %c0_34, %c0_35], %46 {strides = array<i32>} : memref<1x16x2x16x16xf32, #tpu.memory_space<vmem>>, vector<1x16x1x16x16xf32>,
    %47 = vector.shape_cast %42 : vector<256x16xf32> to vector<16x16x16xf32>
    %c0_36 = arith.constant 0 : index
    %c0_37 = arith.constant 0 : index
    %c1_38 = arith.constant 1 : index
    %c0_39 = arith.constant 0 : index
    %c0_40 = arith.constant 0 : index
    %48 = vector.load %arg6[%c0_36, %c0_37, %c1_38, %c0_39, %c0_40] : memref<1x16x2x16x16xf32, #tpu.memory_space<vmem>>, vector<1x16x1x16x16xf32>
    %49 = vector.shape_cast %48 : vector<1x16x1x16x16xf32> to vector<16x16x16xf32>
    %50 = vector.shape_cast %47 : vector<16x16x16xf32> to vector<1x16x1x16x16xf32>
    tpu.vector_store %arg6[%c0_36, %c0_37, %c1_38, %c0_39, %c0_40], %50 {strides = array<i32>} : memref<1x16x2x16x16xf32, #tpu.memory_space<vmem>>, vector<1x16x1x16x16xf32>,
    %c0_i32_41 = arith.constant 0 : i32
    %51 = arith.cmpi eq, %arg1, %c0_i32_41 : i32
    %52 = arith.extui %51 : i1 to i32
    %c0_i32_42 = arith.constant 0 : i32
    %53 = arith.cmpi ne, %52, %c0_i32_42 : i32
    scf.if %53 {
      %cst_59 = arith.constant 0.000000e+00 : f32
      %78 = vector.broadcast %cst_59 : f32 to vector<1x1x16xf32>
      %c0_60 = arith.constant 0 : index
      %c0_61 = arith.constant 0 : index
      %c0_62 = arith.constant 0 : index
      %79 = vector.load %arg7[%c0_60, %c0_61, %c0_62] : memref<1x1x16xf32, #tpu.memory_space<vmem>>, vector<1x1x16xf32>
      tpu.vector_store %arg7[%c0_60, %c0_61, %c0_62], %78 {strides = array<i32>} : memref<1x1x16xf32, #tpu.memory_space<vmem>>, vector<1x1x16xf32>,
      %cst_63 = arith.constant 0.000000e+00 : f32
      %80 = vector.broadcast %cst_63 : f32 to vector<1x1x16xf32>
      %c0_64 = arith.constant 0 : index
      %c0_65 = arith.constant 0 : index
      %c0_66 = arith.constant 0 : index
      %81 = vector.load %arg8[%c0_64, %c0_65, %c0_66] : memref<1x1x16xf32, #tpu.memory_space<vmem>>, vector<1x1x16xf32>
      tpu.vector_store %arg8[%c0_64, %c0_65, %c0_66], %80 {strides = array<i32>} : memref<1x1x16xf32, #tpu.memory_space<vmem>>, vector<1x1x16xf32>,
    } else {
    }
    %c0_43 = arith.constant 0 : index
    %c0_44 = arith.constant 0 : index
    %c0_45 = arith.constant 0 : index
    %54 = vector.load %arg7[%c0_43, %c0_44, %c0_45] : memref<1x1x16xf32, #tpu.memory_space<vmem>>, vector<1x1x16xf32>
    %55 = vector.shape_cast %54 : vector<1x1x16xf32> to vector<1x16xf32>
    %cst_46 = arith.constant dense<0.000000e+00> : vector<16xf32>
    %56 = vector.multi_reduction <add>, %27, %cst_46 [0] : vector<256x16xf32> to vector<16xf32>
    %57 = vector.shape_cast %56 : vector<16xf32> to vector<1x16xf32>
    %cst_47 = arith.constant dense<0.000000e+00> : vector<16xf32>
    %58 = vector.multi_reduction <add>, %42, %cst_47 [0] : vector<256x16xf32> to vector<16xf32>
    %59 = vector.shape_cast %58 : vector<16xf32> to vector<1x16xf32>
    %60 = arith.addf %57, %59 : vector<1x16xf32>
    %61 = arith.addf %55, %60 : vector<1x16xf32>
    %c0_48 = arith.constant 0 : index
    %c0_49 = arith.constant 0 : index
    %c0_50 = arith.constant 0 : index
    %62 = vector.load %arg7[%c0_48, %c0_49, %c0_50] : memref<1x1x16xf32, #tpu.memory_space<vmem>>, vector<1x1x16xf32>
    %63 = vector.shape_cast %62 : vector<1x1x16xf32> to vector<1x16xf32>
    %64 = vector.shape_cast %61 : vector<1x16xf32> to vector<1x1x16xf32>
    tpu.vector_store %arg7[%c0_48, %c0_49, %c0_50], %64 {strides = array<i32>} : memref<1x1x16xf32, #tpu.memory_space<vmem>>, vector<1x1x16xf32>,
    %c0_51 = arith.constant 0 : index
    %c0_52 = arith.constant 0 : index
    %c0_53 = arith.constant 0 : index
    %65 = vector.load %arg8[%c0_51, %c0_52, %c0_53] : memref<1x1x16xf32, #tpu.memory_space<vmem>>, vector<1x1x16xf32>
    %66 = vector.shape_cast %65 : vector<1x1x16xf32> to vector<1x16xf32>
    %67 = arith.mulf %27, %27 : vector<256x16xf32>
    %cst_54 = arith.constant dense<0.000000e+00> : vector<16xf32>
    %68 = vector.multi_reduction <add>, %67, %cst_54 [0] : vector<256x16xf32> to vector<16xf32>
    %69 = vector.shape_cast %68 : vector<16xf32> to vector<1x16xf32>
    %70 = arith.mulf %42, %42 : vector<256x16xf32>
    %cst_55 = arith.constant dense<0.000000e+00> : vector<16xf32>
    %71 = vector.multi_reduction <add>, %70, %cst_55 [0] : vector<256x16xf32> to vector<16xf32>
    %72 = vector.shape_cast %71 : vector<16xf32> to vector<1x16xf32>
    %73 = arith.addf %69, %72 : vector<1x16xf32>
    %74 = arith.addf %66, %73 : vector<1x16xf32>
    %c0_56 = arith.constant 0 : index
    %c0_57 = arith.constant 0 : index
    %c0_58 = arith.constant 0 : index
    %75 = vector.load %arg8[%c0_56, %c0_57, %c0_58] : memref<1x1x16xf32, #tpu.memory_space<vmem>>, vector<1x1x16xf32>
    %76 = vector.shape_cast %75 : vector<1x1x16xf32> to vector<1x16xf32>
    %77 = vector.shape_cast %74 : vector<1x16xf32> to vector<1x1x16xf32>
    tpu.vector_store %arg8[%c0_56, %c0_57, %c0_58], %77 {strides = array<i32>} : memref<1x1x16xf32, #tpu.memory_space<vmem>>, vector<1x1x16xf32>,
    return
  }
  func.func @transform_0(%arg0: i32, %arg1: i32) -> (i32, i32, i32, i32) {
    %c0_i32 = arith.constant 0 : i32
    %c0_i32_0 = arith.constant 0 : i32
    %c0_i32_1 = arith.constant 0 : i32
    return %arg0, %arg1, %c0_i32, %c0_i32_0 : i32, i32, i32, i32
  }
  func.func @transform_1(%arg0: i32, %arg1: i32) -> (i32, i32, i32, i32) {
    %c1_i32 = arith.constant 1 : i32
    %0 = arith.addi %arg1, %c1_i32 : i32
    %c16_i32 = arith.constant 16 : i32
    %1 = arith.muli %0, %c16_i32 : i32
    %c15_i32 = arith.constant 15 : i32
    %2 = arith.minsi %1, %c15_i32 : i32
    %c0_i32 = arith.constant 0 : i32
    %c0_i32_0 = arith.constant 0 : i32
    %c0_i32_1 = arith.constant 0 : i32
    return %arg0, %2, %c0_i32, %c0_i32_0 : i32, i32, i32, i32
  }
  func.func @transform_2(%arg0: i32, %arg1: i32) -> (i32, i32, i32) {
    %c0_i32 = arith.constant 0 : i32
    %c0_i32_0 = arith.constant 0 : i32
    %c0_i32_1 = arith.constant 0 : i32
    %c0_i32_2 = arith.constant 0 : i32
    return %c0_i32, %c0_i32_0, %c0_i32_1 : i32, i32, i32
  }
  func.func @transform_3(%arg0: i32, %arg1: i32) -> (i32, i32, i32) {
    %c0_i32 = arith.constant 0 : i32
    %c0_i32_0 = arith.constant 0 : i32
    %c0_i32_1 = arith.constant 0 : i32
    %c0_i32_2 = arith.constant 0 : i32
    return %c0_i32, %c0_i32_0, %c0_i32_1 : i32, i32, i32
  }
  func.func @transform_4(%arg0: i32, %arg1: i32) -> (i32, i32, i32, i32, i32) {
    %c0_i32 = arith.constant 0 : i32
    %c0_i32_0 = arith.constant 0 : i32
    %c0_i32_1 = arith.constant 0 : i32
    %c0_i32_2 = arith.constant 0 : i32
    return %arg0, %arg1, %c0_i32, %c0_i32_0, %c0_i32_1 : i32, i32, i32, i32, i32
  }
  func.func @transform_5(%arg0: i32, %arg1: i32) -> (i32, i32, i32) {
    %c0_i32 = arith.constant 0 : i32
    %c0_i32_0 = arith.constant 0 : i32
    %c0_i32_1 = arith.constant 0 : i32
    return %arg0, %c0_i32, %c0_i32_0 : i32, i32, i32
  }
  func.func @transform_6(%arg0: i32, %arg1: i32) -> (i32, i32, i32) {
    %c0_i32 = arith.constant 0 : i32
    %c0_i32_0 = arith.constant 0 : i32
    %c0_i32_1 = arith.constant 0 : i32
    return %arg0, %c0_i32, %c0_i32_0 : i32, i32, i32
  }
}

module attributes {stable_mosaic.version = 11 : i64} {
  func.func @_bn_relu_nchw_kernel(%arg0: i32, %arg1: i32, %arg2: memref<1x1024x8xf32, #tpu.memory_space<vmem>>, %arg3: memref<1x8xf32, #tpu.memory_space<vmem>>, %arg4: memref<1x8xf32, #tpu.memory_space<vmem>>, %arg5: memref<1x8x1024xf32, #tpu.memory_space<vmem>>) attributes {dimension_semantics = [#tpu.dimension_semantics<parallel>, #tpu.dimension_semantics<parallel>], iteration_bounds = array<i64: 2, 1>, scalar_prefetch = 0 : i64, scratch_operands = 0 : i64, tpu.core_type = #tpu.core_type<tc>, window_params = [{transform_indices = @transform_0, window_bounds = array<i64: 1, 1024, 8>}, {pipeline_mode = #tpu.pipeline_mode<synchronous>, transform_indices = @transform_1, window_bounds = array<i64: 1, 8>}, {pipeline_mode = #tpu.pipeline_mode<synchronous>, transform_indices = @transform_2, window_bounds = array<i64: 1, 8>}, {transform_indices = @transform_3, window_bounds = array<i64: 1, 8, 1024>}]} {
    %c0 = arith.constant 0 : index
    %c0_0 = arith.constant 0 : index
    %c0_1 = arith.constant 0 : index
    %0 = vector.load %arg2[%c0, %c0_0, %c0_1] : memref<1x1024x8xf32, #tpu.memory_space<vmem>>, vector<1x1024x8xf32>
    %1 = vector.shape_cast %0 : vector<1x1024x8xf32> to vector<1024x8xf32>
    %c0_2 = arith.constant 0 : index
    %c0_3 = arith.constant 0 : index
    %2 = vector.load %arg3[%c0_2, %c0_3] : memref<1x8xf32, #tpu.memory_space<vmem>>, vector<1x8xf32>
    %3 = vector.broadcast %2 : vector<1x8xf32> to vector<1024x8xf32>
    %4 = arith.mulf %1, %3 : vector<1024x8xf32>
    %c0_4 = arith.constant 0 : index
    %c0_5 = arith.constant 0 : index
    %5 = vector.load %arg4[%c0_4, %c0_5] : memref<1x8xf32, #tpu.memory_space<vmem>>, vector<1x8xf32>
    %6 = vector.broadcast %5 : vector<1x8xf32> to vector<1024x8xf32>
    %7 = arith.addf %4, %6 : vector<1024x8xf32>
    %cst = arith.constant 0.000000e+00 : f32
    %8 = vector.broadcast %cst : f32 to vector<1024x8xf32>
    %9 = arith.maximumf %7, %8 : vector<1024x8xf32>
    %10 = tpu.transpose %9, [1, 0] : vector<1024x8xf32> -> vector<8x1024xf32>
    %c0_6 = arith.constant 0 : index
    %c0_7 = arith.constant 0 : index
    %c0_8 = arith.constant 0 : index
    %11 = vector.load %arg5[%c0_6, %c0_7, %c0_8] : memref<1x8x1024xf32, #tpu.memory_space<vmem>>, vector<1x8x1024xf32>
    %12 = vector.shape_cast %11 : vector<1x8x1024xf32> to vector<8x1024xf32>
    %13 = vector.shape_cast %10 : vector<8x1024xf32> to vector<1x8x1024xf32>
    tpu.vector_store %arg5[%c0_6, %c0_7, %c0_8], %13 {strides = array<i32>} : memref<1x8x1024xf32, #tpu.memory_space<vmem>>, vector<1x8x1024xf32>,
    return
  }
  func.func @transform_0(%arg0: i32, %arg1: i32) -> (i32, i32, i32) {
    %c0_i32 = arith.constant 0 : i32
    %c0_i32_0 = arith.constant 0 : i32
    return %arg0, %arg1, %c0_i32 : i32, i32, i32
  }
  func.func @transform_1(%arg0: i32, %arg1: i32) -> (i32, i32) {
    %c0_i32 = arith.constant 0 : i32
    %c0_i32_0 = arith.constant 0 : i32
    %c0_i32_1 = arith.constant 0 : i32
    return %c0_i32, %c0_i32_0 : i32, i32
  }
  func.func @transform_2(%arg0: i32, %arg1: i32) -> (i32, i32) {
    %c0_i32 = arith.constant 0 : i32
    %c0_i32_0 = arith.constant 0 : i32
    %c0_i32_1 = arith.constant 0 : i32
    return %c0_i32, %c0_i32_0 : i32, i32
  }
  func.func @transform_3(%arg0: i32, %arg1: i32) -> (i32, i32, i32) {
    %c0_i32 = arith.constant 0 : i32
    %c0_i32_0 = arith.constant 0 : i32
    return %arg0, %c0_i32, %arg1 : i32, i32, i32
  }
}

</mosaic_0001>

<llo_original>
// kernel: basic2d_trans.3
$region0: #{basic2d_trans.3}
  #allocation0 [shape = 'u32[]', space=smem, size = 0x4, offset = 0x4, fixed_abs, tag = 'smem constant byte address 0x4 - core index']
  #allocation1 [shape = 'u32[144,128]{1,0:T(1,128)}', space=vmem, size = 0x12000, scoped, tag = 'internal scratch']
  %s0 = inlined_call_operand.vmem [shape: f32[2,1024,8], index: 0, kind: input, shape index: {}]
  %s1 = inlined_call_operand.vmem [shape: f32[1,8], index: 1, kind: input, shape index: {}]
  %s2 = inlined_call_operand.vmem [shape: f32[1,8], index: 2, kind: input, shape index: {}]
  %s3 = inlined_call_operand.vmem [shape: f32[2,8,1024], index: 3, kind: output, shape index: {}]
  %s4 = sld [smem:[#allocation0]]
  $region45: #{basic2d_trans.3} parent=0
    _
  %s6 = ssub.s32 1, %s4
  %s7 = scalar_select 0, %s6, %s4
  loop: start=0, step=1, limit=4
  $region2: #{basic2d_trans.3} parent=0 // loop_pre_header
    _
  $region3: #{basic2d_trans.3} parent=0 // loop_header
    %s9 = sphi 0, %s13
    %p10 = scmp.ge.s32.totalorder %s9, 4
    %s16 = sphi 0, %s28
    %s17 = sphi 0, %s24
    %s18 = sphi 0, %s16
    %s19 = sphi 0, %s17
    %s20 = sphi 0, %s18
    %s21 = sphi 0, %s19
    %s33 = sphi 0, %s35
    %s36 = sphi 0, %s33
    %s37 = sphi 0, %s36
    %s53 = sphi 0, %s37
    %s57 = sphi 0, %s57
    %s59 = sphi 0, %s57
    %s60 = sphi 0, %s59
    %s74 = sphi 0, %s60
    %s78 = sphi 0, %s78
    %s80 = sphi 0, %s78
    %s81 = sphi 0, %s80
    %s95 = sphi 0, %s81
    %s103 = sphi 0, %s105
    %s106 = sphi 0, %s103
    %s107 = sphi 0, %s106
    %s123 = sphi 0, %s107
  $region4: #{basic2d_trans.3} parent=0 // loop_header_branch
    %12 = sbr.rel (%p10) target = $region8
  $region5: #{basic2d_trans.3} parent=0 // loop_body
    %s14 = ssub.s32 %s9, 1
    %s15 = ssub.s32 %s9, 2
    %s22 = sadd.s32 1, %s17
    %p23 = scmp.ge.s32.totalorder %s22, 1
    %s24 = scalar_select %p23, 0, %s22
    %s25 = sadd.s32 1, %s16
    %s26 = scalar_select %p23, %s25, %s16
    %p27 = scmp.ge.s32.totalorder %s26, 2
    %s28 = scalar_select %p27, 0, %s26
    %s29 = ssub.s32 %s16, %s28
    %s30 = ssub.s32 %s17, %s24
    %s31 = sor.u32 %s29, %s30
    %p32 = scmp.eq.s32.totalorder %s31, 0
    %s34 = sadd.s32 %s33, 1
    %s35 = scalar_select %p32, %s33, %s34
    %p38 = pneg %p32
    %p39 = scmp.eq.s32.totalorder %s9, 1
    %p40 = por %p38, %p39
    %p41 = scmp.ne.s32.totalorder %s33, %s36
    %p42 = scmp.eq.s32.totalorder %s9, 0
    %p43 = por %p41, %p42
    %p44 = scmp.ne.s32.totalorder %s33, %s36
    %p45 = scmp.eq.s32.totalorder %s14, 1
    %p46 = por %p44, %p45
    %p47 = scmp.ne.s32.totalorder %s36, %s37
    %p48 = scmp.eq.s32.totalorder %s14, 0
    %p49 = por %p47, %p48
    %p50 = scmp.ne.s32.totalorder %s36, %s37
    %p51 = scmp.eq.s32.totalorder %s15, 1
    %p52 = por %p50, %p51
    %p54 = scmp.ne.s32.totalorder %s37, %s53
    %p55 = scmp.eq.s32.totalorder %s15, 0
    %p56 = por %p54, %p55
    %s58 = sadd.s32 %s57, 1
    %p61 = scmp.eq.s32.totalorder %s9, 1
    %p62 = scmp.ne.s32.totalorder %s57, %s59
    %p63 = scmp.eq.s32.totalorder %s9, 0
    %p64 = por %p62, %p63
    %p65 = scmp.ne.s32.totalorder %s57, %s59
    %p66 = scmp.eq.s32.totalorder %s14, 1
    %p67 = por %p65, %p66
    %p68 = scmp.ne.s32.totalorder %s59, %s60
    %p69 = scmp.eq.s32.totalorder %s14, 0
    %p70 = por %p68, %p69
    %p71 = scmp.ne.s32.totalorder %s59, %s60
    %p72 = scmp.eq.s32.totalorder %s15, 1
    %p73 = por %p71, %p72
    %p75 = scmp.ne.s32.totalorder %s60, %s74
    %p76 = scmp.eq.s32.totalorder %s15, 0
    %p77 = por %p75, %p76
    %s79 = sadd.s32 %s78, 1
    %p82 = scmp.eq.s32.totalorder %s9, 1
    %p83 = scmp.ne.s32.totalorder %s78, %s80
    %p84 = scmp.eq.s32.totalorder %s9, 0
    %p85 = por %p83, %p84
    %p86 = scmp.ne.s32.totalorder %s78, %s80
    %p87 = scmp.eq.s32.totalorder %s14, 1
    %p88 = por %p86, %p87
    %p89 = scmp.ne.s32.totalorder %s80, %s81
    %p90 = scmp.eq.s32.totalorder %s14, 0
    %p91 = por %p89, %p90
    %p92 = scmp.ne.s32.totalorder %s80, %s81
    %p93 = scmp.eq.s32.totalorder %s15, 1
    %p94 = por %p92, %p93
    %p96 = scmp.ne.s32.totalorder %s81, %s95
    %p97 = scmp.eq.s32.totalorder %s15, 0
    %p98 = por %p96, %p97
    %s99 = ssub.s32 %s16, %s28
    %s100 = ssub.s32 %s17, %s24
    %s101 = sor.u32 %s99, %s100
    %p102 = scmp.eq.s32.totalorder %s101, 0
    %s104 = sadd.s32 %s103, 1
    %s105 = scalar_select %p102, %s103, %s104
    %p108 = pneg %p102
    %p109 = scmp.eq.s32.totalorder %s9, 1
    %p110 = por %p108, %p109
    %p111 = scmp.ne.s32.totalorder %s103, %s106
    %p112 = scmp.eq.s32.totalorder %s9, 0
    %p113 = por %p111, %p112
    %p114 = scmp.ne.s32.totalorder %s103, %s106
    %p115 = scmp.eq.s32.totalorder %s14, 1
    %p116 = por %p114, %p115
    %p117 = scmp.ne.s32.totalorder %s106, %s107
    %p118 = scmp.eq.s32.totalorder %s14, 0
    %p119 = por %p117, %p118
    %p120 = scmp.ne.s32.totalorder %s106, %s107
    %p121 = scmp.eq.s32.totalorder %s15, 1
    %p122 = por %p120, %p121
    %p124 = scmp.ne.s32.totalorder %s107, %s123
    %p125 = scmp.eq.s32.totalorder %s15, 0
    %p126 = por %p124, %p125
    %p127 = scmp.le.s32.totalorder 1, %s9
    %p128 = scmp.lt.s32.totalorder %s9, 3
    %p129 = pnand %p127, %p128
    %p130 = pneg %p129
    // Predicated region
    $region9: #{basic2d_trans.3} parent=5 // pred_check
      _
    $region10: #{basic2d_trans.3} parent=5 // pred_check_branch
      %132 = sbr.rel (%p129) target = $region12
    $region11: #{basic2d_trans.3} parent=5 // pred_region
      %s133 = ssub.s32 %s9, 1
      // Predicated region
      $region13: #{basic2d_trans.3} parent=11 // pred_check
        %p134 = pneg %p70
      $region14: #{basic2d_trans.3} parent=11 // pred_check_branch
        %136 = sbr.rel (%p134) target = $region16
      $region15: #{basic2d_trans.3} parent=11 // pred_region
        _
      $region16: #{basic2d_trans.3} parent=11 // pred_fallthru
        _
      // Predicated region
      $region17: #{basic2d_trans.3} parent=11 // pred_check
        %p137 = pneg %p91
      $region18: #{basic2d_trans.3} parent=11 // pred_check_branch
        %139 = sbr.rel (%p137) target = $region20
      $region19: #{basic2d_trans.3} parent=11 // pred_region
        _
      $region20: #{basic2d_trans.3} parent=11 // pred_fallthru
        _
    $region12: #{basic2d_trans.3} parent=5 // pred_fallthru
      _
    %p140 = scmp.lt.s32.totalorder %s9, 2
    // Predicated region
    $region21: #{basic2d_trans.3} parent=5 // pred_check
      %p141 = pneg %p140
    $region22: #{basic2d_trans.3} parent=5 // pred_check_branch
      %143 = sbr.rel (%p141) target = $region24
    $region23: #{basic2d_trans.3} parent=5 // pred_region
      // Predicated region
      $region25: #{basic2d_trans.3} parent=23 // pred_check
        %p144 = pneg %p43
      $region26: #{basic2d_trans.3} parent=23 // pred_check_branch
        %146 = sbr.rel (%p144) target = $region28
      $region27: #{basic2d_trans.3} parent=23 // pred_region
        %s147 = smul.u32 128, %s17
        %p148 = scmp.lt.s32.totalorder %s16, 1
        %s149 = scalar_select %p148, %s16, 1
        %p150 = scmp.lt.s32.totalorder %s147, 127
        %s151 = scalar_select %p150, %s147, 127
        %s152 = smul.addr %s149, 128
        %s153 = sadd.s32 %s151, %s152
        %s154 = smul.addr %s153, 8
        %s155 = scalar_lea.vmem %s0, %s154
        %s156 = smul.u32 128, %s17
      $region28: #{basic2d_trans.3} parent=23 // pred_fallthru
        _
    $region24: #{basic2d_trans.3} parent=5 // pred_fallthru
      _
    %p157 = scmp.le.s32.totalorder 1, %s9
    %p158 = scmp.lt.s32.totalorder %s9, 3
    %p159 = pnand %p157, %p158
    %p160 = pneg %p159
    // Predicated region
    $region29: #{basic2d_trans.3} parent=5 // pred_check
      _
    $region30: #{basic2d_trans.3} parent=5 // pred_check_branch
      %162 = sbr.rel (%p159) target = $region32
    $region31: #{basic2d_trans.3} parent=5 // pred_region
      %s163 = ssub.s32 %s9, 1
      %s164 = smul.u32 128, %s19
      %p165 = scmp.lt.s32.totalorder %s18, 1
      %s166 = scalar_select %p165, %s18, 1
      %p167 = scmp.lt.s32.totalorder %s164, 127
      %s168 = scalar_select %p167, %s164, 127
      %s169 = smul.addr %s166, 128
      %s170 = sadd.s32 %s168, %s169
      %s171 = smul.addr %s170, 8
      %s172 = scalar_lea.vmem %s0, %s171
      %p173 = pneg %p49
      %p174 = pneg %p46
      %p175 = pneg %p70
      %p176 = pneg %p67
      %p177 = pneg %p91
      %p178 = pneg %p88
      %p179 = pneg %p119
      %p180 = pneg %p116
      %s181 = smul.u32 8, %s19
      %p182 = scmp.lt.s32.totalorder %s18, 1
      %s183 = scalar_select %p182, %s18, 1
      %p184 = scmp.lt.s32.totalorder %s181, 7
      %s185 = scalar_select %p184, %s181, 7
      %s186 = smul.addr %s183, 8
      %s187 = sadd.s32 %s185, %s186
      %s188 = smul.addr %s187, 8
      %s189 = scalar_lea.vmem %s3, %s188
      %s190 = smul.u32 128, %s19
      %p191 = scmp.lt.s32.totalorder %s18, 1
      %s192 = scalar_select %p191, %s18, 1
      %p193 = scmp.lt.s32.totalorder %s190, 127
      %s194 = scalar_select %p193, %s190, 127
      %s195 = smul.addr %s192, 128
      %s196 = sadd.s32 %s194, %s195
      %s197 = smul.addr %s196, 8
      %s198 = scalar_lea.vmem %s0, %s197
      %s199 = smul.u32 128, %s19
      %s200 = smul.u32 8, %s19
      %p201 = scmp.lt.s32.totalorder %s18, 1
      %s202 = scalar_select %p201, %s18, 1
      %p203 = scmp.lt.s32.totalorder %s200, 7
      %s204 = scalar_select %p203, %s200, 7
      %s205 = smul.addr %s202, 8
      %s206 = sadd.s32 %s204, %s205
      %s207 = smul.addr %s206, 8
      %s208 = scalar_lea.vmem %s3, %s207
      %s209 = smul.u32 8, %s19
      %v210 = vld [vmem:[%s198] sm:$0xff]
      %v211 = vld [vmem:[%s198 + $0x8] sm:$0xff]
      %v212 = vld [vmem:[%s198 + $0x10] sm:$0xff]
      %v213 = vld [vmem:[%s198 + $0x18] sm:$0xff]
      %v214 = vld [vmem:[%s198 + $0x20] sm:$0xff]
      %v215 = vld [vmem:[%s198 + $0x28] sm:$0xff]
      %v216 = vld [vmem:[%s198 + $0x30] sm:$0xff]
      %v217 = vld [vmem:[%s198 + $0x38] sm:$0xff]
      %v218 = vld [vmem:[%s198 + $0x40] sm:$0xff]
      %v219 = vld [vmem:[%s198 + $0x48] sm:$0xff]
      %v220 = vld [vmem:[%s198 + $0x50] sm:$0xff]
      %v221 = vld [vmem:[%s198 + $0x58] sm:$0xff]
      %v222 = vld [vmem:[%s198 + $0x60] sm:$0xff]
      %v223 = vld [vmem:[%s198 + $0x68] sm:$0xff]
      %v224 = vld [vmem:[%s198 + $0x70] sm:$0xff]
      %v225 = vld [vmem:[%s198 + $0x78] sm:$0xff]
      %v226 = vld [vmem:[%s198 + $0x80] sm:$0xff]
      %v227 = vld [vmem:[%s198 + $0x88] sm:$0xff]
      %v228 = vld [vmem:[%s198 + $0x90] sm:$0xff]
      %v229 = vld [vmem:[%s198 + $0x98] sm:$0xff]
      %v230 = vld [vmem:[%s198 + $0xa0] sm:$0xff]
      %v231 = vld [vmem:[%s198 + $0xa8] sm:$0xff]
      %v232 = vld [vmem:[%s198 + $0xb0] sm:$0xff]
      %v233 = vld [vmem:[%s198 + $0xb8] sm:$0xff]
      %v234 = vld [vmem:[%s198 + $0xc0] sm:$0xff]
      %v235 = vld [vmem:[%s198 + $0xc8] sm:$0xff]
      %v236 = vld [vmem:[%s198 + $0xd0] sm:$0xff]
      %v237 = vld [vmem:[%s198 + $0xd8] sm:$0xff]
      %v238 = vld [vmem:[%s198 + $0xe0] sm:$0xff]
      %v239 = vld [vmem:[%s198 + $0xe8] sm:$0xff]
      %v240 = vld [vmem:[%s198 + $0xf0] sm:$0xff]
      %v241 = vld [vmem:[%s198 + $0xf8] sm:$0xff]
      %v242 = vld [vmem:[%s198 + $0x100] sm:$0xff]
      %v243 = vld [vmem:[%s198 + $0x108] sm:$0xff]
      %v244 = vld [vmem:[%s198 + $0x110] sm:$0xff]
      %v245 = vld [vmem:[%s198 + $0x118] sm:$0xff]
      %v246 = vld [vmem:[%s198 + $0x120] sm:$0xff]
      %v247 = vld [vmem:[%s198 + $0x128] sm:$0xff]
      %v248 = vld [vmem:[%s198 + $0x130] sm:$0xff]
      %v249 = vld [vmem:[%s198 + $0x138] sm:$0xff]
      %v250 = vld [vmem:[%s198 + $0x140] sm:$0xff]
      %v251 = vld [vmem:[%s198 + $0x148] sm:$0xff]
      %v252 = vld [vmem:[%s198 + $0x150] sm:$0xff]
      %v253 = vld [vmem:[%s198 + $0x158] sm:$0xff]
      %v254 = vld [vmem:[%s198 + $0x160] sm:$0xff]
      %v255 = vld [vmem:[%s198 + $0x168] sm:$0xff]
      %v256 = vld [vmem:[%s198 + $0x170] sm:$0xff]
      %v257 = vld [vmem:[%s198 + $0x178] sm:$0xff]
      %v258 = vld [vmem:[%s198 + $0x180] sm:$0xff]
      %v259 = vld [vmem:[%s198 + $0x188] sm:$0xff]
      %v260 = vld [vmem:[%s198 + $0x190] sm:$0xff]
      %v261 = vld [vmem:[%s198 + $0x198] sm:$0xff]
      %v262 = vld [vmem:[%s198 + $0x1a0] sm:$0xff]
      %v263 = vld [vmem:[%s198 + $0x1a8] sm:$0xff]
      %v264 = vld [vmem:[%s198 + $0x1b0] sm:$0xff]
      %v265 = vld [vmem:[%s198 + $0x1b8] sm:$0xff]
      %v266 = vld [vmem:[%s198 + $0x1c0] sm:$0xff]
      %v267 = vld [vmem:[%s198 + $0x1c8] sm:$0xff]
      %v268 = vld [vmem:[%s198 + $0x1d0] sm:$0xff]
      %v269 = vld [vmem:[%s198 + $0x1d8] sm:$0xff]
      %v270 = vld [vmem:[%s198 + $0x1e0] sm:$0xff]
      %v271 = vld [vmem:[%s198 + $0x1e8] sm:$0xff]
      %v272 = vld [vmem:[%s198 + $0x1f0] sm:$0xff]
      %v273 = vld [vmem:[%s198 + $0x1f8] sm:$0xff]
      %v274 = vld [vmem:[%s198 + $0x200] sm:$0xff]
      %v275 = vld [vmem:[%s198 + $0x208] sm:$0xff]
      %v276 = vld [vmem:[%s198 + $0x210] sm:$0xff]
      %v277 = vld [vmem:[%s198 + $0x218] sm:$0xff]
      %v278 = vld [vmem:[%s198 + $0x220] sm:$0xff]
      %v279 = vld [vmem:[%s198 + $0x228] sm:$0xff]
      %v280 = vld [vmem:[%s198 + $0x230] sm:$0xff]
      %v281 = vld [vmem:[%s198 + $0x238] sm:$0xff]
      %v282 = vld [vmem:[%s198 + $0x240] sm:$0xff]
      %v283 = vld [vmem:[%s198 + $0x248] sm:$0xff]
      %v284 = vld [vmem:[%s198 + $0x250] sm:$0xff]
      %v285 = vld [vmem:[%s198 + $0x258] sm:$0xff]
      %v286 = vld [vmem:[%s198 + $0x260] sm:$0xff]
      %v287 = vld [vmem:[%s198 + $0x268] sm:$0xff]
      %v288 = vld [vmem:[%s198 + $0x270] sm:$0xff]
      %v289 = vld [vmem:[%s198 + $0x278] sm:$0xff]
      %v290 = vld [vmem:[%s198 + $0x280] sm:$0xff]
      %v291 = vld [vmem:[%s198 + $0x288] sm:$0xff]
      %v292 = vld [vmem:[%s198 + $0x290] sm:$0xff]
      %v293 = vld [vmem:[%s198 + $0x298] sm:$0xff]
      %v294 = vld [vmem:[%s198 + $0x2a0] sm:$0xff]
      %v295 = vld [vmem:[%s198 + $0x2a8] sm:$0xff]
      %v296 = vld [vmem:[%s198 + $0x2b0] sm:$0xff]
      %v297 = vld [vmem:[%s198 + $0x2b8] sm:$0xff]
      %v298 = vld [vmem:[%s198 + $0x2c0] sm:$0xff]
      %v299 = vld [vmem:[%s198 + $0x2c8] sm:$0xff]
      %v300 = vld [vmem:[%s198 + $0x2d0] sm:$0xff]
      %v301 = vld [vmem:[%s198 + $0x2d8] sm:$0xff]
      %v302 = vld [vmem:[%s198 + $0x2e0] sm:$0xff]
      %v303 = vld [vmem:[%s198 + $0x2e8] sm:$0xff]
      %v304 = vld [vmem:[%s198 + $0x2f0] sm:$0xff]
      %v305 = vld [vmem:[%s198 + $0x2f8] sm:$0xff]
      %v306 = vld [vmem:[%s198 + $0x300] sm:$0xff]
      %v307 = vld [vmem:[%s198 + $0x308] sm:$0xff]
      %v308 = vld [vmem:[%s198 + $0x310] sm:$0xff]
      %v309 = vld [vmem:[%s198 + $0x318] sm:$0xff]
      %v310 = vld [vmem:[%s198 + $0x320] sm:$0xff]
      %v311 = vld [vmem:[%s198 + $0x328] sm:$0xff]
      %v312 = vld [vmem:[%s198 + $0x330] sm:$0xff]
      %v313 = vld [vmem:[%s198 + $0x338] sm:$0xff]
      %v314 = vld [vmem:[%s198 + $0x340] sm:$0xff]
      %v315 = vld [vmem:[%s198 + $0x348] sm:$0xff]
      %v316 = vld [vmem:[%s198 + $0x350] sm:$0xff]
      %v317 = vld [vmem:[%s198 + $0x358] sm:$0xff]
      %v318 = vld [vmem:[%s198 + $0x360] sm:$0xff]
      %v319 = vld [vmem:[%s198 + $0x368] sm:$0xff]
      %v320 = vld [vmem:[%s198 + $0x370] sm:$0xff]
      %v321 = vld [vmem:[%s198 + $0x378] sm:$0xff]
      %v322 = vld [vmem:[%s198 + $0x380] sm:$0xff]
      %v323 = vld [vmem:[%s198 + $0x388] sm:$0xff]
      %v324 = vld [vmem:[%s198 + $0x390] sm:$0xff]
      %v325 = vld [vmem:[%s198 + $0x398] sm:$0xff]
      %v326 = vld [vmem:[%s198 + $0x3a0] sm:$0xff]
      %v327 = vld [vmem:[%s198 + $0x3a8] sm:$0xff]
      %v328 = vld [vmem:[%s198 + $0x3b0] sm:$0xff]
      %v329 = vld [vmem:[%s198 + $0x3b8] sm:$0xff]
      %v330 = vld [vmem:[%s198 + $0x3c0] sm:$0xff]
      %v331 = vld [vmem:[%s198 + $0x3c8] sm:$0xff]
      %v332 = vld [vmem:[%s198 + $0x3d0] sm:$0xff]
      %v333 = vld [vmem:[%s198 + $0x3d8] sm:$0xff]
      %v334 = vld [vmem:[%s198 + $0x3e0] sm:$0xff]
      %v335 = vld [vmem:[%s198 + $0x3e8] sm:$0xff]
      %v336 = vld [vmem:[%s198 + $0x3f0] sm:$0xff]
      %v337 = vld [vmem:[%s198 + $0x3f8] sm:$0xff]
      %v338 = vld [vmem:[%s1] sm:$0x1]
      %v340 = vlaneseq
      %v341 = vshrl.u32 %v340, 7
      %v342 = vsub.s32 0, %v341
      %v343 = vrot.slane %v338, %v342
      %v345 = vmul.f32 %v210, %v343
      %v346 = vmul.f32 %v211, %v343
      %v347 = vmul.f32 %v212, %v343
      %v348 = vmul.f32 %v213, %v343
      %v349 = vmul.f32 %v214, %v343
      %v350 = vmul.f32 %v215, %v343
      %v351 = vmul.f32 %v216, %v343
      %v352 = vmul.f32 %v217, %v343
      %v353 = vmul.f32 %v218, %v343
      %v354 = vmul.f32 %v219, %v343
      %v355 = vmul.f32 %v220, %v343
      %v356 = vmul.f32 %v221, %v343
      %v357 = vmul.f32 %v222, %v343
      %v358 = vmul.f32 %v223, %v343
      %v359 = vmul.f32 %v224, %v343
      %v360 = vmul.f32 %v225, %v343
      %v361 = vmul.f32 %v226, %v343
      %v362 = vmul.f32 %v227, %v343
      %v363 = vmul.f32 %v228, %v343
      %v364 = vmul.f32 %v229, %v343
      %v365 = vmul.f32 %v230, %v343
      %v366 = vmul.f32 %v231, %v343
      %v367 = vmul.f32 %v232, %v343
      %v368 = vmul.f32 %v233, %v343
      %v369 = vmul.f32 %v234, %v343
      %v370 = vmul.f32 %v235, %v343
      %v371 = vmul.f32 %v236, %v343
      %v372 = vmul.f32 %v237, %v343
      %v373 = vmul.f32 %v238, %v343
      %v374 = vmul.f32 %v239, %v343
      %v375 = vmul.f32 %v240, %v343
      %v376 = vmul.f32 %v241, %v343
      %v377 = vmul.f32 %v242, %v343
      %v378 = vmul.f32 %v243, %v343
      %v379 = vmul.f32 %v244, %v343
      %v380 = vmul.f32 %v245, %v343
      %v381 = vmul.f32 %v246, %v343
      %v382 = vmul.f32 %v247, %v343
      %v383 = vmul.f32 %v248, %v343
      %v384 = vmul.f32 %v249, %v343
      %v385 = vmul.f32 %v250, %v343
      %v386 = vmul.f32 %v251, %v343
      %v387 = vmul.f32 %v252, %v343
      %v388 = vmul.f32 %v253, %v343
      %v389 = vmul.f32 %v254, %v343
      %v390 = vmul.f32 %v255, %v343
      %v391 = vmul.f32 %v256, %v343
      %v392 = vmul.f32 %v257, %v343
      %v393 = vmul.f32 %v258, %v343
      %v394 = vmul.f32 %v259, %v343
      %v395 = vmul.f32 %v260, %v343
      %v396 = vmul.f32 %v261, %v343
      %v397 = vmul.f32 %v262, %v343
      %v398 = vmul.f32 %v263, %v343
      %v399 = vmul.f32 %v264, %v343
      %v400 = vmul.f32 %v265, %v343
      %v401 = vmul.f32 %v266, %v343
      %v402 = vmul.f32 %v267, %v343
      %v403 = vmul.f32 %v268, %v343
      %v404 = vmul.f32 %v269, %v343
      %v405 = vmul.f32 %v270, %v343
      %v406 = vmul.f32 %v271, %v343
      %v407 = vmul.f32 %v272, %v343
      %v408 = vmul.f32 %v273, %v343
      %v409 = vmul.f32 %v274, %v343
      %v410 = vmul.f32 %v275, %v343
      %v411 = vmul.f32 %v276, %v343
      %v412 = vmul.f32 %v277, %v343
      %v413 = vmul.f32 %v278, %v343
      %v414 = vmul.f32 %v279, %v343
      %v415 = vmul.f32 %v280, %v343
      %v416 = vmul.f32 %v281, %v343
      %v417 = vmul.f32 %v282, %v343
      %v418 = vmul.f32 %v283, %v343
      %v419 = vmul.f32 %v284, %v343
      %v420 = vmul.f32 %v285, %v343
      %v421 = vmul.f32 %v286, %v343
      %v422 = vmul.f32 %v287, %v343
      %v423 = vmul.f32 %v288, %v343
      %v424 = vmul.f32 %v289, %v343
      %v425 = vmul.f32 %v290, %v343
      %v426 = vmul.f32 %v291, %v343
      %v427 = vmul.f32 %v292, %v343
      %v428 = vmul.f32 %v293, %v343
      %v429 = vmul.f32 %v294, %v343
      %v430 = vmul.f32 %v295, %v343
      %v431 = vmul.f32 %v296, %v343
      %v432 = vmul.f32 %v297, %v343
      %v433 = vmul.f32 %v298, %v343
      %v434 = vmul.f32 %v299, %v343
      %v435 = vmul.f32 %v300, %v343
      %v436 = vmul.f32 %v301, %v343
      %v437 = vmul.f32 %v302, %v343
      %v438 = vmul.f32 %v303, %v343
      %v439 = vmul.f32 %v304, %v343
      %v440 = vmul.f32 %v305, %v343
      %v441 = vmul.f32 %v306, %v343
      %v442 = vmul.f32 %v307, %v343
      %v443 = vmul.f32 %v308, %v343
      %v444 = vmul.f32 %v309, %v343
      %v445 = vmul.f32 %v310, %v343
      %v446 = vmul.f32 %v311, %v343
      %v447 = vmul.f32 %v312, %v343
      %v448 = vmul.f32 %v313, %v343
      %v449 = vmul.f32 %v314, %v343
      %v450 = vmul.f32 %v315, %v343
      %v451 = vmul.f32 %v316, %v343
      %v452 = vmul.f32 %v317, %v343
      %v453 = vmul.f32 %v318, %v343
      %v454 = vmul.f32 %v319, %v343
      %v455 = vmul.f32 %v320, %v343
      %v456 = vmul.f32 %v321, %v343
      %v457 = vmul.f32 %v322, %v343
      %v458 = vmul.f32 %v323, %v343
      %v459 = vmul.f32 %v324, %v343
      %v460 = vmul.f32 %v325, %v343
      %v461 = vmul.f32 %v326, %v343
      %v462 = vmul.f32 %v327, %v343
      %v463 = vmul.f32 %v328, %v343
      %v464 = vmul.f32 %v329, %v343
      %v465 = vmul.f32 %v330, %v343
      %v466 = vmul.f32 %v331, %v343
      %v467 = vmul.f32 %v332, %v343
      %v468 = vmul.f32 %v333, %v343
      %v469 = vmul.f32 %v334, %v343
      %v470 = vmul.f32 %v335, %v343
      %v471 = vmul.f32 %v336, %v343
      %v472 = vmul.f32 %v337, %v343
      %v473 = vld [vmem:[%s2] sm:$0x1]
      %v475 = vlaneseq
      %v476 = vshrl.u32 %v475, 7
      %v477 = vsub.s32 0, %v476
      %v478 = vrot.slane %v473, %v477
      %v480 = vadd.f32 %v345, %v478
      %v481 = vadd.f32 %v346, %v478
      %v482 = vadd.f32 %v347, %v478
      %v483 = vadd.f32 %v348, %v478
      %v484 = vadd.f32 %v349, %v478
      %v485 = vadd.f32 %v350, %v478
      %v486 = vadd.f32 %v351, %v478
      %v487 = vadd.f32 %v352, %v478
      %v488 = vadd.f32 %v353, %v478
      %v489 = vadd.f32 %v354, %v478
      %v490 = vadd.f32 %v355, %v478
      %v491 = vadd.f32 %v356, %v478
      %v492 = vadd.f32 %v357, %v478
      %v493 = vadd.f32 %v358, %v478
      %v494 = vadd.f32 %v359, %v478
      %v495 = vadd.f32 %v360, %v478
      %v496 = vadd.f32 %v361, %v478
      %v497 = vadd.f32 %v362, %v478
      %v498 = vadd.f32 %v363, %v478
      %v499 = vadd.f32 %v364, %v478
      %v500 = vadd.f32 %v365, %v478
      %v501 = vadd.f32 %v366, %v478
      %v502 = vadd.f32 %v367, %v478
      %v503 = vadd.f32 %v368, %v478
      %v504 = vadd.f32 %v369, %v478
      %v505 = vadd.f32 %v370, %v478
      %v506 = vadd.f32 %v371, %v478
      %v507 = vadd.f32 %v372, %v478
      %v508 = vadd.f32 %v373, %v478
      %v509 = vadd.f32 %v374, %v478
      %v510 = vadd.f32 %v375, %v478
      %v511 = vadd.f32 %v376, %v478
      %v512 = vadd.f32 %v377, %v478
      %v513 = vadd.f32 %v378, %v478
      %v514 = vadd.f32 %v379, %v478
      %v515 = vadd.f32 %v380, %v478
      %v516 = vadd.f32 %v381, %v478
      %v517 = vadd.f32 %v382, %v478
      %v518 = vadd.f32 %v383, %v478
      %v519 = vadd.f32 %v384, %v478
      %v520 = vadd.f32 %v385, %v478
      %v521 = vadd.f32 %v386, %v478
      %v522 = vadd.f32 %v387, %v478
      %v523 = vadd.f32 %v388, %v478
      %v524 = vadd.f32 %v389, %v478
      %v525 = vadd.f32 %v390, %v478
      %v526 = vadd.f32 %v391, %v478
      %v527 = vadd.f32 %v392, %v478
      %v528 = vadd.f32 %v393, %v478
      %v529 = vadd.f32 %v394, %v478
      %v530 = vadd.f32 %v395, %v478
      %v531 = vadd.f32 %v396, %v478
      %v532 = vadd.f32 %v397, %v478
      %v533 = vadd.f32 %v398, %v478
      %v534 = vadd.f32 %v399, %v478
      %v535 = vadd.f32 %v400, %v478
      %v536 = vadd.f32 %v401, %v478
      %v537 = vadd.f32 %v402, %v478
      %v538 = vadd.f32 %v403, %v478
      %v539 = vadd.f32 %v404, %v478
      %v540 = vadd.f32 %v405, %v478
      %v541 = vadd.f32 %v406, %v478
      %v542 = vadd.f32 %v407, %v478
      %v543 = vadd.f32 %v408, %v478
      %v544 = vadd.f32 %v409, %v478
      %v545 = vadd.f32 %v410, %v478
      %v546 = vadd.f32 %v411, %v478
      %v547 = vadd.f32 %v412, %v478
      %v548 = vadd.f32 %v413, %v478
      %v549 = vadd.f32 %v414, %v478
      %v550 = vadd.f32 %v415, %v478
      %v551 = vadd.f32 %v416, %v478
      %v552 = vadd.f32 %v417, %v478
      %v553 = vadd.f32 %v418, %v478
      %v554 = vadd.f32 %v419, %v478
      %v555 = vadd.f32 %v420, %v478
      %v556 = vadd.f32 %v421, %v478
      %v557 = vadd.f32 %v422, %v478
      %v558 = vadd.f32 %v423, %v478
      %v559 = vadd.f32 %v424, %v478
      %v560 = vadd.f32 %v425, %v478
      %v561 = vadd.f32 %v426, %v478
      %v562 = vadd.f32 %v427, %v478
      %v563 = vadd.f32 %v428, %v478
      %v564 = vadd.f32 %v429, %v478
      %v565 = vadd.f32 %v430, %v478
      %v566 = vadd.f32 %v431, %v478
      %v567 = vadd.f32 %v432, %v478
      %v568 = vadd.f32 %v433, %v478
      %v569 = vadd.f32 %v434, %v478
      %v570 = vadd.f32 %v435, %v478
      %v571 = vadd.f32 %v436, %v478
      %v572 = vadd.f32 %v437, %v478
      %v573 = vadd.f32 %v438, %v478
      %v574 = vadd.f32 %v439, %v478
      %v575 = vadd.f32 %v440, %v478
      %v576 = vadd.f32 %v441, %v478
      %v577 = vadd.f32 %v442, %v478
      %v578 = vadd.f32 %v443, %v478
      %v579 = vadd.f32 %v444, %v478
      %v580 = vadd.f32 %v445, %v478
      %v581 = vadd.f32 %v446, %v478
      %v582 = vadd.f32 %v447, %v478
      %v583 = vadd.f32 %v448, %v478
      %v584 = vadd.f32 %v449, %v478
      %v585 = vadd.f32 %v450, %v478
      %v586 = vadd.f32 %v451, %v478
      %v587 = vadd.f32 %v452, %v478
      %v588 = vadd.f32 %v453, %v478
      %v589 = vadd.f32 %v454, %v478
      %v590 = vadd.f32 %v455, %v478
      %v591 = vadd.f32 %v456, %v478
      %v592 = vadd.f32 %v457, %v478
      %v593 = vadd.f32 %v458, %v478
      %v594 = vadd.f32 %v459, %v478
      %v595 = vadd.f32 %v460, %v478
      %v596 = vadd.f32 %v461, %v478
      %v597 = vadd.f32 %v462, %v478
      %v598 = vadd.f32 %v463, %v478
      %v599 = vadd.f32 %v464, %v478
      %v600 = vadd.f32 %v465, %v478
      %v601 = vadd.f32 %v466, %v478
      %v602 = vadd.f32 %v467, %v478
      %v603 = vadd.f32 %v468, %v478
      %v604 = vadd.f32 %v469, %v478
      %v605 = vadd.f32 %v470, %v478
      %v606 = vadd.f32 %v471, %v478
      %v607 = vadd.f32 %v472, %v478
      %v608 = vmax.f32 %v480, 0.0
      %v609 = vmax.f32 %v481, 0.0
      %v610 = vmax.f32 %v482, 0.0
      %v611 = vmax.f32 %v483, 0.0
      %v612 = vmax.f32 %v484, 0.0
      %v613 = vmax.f32 %v485, 0.0
      %v614 = vmax.f32 %v486, 0.0
      %v615 = vmax.f32 %v487, 0.0
      %v616 = vmax.f32 %v488, 0.0
      %v617 = vmax.f32 %v489, 0.0
      %v618 = vmax.f32 %v490, 0.0
      %v619 = vmax.f32 %v491, 0.0
      %v620 = vmax.f32 %v492, 0.0
      %v621 = vmax.f32 %v493, 0.0
      %v622 = vmax.f32 %v494, 0.0
      %v623 = vmax.f32 %v495, 0.0
      %v624 = vmax.f32 %v496, 0.0
      %v625 = vmax.f32 %v497, 0.0
      %v626 = vmax.f32 %v498, 0.0
      %v627 = vmax.f32 %v499, 0.0
      %v628 = vmax.f32 %v500, 0.0
      %v629 = vmax.f32 %v501, 0.0
      %v630 = vmax.f32 %v502, 0.0
      %v631 = vmax.f32 %v503, 0.0
      %v632 = vmax.f32 %v504, 0.0
      %v633 = vmax.f32 %v505, 0.0
      %v634 = vmax.f32 %v506, 0.0
      %v635 = vmax.f32 %v507, 0.0
      %v636 = vmax.f32 %v508, 0.0
      %v637 = vmax.f32 %v509, 0.0
      %v638 = vmax.f32 %v510, 0.0
      %v639 = vmax.f32 %v511, 0.0
      %v640 = vmax.f32 %v512, 0.0
      %v641 = vmax.f32 %v513, 0.0
      %v642 = vmax.f32 %v514, 0.0
      %v643 = vmax.f32 %v515, 0.0
      %v644 = vmax.f32 %v516, 0.0
      %v645 = vmax.f32 %v517, 0.0
      %v646 = vmax.f32 %v518, 0.0
      %v647 = vmax.f32 %v519, 0.0
      %v648 = vmax.f32 %v520, 0.0
      %v649 = vmax.f32 %v521, 0.0
      %v650 = vmax.f32 %v522, 0.0
      %v651 = vmax.f32 %v523, 0.0
      %v652 = vmax.f32 %v524, 0.0
      %v653 = vmax.f32 %v525, 0.0
      %v654 = vmax.f32 %v526, 0.0
      %v655 = vmax.f32 %v527, 0.0
      %v656 = vmax.f32 %v528, 0.0
      %v657 = vmax.f32 %v529, 0.0
      %v658 = vmax.f32 %v530, 0.0
      %v659 = vmax.f32 %v531, 0.0
      %v660 = vmax.f32 %v532, 0.0
      %v661 = vmax.f32 %v533, 0.0
      %v662 = vmax.f32 %v534, 0.0
      %v663 = vmax.f32 %v535, 0.0
      %v664 = vmax.f32 %v536, 0.0
      %v665 = vmax.f32 %v537, 0.0
      %v666 = vmax.f32 %v538, 0.0
      %v667 = vmax.f32 %v539, 0.0
      %v668 = vmax.f32 %v540, 0.0
      %v669 = vmax.f32 %v541, 0.0
      %v670 = vmax.f32 %v542, 0.0
      %v671 = vmax.f32 %v543, 0.0
      %v672 = vmax.f32 %v544, 0.0
      %v673 = vmax.f32 %v545, 0.0
      %v674 = vmax.f32 %v546, 0.0
      %v675 = vmax.f32 %v547, 0.0
      %v676 = vmax.f32 %v548, 0.0
      %v677 = vmax.f32 %v549, 0.0
      %v678 = vmax.f32 %v550, 0.0
      %v679 = vmax.f32 %v551, 0.0
      %v680 = vmax.f32 %v552, 0.0
      %v681 = vmax.f32 %v553, 0.0
      %v682 = vmax.f32 %v554, 0.0
      %v683 = vmax.f32 %v555, 0.0
      %v684 = vmax.f32 %v556, 0.0
      %v685 = vmax.f32 %v557, 0.0
      %v686 = vmax.f32 %v558, 0.0
      %v687 = vmax.f32 %v559, 0.0
      %v688 = vmax.f32 %v560, 0.0
      %v689 = vmax.f32 %v561, 0.0
      %v690 = vmax.f32 %v562, 0.0
      %v691 = vmax.f32 %v563, 0.0
      %v692 = vmax.f32 %v564, 0.0
      %v693 = vmax.f32 %v565, 0.0
      %v694 = vmax.f32 %v566, 0.0
      %v695 = vmax.f32 %v567, 0.0
      %v696 = vmax.f32 %v568, 0.0
      %v697 = vmax.f32 %v569, 0.0
      %v698 = vmax.f32 %v570, 0.0
      %v699 = vmax.f32 %v571, 0.0
      %v700 = vmax.f32 %v572, 0.0
      %v701 = vmax.f32 %v573, 0.0
      %v702 = vmax.f32 %v574, 0.0
      %v703 = vmax.f32 %v575, 0.0
      %v704 = vmax.f32 %v576, 0.0
      %v705 = vmax.f32 %v577, 0.0
      %v706 = vmax.f32 %v578, 0.0
      %v707 = vmax.f32 %v579, 0.0
      %v708 = vmax.f32 %v580, 0.0
      %v709 = vmax.f32 %v581, 0.0
      %v710 = vmax.f32 %v582, 0.0
      %v711 = vmax.f32 %v583, 0.0
      %v712 = vmax.f32 %v584, 0.0
      %v713 = vmax.f32 %v585, 0.0
      %v714 = vmax.f32 %v586, 0.0
      %v715 = vmax.f32 %v587, 0.0
      %v716 = vmax.f32 %v588, 0.0
      %v717 = vmax.f32 %v589, 0.0
      %v718 = vmax.f32 %v590, 0.0
      %v719 = vmax.f32 %v591, 0.0
      %v720 = vmax.f32 %v592, 0.0
      %v721 = vmax.f32 %v593, 0.0
      %v722 = vmax.f32 %v594, 0.0
      %v723 = vmax.f32 %v595, 0.0
      %v724 = vmax.f32 %v596, 0.0
      %v725 = vmax.f32 %v597, 0.0
      %v726 = vmax.f32 %v598, 0.0
      %v727 = vmax.f32 %v599, 0.0
      %v728 = vmax.f32 %v600, 0.0
      %v729 = vmax.f32 %v601, 0.0
      %v730 = vmax.f32 %v602, 0.0
      %v731 = vmax.f32 %v603, 0.0
      %v732 = vmax.f32 %v604, 0.0
      %v733 = vmax.f32 %v605, 0.0
      %v734 = vmax.f32 %v606, 0.0
      %v735 = vmax.f32 %v607, 0.0
      %736 = vxpose.xlu0.b32.start [1/16] %v608, 128
      %737 = vxpose.xlu0.b32.cont [2/16] %v609, 128
      %738 = vxpose.xlu0.b32.cont [3/16] %v610, 128
      %739 = vxpose.xlu0.b32.cont [4/16] %v611, 128
      %740 = vxpose.xlu0.b32.cont [5/16] %v612, 128
      %741 = vxpose.xlu0.b32.cont [6/16] %v613, 128
      %742 = vxpose.xlu0.b32.cont [7/16] %v614, 128
      %743 = vxpose.xlu0.b32.cont [8/16] %v615, 128
      %744 = vxpose.xlu0.b32.cont [9/16] %v616, 128
      %745 = vxpose.xlu0.b32.cont [10/16] %v617, 128
      %746 = vxpose.xlu0.b32.cont [11/16] %v618, 128
      %747 = vxpose.xlu0.b32.cont [12/16] %v619, 128
      %748 = vxpose.xlu0.b32.cont [13/16] %v620, 128
      %749 = vxpose.xlu0.b32.cont [14/16] %v621, 128
      %750 = vxpose.xlu0.b32.cont [15/16] %v622, 128
      %751 = vxpose.xlu0.b32.end [16/16] %v623, 128
      %v752 = vpop.trf.xlu0
      %v753 = vpop.trf.xlu0
      %v754 = vpop.trf.xlu0
      %v755 = vpop.trf.xlu0
      %v756 = vpop.trf.xlu0
      %v757 = vpop.trf.xlu0
      %v758 = vpop.trf.xlu0
      %v759 = vpop.trf.xlu0
      %v760 = vpop.trf.xlu0
      %v761 = vpop.trf.xlu0
      %v762 = vpop.trf.xlu0
      %v763 = vpop.trf.xlu0
      %v764 = vpop.trf.xlu0
      %v765 = vpop.trf.xlu0
      %v766 = vpop.trf.xlu0
      %v767 = vpop.trf.xlu0
      %768 = vxpose.xlu0.b32.start [1/16] %v624, 128
      %769 = vxpose.xlu0.b32.cont [2/16] %v625, 128
      %770 = vxpose.xlu0.b32.cont [3/16] %v626, 128
      %771 = vxpose.xlu0.b32.cont [4/16] %v627, 128
      %772 = vxpose.xlu0.b32.cont [5/16] %v628, 128
      %773 = vxpose.xlu0.b32.cont [6/16] %v629, 128
      %774 = vxpose.xlu0.b32.cont [7/16] %v630, 128
      %775 = vxpose.xlu0.b32.cont [8/16] %v631, 128
      %776 = vxpose.xlu0.b32.cont [9/16] %v632, 128
      %777 = vxpose.xlu0.b32.cont [10/16] %v633, 128
      %778 = vxpose.xlu0.b32.cont [11/16] %v634, 128
      %779 = vxpose.xlu0.b32.cont [12/16] %v635, 128
      %780 = vxpose.xlu0.b32.cont [13/16] %v636, 128
      %781 = vxpose.xlu0.b32.cont [14/16] %v637, 128
      %782 = vxpose.xlu0.b32.cont [15/16] %v638, 128
      %783 = vxpose.xlu0.b32.end [16/16] %v639, 128
      %v784 = vpop.trf.xlu0
      %v785 = vpop.trf.xlu0
      %v786 = vpop.trf.xlu0
      %v787 = vpop.trf.xlu0
      %v788 = vpop.trf.xlu0
      %v789 = vpop.trf.xlu0
      %v790 = vpop.trf.xlu0
      %v791 = vpop.trf.xlu0
      %v792 = vpop.trf.xlu0
      %v793 = vpop.trf.xlu0
      %v794 = vpop.trf.xlu0
      %v795 = vpop.trf.xlu0
      %v796 = vpop.trf.xlu0
      %v797 = vpop.trf.xlu0
      %v798 = vpop.trf.xlu0
      %v799 = vpop.trf.xlu0
      %800 = vxpose.xlu0.b32.start [1/16] %v640, 128
      %801 = vxpose.xlu0.b32.cont [2/16] %v641, 128
      %802 = vxpose.xlu0.b32.cont [3/16] %v642, 128
      %803 = vxpose.xlu0.b32.cont [4/16] %v643, 128
      %804 = vxpose.xlu0.b32.cont [5/16] %v644, 128
      %805 = vxpose.xlu0.b32.cont [6/16] %v645, 128
      %806 = vxpose.xlu0.b32.cont [7/16] %v646, 128
      %807 = vxpose.xlu0.b32.cont [8/16] %v647, 128
      %808 = vxpose.xlu0.b32.cont [9/16] %v648, 128
      %809 = vxpose.xlu0.b32.cont [10/16] %v649, 128
      %810 = vxpose.xlu0.b32.cont [11/16] %v650, 128
      %811 = vxpose.xlu0.b32.cont [12/16] %v651, 128
      %812 = vxpose.xlu0.b32.cont [13/16] %v652, 128
      %813 = vxpose.xlu0.b32.cont [14/16] %v653, 128
      %814 = vxpose.xlu0.b32.cont [15/16] %v654, 128
      %815 = vxpose.xlu0.b32.end [16/16] %v655, 128
      %v816 = vpop.trf.xlu0
      %v817 = vpop.trf.xlu0
      %v818 = vpop.trf.xlu0
      %v819 = vpop.trf.xlu0
      %v820 = vpop.trf.xlu0
      %v821 = vpop.trf.xlu0
      %v822 = vpop.trf.xlu0
      %v823 = vpop.trf.xlu0
      %v824 = vpop.trf.xlu0
      %v825 = vpop.trf.xlu0
      %v826 = vpop.trf.xlu0
      %v827 = vpop.trf.xlu0
      %v828 = vpop.trf.xlu0
      %v829 = vpop.trf.xlu0
      %v830 = vpop.trf.xlu0
      %v831 = vpop.trf.xlu0
      %832 = vxpose.xlu0.b32.start [1/16] %v656, 128
      %833 = vxpose.xlu0.b32.cont [2/16] %v657, 128
      %834 = vxpose.xlu0.b32.cont [3/16] %v658, 128
      %835 = vxpose.xlu0.b32.cont [4/16] %v659, 128
      %836 = vxpose.xlu0.b32.cont [5/16] %v660, 128
      %837 = vxpose.xlu0.b32.cont [6/16] %v661, 128
      %838 = vxpose.xlu0.b32.cont [7/16] %v662, 128
      %839 = vxpose.xlu0.b32.cont [8/16] %v663, 128
      %840 = vxpose.xlu0.b32.cont [9/16] %v664, 128
      %841 = vxpose.xlu0.b32.cont [10/16] %v665, 128
      %842 = vxpose.xlu0.b32.cont [11/16] %v666, 128
      %843 = vxpose.xlu0.b32.cont [12/16] %v667, 128
      %844 = vxpose.xlu0.b32.cont [13/16] %v668, 128
      %845 = vxpose.xlu0.b32.cont [14/16] %v669, 128
      %846 = vxpose.xlu0.b32.cont [15/16] %v670, 128
      %847 = vxpose.xlu0.b32.end [16/16] %v671, 128
      %v848 = vpop.trf.xlu0
      %v849 = vpop.trf.xlu0
      %v850 = vpop.trf.xlu0
      %v851 = vpop.trf.xlu0
      %v852 = vpop.trf.xlu0
      %v853 = vpop.trf.xlu0
      %v854 = vpop.trf.xlu0
      %v855 = vpop.trf.xlu0
      %v856 = vpop.trf.xlu0
      %v857 = vpop.trf.xlu0
      %v858 = vpop.trf.xlu0
      %v859 = vpop.trf.xlu0
      %v860 = vpop.trf.xlu0
      %v861 = vpop.trf.xlu0
      %v862 = vpop.trf.xlu0
      %v863 = vpop.trf.xlu0
      %864 = vxpose.xlu0.b32.start [1/16] %v672, 128
      %865 = vxpose.xlu0.b32.cont [2/16] %v673, 128
      %866 = vxpose.xlu0.b32.cont [3/16] %v674, 128
      %867 = vxpose.xlu0.b32.cont [4/16] %v675, 128
      %868 = vxpose.xlu0.b32.cont [5/16] %v676, 128
      %869 = vxpose.xlu0.b32.cont [6/16] %v677, 128
      %870 = vxpose.xlu0.b32.cont [7/16] %v678, 128
      %871 = vxpose.xlu0.b32.cont [8/16] %v679, 128
      %872 = vxpose.xlu0.b32.cont [9/16] %v680, 128
      %873 = vxpose.xlu0.b32.cont [10/16] %v681, 128
      %874 = vxpose.xlu0.b32.cont [11/16] %v682, 128
      %875 = vxpose.xlu0.b32.cont [12/16] %v683, 128
      %876 = vxpose.xlu0.b32.cont [13/16] %v684, 128
      %877 = vxpose.xlu0.b32.cont [14/16] %v685, 128
      %878 = vxpose.xlu0.b32.cont [15/16] %v686, 128
      %879 = vxpose.xlu0.b32.end [16/16] %v687, 128
      %v880 = vpop.trf.xlu0
      %v881 = vpop.trf.xlu0
      %v882 = vpop.trf.xlu0
      %v883 = vpop.trf.xlu0
      %v884 = vpop.trf.xlu0
      %v885 = vpop.trf.xlu0
      %v886 = vpop.trf.xlu0
      %v887 = vpop.trf.xlu0
      %v888 = vpop.trf.xlu0
      %v889 = vpop.trf.xlu0
      %v890 = vpop.trf.xlu0
      %v891 = vpop.trf.xlu0
      %v892 = vpop.trf.xlu0
      %v893 = vpop.trf.xlu0
      %v894 = vpop.trf.xlu0
      %v895 = vpop.trf.xlu0
      %896 = vxpose.xlu0.b32.start [1/16] %v688, 128
      %897 = vxpose.xlu0.b32.cont [2/16] %v689, 128
      %898 = vxpose.xlu0.b32.cont [3/16] %v690, 128
      %899 = vxpose.xlu0.b32.cont [4/16] %v691, 128
      %900 = vxpose.xlu0.b32.cont [5/16] %v692, 128
      %901 = vxpose.xlu0.b32.cont [6/16] %v693, 128
      %902 = vxpose.xlu0.b32.cont [7/16] %v694, 128
      %903 = vxpose.xlu0.b32.cont [8/16] %v695, 128
      %904 = vxpose.xlu0.b32.cont [9/16] %v696, 128
      %905 = vxpose.xlu0.b32.cont [10/16] %v697, 128
      %906 = vxpose.xlu0.b32.cont [11/16] %v698, 128
      %907 = vxpose.xlu0.b32.cont [12/16] %v699, 128
      %908 = vxpose.xlu0.b32.cont [13/16] %v700, 128
      %909 = vxpose.xlu0.b32.cont [14/16] %v701, 128
      %910 = vxpose.xlu0.b32.cont [15/16] %v702, 128
      %911 = vxpose.xlu0.b32.end [16/16] %v703, 128
      %v912 = vpop.trf.xlu0
      %v913 = vpop.trf.xlu0
      %v914 = vpop.trf.xlu0
      %v915 = vpop.trf.xlu0
      %v916 = vpop.trf.xlu0
      %v917 = vpop.trf.xlu0
      %v918 = vpop.trf.xlu0
      %v919 = vpop.trf.xlu0
      %v920 = vpop.trf.xlu0
      %v921 = vpop.trf.xlu0
      %v922 = vpop.trf.xlu0
      %v923 = vpop.trf.xlu0
      %v924 = vpop.trf.xlu0
      %v925 = vpop.trf.xlu0
      %v926 = vpop.trf.xlu0
      %v927 = vpop.trf.xlu0
      %928 = vxpose.xlu0.b32.start [1/16] %v704, 128
      %929 = vxpose.xlu0.b32.cont [2/16] %v705, 128
      %930 = vxpose.xlu0.b32.cont [3/16] %v706, 128
      %931 = vxpose.xlu0.b32.cont [4/16] %v707, 128
      %932 = vxpose.xlu0.b32.cont [5/16] %v708, 128
      %933 = vxpose.xlu0.b32.cont [6/16] %v709, 128
      %934 = vxpose.xlu0.b32.cont [7/16] %v710, 128
      %935 = vxpose.xlu0.b32.cont [8/16] %v711, 128
      %936 = vxpose.xlu0.b32.cont [9/16] %v712, 128
      %937 = vxpose.xlu0.b32.cont [10/16] %v713, 128
      %938 = vxpose.xlu0.b32.cont [11/16] %v714, 128
      %939 = vxpose.xlu0.b32.cont [12/16] %v715, 128
      %940 = vxpose.xlu0.b32.cont [13/16] %v716, 128
      %941 = vxpose.xlu0.b32.cont [14/16] %v717, 128
      %942 = vxpose.xlu0.b32.cont [15/16] %v718, 128
      %943 = vxpose.xlu0.b32.end [16/16] %v719, 128
      %v944 = vpop.trf.xlu0
      %v945 = vpop.trf.xlu0
      %v946 = vpop.trf.xlu0
      %v947 = vpop.trf.xlu0
      %v948 = vpop.trf.xlu0
      %v949 = vpop.trf.xlu0
      %v950 = vpop.trf.xlu0
      %v951 = vpop.trf.xlu0
      %v952 = vpop.trf.xlu0
      %v953 = vpop.trf.xlu0
      %v954 = vpop.trf.xlu0
      %v955 = vpop.trf.xlu0
      %v956 = vpop.trf.xlu0
      %v957 = vpop.trf.xlu0
      %v958 = vpop.trf.xlu0
      %v959 = vpop.trf.xlu0
      %960 = vxpose.xlu0.b32.start [1/16] %v720, 128
      %961 = vxpose.xlu0.b32.cont [2/16] %v721, 128
      %962 = vxpose.xlu0.b32.cont [3/16] %v722, 128
      %963 = vxpose.xlu0.b32.cont [4/16] %v723, 128
      %964 = vxpose.xlu0.b32.cont [5/16] %v724, 128
      %965 = vxpose.xlu0.b32.cont [6/16] %v725, 128
      %966 = vxpose.xlu0.b32.cont [7/16] %v726, 128
      %967 = vxpose.xlu0.b32.cont [8/16] %v727, 128
      %968 = vxpose.xlu0.b32.cont [9/16] %v728, 128
      %969 = vxpose.xlu0.b32.cont [10/16] %v729, 128
      %970 = vxpose.xlu0.b32.cont [11/16] %v730, 128
      %971 = vxpose.xlu0.b32.cont [12/16] %v731, 128
      %972 = vxpose.xlu0.b32.cont [13/16] %v732, 128
      %973 = vxpose.xlu0.b32.cont [14/16] %v733, 128
      %974 = vxpose.xlu0.b32.cont [15/16] %v734, 128
      %975 = vxpose.xlu0.b32.end [16/16] %v735, 128
      %v976 = vpop.trf.xlu0
      %v977 = vpop.trf.xlu0
      %v978 = vpop.trf.xlu0
      %v979 = vpop.trf.xlu0
      %v980 = vpop.trf.xlu0
      %v981 = vpop.trf.xlu0
      %v982 = vpop.trf.xlu0
      %v983 = vpop.trf.xlu0
      %v984 = vpop.trf.xlu0
      %v985 = vpop.trf.xlu0
      %v986 = vpop.trf.xlu0
      %v987 = vpop.trf.xlu0
      %v988 = vpop.trf.xlu0
      %v989 = vpop.trf.xlu0
      %v990 = vpop.trf.xlu0
      %v991 = vpop.trf.xlu0
      %992 = vst [vmem:[%s208] sm:$0xff] %v752
      %993 = vst [vmem:[%s208 + $0x8] sm:$0xff] %v784
      %994 = vst [vmem:[%s208 + $0x10] sm:$0xff] %v816
      %995 = vst [vmem:[%s208 + $0x18] sm:$0xff] %v848
      %996 = vst [vmem:[%s208 + $0x20] sm:$0xff] %v880
      %997 = vst [vmem:[%s208 + $0x28] sm:$0xff] %v912
      %998 = vst [vmem:[%s208 + $0x30] sm:$0xff] %v944
      %999 = vst [vmem:[%s208 + $0x38] sm:$0xff] %v976
      %s1000 = smul.u32 8, %s19
      %p1001 = scmp.lt.s32.totalorder %s18, 1
      %s1002 = scalar_select %p1001, %s18, 1
      %p1003 = scmp.lt.s32.totalorder %s1000, 7
      %s1004 = scalar_select %p1003, %s1000, 7
      %s1005 = smul.addr %s1002, 8
      %s1006 = sadd.s32 %s1004, %s1005
      %s1007 = smul.addr %s1006, 8
      %s1008 = scalar_lea.vmem %s3, %s1007
      // Predicated region
      $region33: #{basic2d_trans.3} parent=31 // pred_check
        %p1009 = pneg %p116
      $region34: #{basic2d_trans.3} parent=31 // pred_check_branch
        %1011 = sbr.rel (%p1009) target = $region36
      $region35: #{basic2d_trans.3} parent=31 // pred_region
        %s1012 = smul.u32 8, %s19
      $region36: #{basic2d_trans.3} parent=31 // pred_fallthru
        _
    $region32: #{basic2d_trans.3} parent=5 // pred_fallthru
      _
    %p1013 = scmp.le.s32.totalorder 2, %s9
    // Predicated region
    $region37: #{basic2d_trans.3} parent=5 // pred_check
      %p1014 = pneg %p1013
    $region38: #{basic2d_trans.3} parent=5 // pred_check_branch
      %1016 = sbr.rel (%p1014) target = $region40
    $region39: #{basic2d_trans.3} parent=5 // pred_region
      %s1017 = ssub.s32 %s9, 2
      // Predicated region
      $region41: #{basic2d_trans.3} parent=39 // pred_check
        %p1018 = pneg %p122
      $region42: #{basic2d_trans.3} parent=39 // pred_check_branch
        %1020 = sbr.rel (%p1018) target = $region44
      $region43: #{basic2d_trans.3} parent=39 // pred_region
        %s1021 = smul.u32 8, %s21
        %p1022 = scmp.lt.s32.totalorder %s20, 1
        %s1023 = scalar_select %p1022, %s20, 1
        %p1024 = scmp.lt.s32.totalorder %s1021, 7
        %s1025 = scalar_select %p1024, %s1021, 7
        %s1026 = smul.addr %s1023, 8
        %s1027 = sadd.s32 %s1025, %s1026
        %s1028 = smul.addr %s1027, 8
        %s1029 = scalar_lea.vmem %s3, %s1028
      $region44: #{basic2d_trans.3} parent=39 // pred_fallthru
        _
    $region40: #{basic2d_trans.3} parent=5 // pred_fallthru
      _
  $region6: #{basic2d_trans.3} parent=0 // loop_footer
    %s13 = sadd.s32 1, %s9
  $region7: #{basic2d_trans.3} parent=0 // loop_footer_branch
    %8 = sbr.rel target = $region3
  $region8: #{basic2d_trans.3} parent=0 // loop_exit
    _

// kernel: basic2d_trans.2
$region0: #{basic2d_trans.2}
  #allocation0 [shape = 'u32[]', space=smem, size = 0x4, offset = 0x4, fixed_abs, tag = 'smem constant byte address 0x4 - core index']
  #allocation1 [shape = 'u32[144,128]{1,0:T(1,128)}', space=vmem, size = 0x12000, scoped, tag = 'internal scratch']
  %s0 = inlined_call_operand.vmem [shape: f32[2,16,16,4], index: 0, kind: input, shape index: {}, may-alias: {0,1}]
  %s1 = inlined_call_operand.vmem [shape: f32[2,16,16,4], index: 1, kind: input, shape index: {}, may-alias: {0,1}]
  %s2 = inlined_call_operand.vmem [shape: f32[2,4,16], index: 2, kind: input, shape index: {}]
  %s3 = inlined_call_operand.vmem [shape: f32[4,4,16], index: 3, kind: input, shape index: {}]
  %s4 = inlined_call_operand.vmem [shape: f32[2,16,2,16,16], index: 4, kind: output, shape index: {0}]
  %s5 = inlined_call_operand.vmem [shape: f32[2,1,16], index: 5, kind: output, shape index: {1}]
  %s6 = inlined_call_operand.vmem [shape: f32[2,1,16], index: 6, kind: output, shape index: {2}]
  %7 = xla_tuple %s4, %s5, %s6
  %s8 = sld [smem:[#allocation0]]
  $region69: #{basic2d_trans.2} parent=0
    _
  %s10 = ssub.s32 1, %s8
  %s11 = scalar_select 0, %s10, %s8
  loop: start=0, step=1, limit=4
  $region2: #{basic2d_trans.2} parent=0 // loop_pre_header
    _
  $region3: #{basic2d_trans.2} parent=0 // loop_header
    %s13 = sphi 0, %s17
    %p14 = scmp.ge.s32.totalorder %s13, 4
    %s20 = sphi 0, %s32
    %s21 = sphi 0, %s28
    %s22 = sphi 0, %s20
    %s23 = sphi 0, %s21
    %s24 = sphi 0, %s22
    %s25 = sphi 0, %s23
    %s37 = sphi 0, %s39
    %s40 = sphi 0, %s37
    %s41 = sphi 0, %s40
    %s57 = sphi 0, %s41
    %s73 = sphi 0, %s75
    %s76 = sphi 0, %s73
    %s77 = sphi 0, %s76
    %s93 = sphi 0, %s77
    %s97 = sphi 0, %s97
    %s99 = sphi 0, %s97
    %s100 = sphi 0, %s99
    %s114 = sphi 0, %s100
    %s118 = sphi 0, %s118
    %s120 = sphi 0, %s118
    %s121 = sphi 0, %s120
    %s135 = sphi 0, %s121
    %s143 = sphi 0, %s145
    %s146 = sphi 0, %s143
    %s147 = sphi 0, %s146
    %s163 = sphi 0, %s147
    %s169 = sphi 0, %s171
    %s172 = sphi 0, %s169
    %s173 = sphi 0, %s172
    %s189 = sphi 0, %s173
    %s195 = sphi 0, %s197
    %s198 = sphi 0, %s195
    %s199 = sphi 0, %s198
    %s215 = sphi 0, %s199
  $region4: #{basic2d_trans.2} parent=0 // loop_header_branch
    %16 = sbr.rel (%p14) target = $region8
  $region5: #{basic2d_trans.2} parent=0 // loop_body
    %s18 = ssub.s32 %s13, 1
    %s19 = ssub.s32 %s13, 2
    %s26 = sadd.s32 1, %s21
    %p27 = scmp.ge.s32.totalorder %s26, 1
    %s28 = scalar_select %p27, 0, %s26
    %s29 = sadd.s32 1, %s20
    %s30 = scalar_select %p27, %s29, %s20
    %p31 = scmp.ge.s32.totalorder %s30, 2
    %s32 = scalar_select %p31, 0, %s30
    %s33 = ssub.s32 %s20, %s32
    %s34 = ssub.s32 %s21, %s28
    %s35 = sor.u32 %s33, %s34
    %p36 = scmp.eq.s32.totalorder %s35, 0
    %s38 = sadd.s32 %s37, 1
    %s39 = scalar_select %p36, %s37, %s38
    %p42 = pneg %p36
    %p43 = scmp.eq.s32.totalorder %s13, 1
    %p44 = por %p42, %p43
    %p45 = scmp.ne.s32.totalorder %s37, %s40
    %p46 = scmp.eq.s32.totalorder %s13, 0
    %p47 = por %p45, %p46
    %p48 = scmp.ne.s32.totalorder %s37, %s40
    %p49 = scmp.eq.s32.totalorder %s18, 1
    %p50 = por %p48, %p49
    %p51 = scmp.ne.s32.totalorder %s40, %s41
    %p52 = scmp.eq.s32.totalorder %s18, 0
    %p53 = por %p51, %p52
    %p54 = scmp.ne.s32.totalorder %s40, %s41
    %p55 = scmp.eq.s32.totalorder %s19, 1
    %p56 = por %p54, %p55
    %p58 = scmp.ne.s32.totalorder %s41, %s57
    %p59 = scmp.eq.s32.totalorder %s19, 0
    %p60 = por %p58, %p59
    %s61 = sadd.s32 %s21, 1
    %s62 = smul.u32 %s61, 16
    %p63 = scmp.lt.s32.totalorder %s62, 15
    %s64 = scalar_select %p63, %s62, 15
    %s65 = sadd.s32 %s28, 1
    %s66 = smul.u32 %s65, 16
    %p67 = scmp.lt.s32.totalorder %s66, 15
    %s68 = scalar_select %p67, %s66, 15
    %s69 = ssub.s32 %s20, %s32
    %s70 = ssub.s32 %s64, %s68
    %s71 = sor.u32 %s69, %s70
    %p72 = scmp.eq.s32.totalorder %s71, 0
    %s74 = sadd.s32 %s73, 1
    %s75 = scalar_select %p72, %s73, %s74
    %p78 = pneg %p72
    %p79 = scmp.eq.s32.totalorder %s13, 1
    %p80 = por %p78, %p79
    %p81 = scmp.ne.s32.totalorder %s73, %s76
    %p82 = scmp.eq.s32.totalorder %s13, 0
    %p83 = por %p81, %p82
    %p84 = scmp.ne.s32.totalorder %s73, %s76
    %p85 = scmp.eq.s32.totalorder %s18, 1
    %p86 = por %p84, %p85
    %p87 = scmp.ne.s32.totalorder %s76, %s77
    %p88 = scmp.eq.s32.totalorder %s18, 0
    %p89 = por %p87, %p88
    %p90 = scmp.ne.s32.totalorder %s76, %s77
    %p91 = scmp.eq.s32.totalorder %s19, 1
    %p92 = por %p90, %p91
    %p94 = scmp.ne.s32.totalorder %s77, %s93
    %p95 = scmp.eq.s32.totalorder %s19, 0
    %p96 = por %p94, %p95
    %s98 = sadd.s32 %s97, 1
    %p101 = scmp.eq.s32.totalorder %s13, 1
    %p102 = scmp.ne.s32.totalorder %s97, %s99
    %p103 = scmp.eq.s32.totalorder %s13, 0
    %p104 = por %p102, %p103
    %p105 = scmp.ne.s32.totalorder %s97, %s99
    %p106 = scmp.eq.s32.totalorder %s18, 1
    %p107 = por %p105, %p106
    %p108 = scmp.ne.s32.totalorder %s99, %s100
    %p109 = scmp.eq.s32.totalorder %s18, 0
    %p110 = por %p108, %p109
    %p111 = scmp.ne.s32.totalorder %s99, %s100
    %p112 = scmp.eq.s32.totalorder %s19, 1
    %p113 = por %p111, %p112
    %p115 = scmp.ne.s32.totalorder %s100, %s114
    %p116 = scmp.eq.s32.totalorder %s19, 0
    %p117 = por %p115, %p116
    %s119 = sadd.s32 %s118, 1
    %p122 = scmp.eq.s32.totalorder %s13, 1
    %p123 = scmp.ne.s32.totalorder %s118, %s120
    %p124 = scmp.eq.s32.totalorder %s13, 0
    %p125 = por %p123, %p124
    %p126 = scmp.ne.s32.totalorder %s118, %s120
    %p127 = scmp.eq.s32.totalorder %s18, 1
    %p128 = por %p126, %p127
    %p129 = scmp.ne.s32.totalorder %s120, %s121
    %p130 = scmp.eq.s32.totalorder %s18, 0
    %p131 = por %p129, %p130
    %p132 = scmp.ne.s32.totalorder %s120, %s121
    %p133 = scmp.eq.s32.totalorder %s19, 1
    %p134 = por %p132, %p133
    %p136 = scmp.ne.s32.totalorder %s121, %s135
    %p137 = scmp.eq.s32.totalorder %s19, 0
    %p138 = por %p136, %p137
    %s139 = ssub.s32 %s20, %s32
    %s140 = ssub.s32 %s21, %s28
    %s141 = sor.u32 %s139, %s140
    %p142 = scmp.eq.s32.totalorder %s141, 0
    %s144 = sadd.s32 %s143, 1
    %s145 = scalar_select %p142, %s143, %s144
    %p148 = pneg %p142
    %p149 = scmp.eq.s32.totalorder %s13, 1
    %p150 = por %p148, %p149
    %p151 = scmp.ne.s32.totalorder %s143, %s146
    %p152 = scmp.eq.s32.totalorder %s13, 0
    %p153 = por %p151, %p152
    %p154 = scmp.ne.s32.totalorder %s143, %s146
    %p155 = scmp.eq.s32.totalorder %s18, 1
    %p156 = por %p154, %p155
    %p157 = scmp.ne.s32.totalorder %s146, %s147
    %p158 = scmp.eq.s32.totalorder %s18, 0
    %p159 = por %p157, %p158
    %p160 = scmp.ne.s32.totalorder %s146, %s147
    %p161 = scmp.eq.s32.totalorder %s19, 1
    %p162 = por %p160, %p161
    %p164 = scmp.ne.s32.totalorder %s147, %s163
    %p165 = scmp.eq.s32.totalorder %s19, 0
    %p166 = por %p164, %p165
    %s167 = ssub.s32 %s20, %s32
    %p168 = scmp.eq.s32.totalorder %s167, 0
    %s170 = sadd.s32 %s169, 1
    %s171 = scalar_select %p168, %s169, %s170
    %p174 = pneg %p168
    %p175 = scmp.eq.s32.totalorder %s13, 1
    %p176 = por %p174, %p175
    %p177 = scmp.ne.s32.totalorder %s169, %s172
    %p178 = scmp.eq.s32.totalorder %s13, 0
    %p179 = por %p177, %p178
    %p180 = scmp.ne.s32.totalorder %s169, %s172
    %p181 = scmp.eq.s32.totalorder %s18, 1
    %p182 = por %p180, %p181
    %p183 = scmp.ne.s32.totalorder %s172, %s173
    %p184 = scmp.eq.s32.totalorder %s18, 0
    %p185 = por %p183, %p184
    %p186 = scmp.ne.s32.totalorder %s172, %s173
    %p187 = scmp.eq.s32.totalorder %s19, 1
    %p188 = por %p186, %p187
    %p190 = scmp.ne.s32.totalorder %s173, %s189
    %p191 = scmp.eq.s32.totalorder %s19, 0
    %p192 = por %p190, %p191
    %s193 = ssub.s32 %s20, %s32
    %p194 = scmp.eq.s32.totalorder %s193, 0
    %s196 = sadd.s32 %s195, 1
    %s197 = scalar_select %p194, %s195, %s196
    %p200 = pneg %p194
    %p201 = scmp.eq.s32.totalorder %s13, 1
    %p202 = por %p200, %p201
    %p203 = scmp.ne.s32.totalorder %s195, %s198
    %p204 = scmp.eq.s32.totalorder %s13, 0
    %p205 = por %p203, %p204
    %p206 = scmp.ne.s32.totalorder %s195, %s198
    %p207 = scmp.eq.s32.totalorder %s18, 1
    %p208 = por %p206, %p207
    %p209 = scmp.ne.s32.totalorder %s198, %s199
    %p210 = scmp.eq.s32.totalorder %s18, 0
    %p211 = por %p209, %p210
    %p212 = scmp.ne.s32.totalorder %s198, %s199
    %p213 = scmp.eq.s32.totalorder %s19, 1
    %p214 = por %p212, %p213
    %p216 = scmp.ne.s32.totalorder %s199, %s215
    %p217 = scmp.eq.s32.totalorder %s19, 0
    %p218 = por %p216, %p217
    %p219 = scmp.le.s32.totalorder 1, %s13
    %p220 = scmp.lt.s32.totalorder %s13, 3
    %p221 = pnand %p219, %p220
    %p222 = pneg %p221
    // Predicated region
    $region9: #{basic2d_trans.2} parent=5 // pred_check
      _
    $region10: #{basic2d_trans.2} parent=5 // pred_check_branch
      %224 = sbr.rel (%p221) target = $region12
    $region11: #{basic2d_trans.2} parent=5 // pred_region
      %s225 = ssub.s32 %s13, 1
      // Predicated region
      $region13: #{basic2d_trans.2} parent=11 // pred_check
        %p226 = pneg %p110
      $region14: #{basic2d_trans.2} parent=11 // pred_check_branch
        %228 = sbr.rel (%p226) target = $region16
      $region15: #{basic2d_trans.2} parent=11 // pred_region
        _
      $region16: #{basic2d_trans.2} parent=11 // pred_fallthru
        _
      // Predicated region
      $region17: #{basic2d_trans.2} parent=11 // pred_check
        %p229 = pneg %p131
      $region18: #{basic2d_trans.2} parent=11 // pred_check_branch
        %231 = sbr.rel (%p229) target = $region20
      $region19: #{basic2d_trans.2} parent=11 // pred_region
        _
      $region20: #{basic2d_trans.2} parent=11 // pred_fallthru
        _
    $region12: #{basic2d_trans.2} parent=5 // pred_fallthru
      _
    %p232 = scmp.lt.s32.totalorder %s13, 2
    // Predicated region
    $region21: #{basic2d_trans.2} parent=5 // pred_check
      %p233 = pneg %p232
    $region22: #{basic2d_trans.2} parent=5 // pred_check_branch
      %235 = sbr.rel (%p233) target = $region24
    $region23: #{basic2d_trans.2} parent=5 // pred_region
      // Predicated region
      $region25: #{basic2d_trans.2} parent=23 // pred_check
        %p236 = pneg %p47
      $region26: #{basic2d_trans.2} parent=23 // pred_check_branch
        %238 = sbr.rel (%p236) target = $region28
      $region27: #{basic2d_trans.2} parent=23 // pred_region
        %s239 = smul.u32 16, %s21
        %p240 = scmp.lt.s32.totalorder %s20, 1
        %s241 = scalar_select %p240, %s20, 1
        %p242 = scmp.lt.s32.totalorder %s239, 15
        %s243 = scalar_select %p242, %s239, 15
        %s244 = smul.addr %s243, 2
        %s245 = smul.addr %s241, 32
        %s246 = sadd.s32 %s244, %s245
        %s247 = smul.addr %s246, 8
        %s248 = scalar_lea.vmem %s0, %s247
        %s249 = smul.u32 16, %s21
      $region28: #{basic2d_trans.2} parent=23 // pred_fallthru
        _
      // Predicated region
      $region29: #{basic2d_trans.2} parent=23 // pred_check
        %p250 = pneg %p83
      $region30: #{basic2d_trans.2} parent=23 // pred_check_branch
        %252 = sbr.rel (%p250) target = $region32
      $region31: #{basic2d_trans.2} parent=23 // pred_region
        %s253 = sadd.s32 %s21, 1
        %s254 = smul.u32 %s253, 16
        %p255 = scmp.lt.s32.totalorder %s254, 15
        %s256 = scalar_select %p255, %s254, 15
        %p257 = scmp.lt.s32.totalorder %s20, 1
        %s258 = scalar_select %p257, %s20, 1
        %p259 = scmp.lt.s32.totalorder %s256, 15
        %s260 = scalar_select %p259, %s256, 15
        %s261 = smul.addr %s260, 2
        %s262 = smul.addr %s258, 32
        %s263 = sadd.s32 %s261, %s262
        %s264 = smul.addr %s263, 8
        %s265 = scalar_lea.vmem %s1, %s264
        %s266 = sadd.s32 %s21, 1
        %s267 = smul.u32 %s266, 16
        %p268 = scmp.lt.s32.totalorder %s267, 15
        %s269 = scalar_select %p268, %s267, 15
      $region32: #{basic2d_trans.2} parent=23 // pred_fallthru
        _
    $region24: #{basic2d_trans.2} parent=5 // pred_fallthru
      _
    %p270 = scmp.le.s32.totalorder 1, %s13
    %p271 = scmp.lt.s32.totalorder %s13, 3
    %p272 = pnand %p270, %p271
    %p273 = pneg %p272
    // Predicated region
    $region33: #{basic2d_trans.2} parent=5 // pred_check
      _
    $region34: #{basic2d_trans.2} parent=5 // pred_check_branch
      %275 = sbr.rel (%p272) target = $region36
    $region35: #{basic2d_trans.2} parent=5 // pred_region
      %s276 = ssub.s32 %s13, 1
      %s277 = smul.u32 16, %s23
      %p278 = scmp.lt.s32.totalorder %s22, 1
      %s279 = scalar_select %p278, %s22, 1
      %p280 = scmp.lt.s32.totalorder %s277, 15
      %s281 = scalar_select %p280, %s277, 15
      %s282 = smul.addr %s281, 2
      %s283 = smul.addr %s279, 32
      %s284 = sadd.s32 %s282, %s283
      %s285 = smul.addr %s284, 8
      %s286 = scalar_lea.vmem %s0, %s285
      %p287 = pneg %p53
      %p288 = pneg %p50
      %s289 = sadd.s32 %s23, 1
      %s290 = smul.u32 %s289, 16
      %p291 = scmp.lt.s32.totalorder %s290, 15
      %s292 = scalar_select %p291, %s290, 15
      %p293 = scmp.lt.s32.totalorder %s22, 1
      %s294 = scalar_select %p293, %s22, 1
      %p295 = scmp.lt.s32.totalorder %s292, 15
      %s296 = scalar_select %p295, %s292, 15
      %s297 = smul.addr %s296, 2
      %s298 = smul.addr %s294, 32
      %s299 = sadd.s32 %s297, %s298
      %s300 = smul.addr %s299, 8
      %s301 = scalar_lea.vmem %s1, %s300
      %p302 = pneg %p89
      %p303 = pneg %p86
      %p304 = pneg %p110
      %p305 = pneg %p107
      %p306 = pneg %p131
      %p307 = pneg %p128
      %p308 = pneg %p159
      %p309 = pneg %p156
      %s310 = smul.u32 16, %s23
      %p311 = scmp.lt.s32.totalorder %s22, 1
      %s312 = scalar_select %p311, %s22, 1
      %p313 = scmp.lt.s32.totalorder %s310, 15
      %s314 = scalar_select %p313, %s310, 15
      %s315 = smul.addr %s314, 4
      %s316 = smul.addr %s312, 64
      %s317 = sadd.s32 %s315, %s316
      %s318 = smul.addr %s317, 8
      %s319 = scalar_lea.vmem %s4, %s318
      %p320 = pneg %p185
      %p321 = pneg %p182
      %p322 = scmp.lt.s32.totalorder %s22, 1
      %s323 = scalar_select %p322, %s22, 1
      %s324 = scalar_lea.vmem %s5, %s323
      %p325 = pneg %p211
      %p326 = pneg %p208
      %p327 = scmp.lt.s32.totalorder %s22, 1
      %s328 = scalar_select %p327, %s22, 1
      %s329 = scalar_lea.vmem %s6, %s328
      %s330 = smul.u32 16, %s23
      %p331 = scmp.lt.s32.totalorder %s22, 1
      %s332 = scalar_select %p331, %s22, 1
      %p333 = scmp.lt.s32.totalorder %s330, 15
      %s334 = scalar_select %p333, %s330, 15
      %s335 = smul.addr %s334, 2
      %s336 = smul.addr %s332, 32
      %s337 = sadd.s32 %s335, %s336
      %s338 = smul.addr %s337, 8
      %s339 = scalar_lea.vmem %s0, %s338
      %s340 = smul.u32 16, %s23
      %s341 = sadd.s32 %s23, 1
      %s342 = smul.u32 %s341, 16
      %p343 = scmp.lt.s32.totalorder %s342, 15
      %s344 = scalar_select %p343, %s342, 15
      %p345 = scmp.lt.s32.totalorder %s22, 1
      %s346 = scalar_select %p345, %s22, 1
      %p347 = scmp.lt.s32.totalorder %s344, 15
      %s348 = scalar_select %p347, %s344, 15
      %s349 = smul.addr %s348, 2
      %s350 = smul.addr %s346, 32
      %s351 = sadd.s32 %s349, %s350
      %s352 = smul.addr %s351, 8
      %s353 = scalar_lea.vmem %s1, %s352
      %s354 = sadd.s32 %s23, 1
      %s355 = smul.u32 %s354, 16
      %p356 = scmp.lt.s32.totalorder %s355, 15
      %s357 = scalar_select %p356, %s355, 15
      %s358 = smul.u32 16, %s23
      %p359 = scmp.lt.s32.totalorder %s22, 1
      %s360 = scalar_select %p359, %s22, 1
      %p361 = scmp.lt.s32.totalorder %s358, 15
      %s362 = scalar_select %p361, %s358, 15
      %s363 = smul.addr %s362, 4
      %s364 = smul.addr %s360, 64
      %s365 = sadd.s32 %s363, %s364
      %s366 = smul.addr %s365, 8
      %s367 = scalar_lea.vmem %s4, %s366
      %s368 = smul.u32 16, %s23
      %p369 = scmp.lt.s32.totalorder %s22, 1
      %s370 = scalar_select %p369, %s22, 1
      %s371 = scalar_lea.vmem %s5, %s370
      %p372 = scmp.lt.s32.totalorder %s22, 1
      %s373 = scalar_select %p372, %s22, 1
      %s374 = scalar_lea.vmem %s6, %s373
      %v375 = vld [vmem:[%s339] sm:$0xff]
      %v376 = vld [vmem:[%s339 + $0x8] sm:$0xff]
      %v377 = vld [vmem:[%s339 + $0x10] sm:$0xff]
      %v378 = vld [vmem:[%s339 + $0x18] sm:$0xff]
      %v379 = vld [vmem:[%s339 + $0x20] sm:$0xff]
      %v380 = vld [vmem:[%s339 + $0x28] sm:$0xff]
      %v381 = vld [vmem:[%s339 + $0x30] sm:$0xff]
      %v382 = vld [vmem:[%s339 + $0x38] sm:$0xff]
      %v383 = vld [vmem:[%s339 + $0x40] sm:$0xff]
      %v384 = vld [vmem:[%s339 + $0x48] sm:$0xff]
      %v385 = vld [vmem:[%s339 + $0x50] sm:$0xff]
      %v386 = vld [vmem:[%s339 + $0x58] sm:$0xff]
      %v387 = vld [vmem:[%s339 + $0x60] sm:$0xff]
      %v388 = vld [vmem:[%s339 + $0x68] sm:$0xff]
      %v389 = vld [vmem:[%s339 + $0x70] sm:$0xff]
      %v390 = vld [vmem:[%s339 + $0x78] sm:$0xff]
      %v391 = vld [vmem:[%s339 + $0x80] sm:$0xff]
      %v392 = vld [vmem:[%s339 + $0x88] sm:$0xff]
      %v393 = vld [vmem:[%s339 + $0x90] sm:$0xff]
      %v394 = vld [vmem:[%s339 + $0x98] sm:$0xff]
      %v395 = vld [vmem:[%s339 + $0xa0] sm:$0xff]
      %v396 = vld [vmem:[%s339 + $0xa8] sm:$0xff]
      %v397 = vld [vmem:[%s339 + $0xb0] sm:$0xff]
      %v398 = vld [vmem:[%s339 + $0xb8] sm:$0xff]
      %v399 = vld [vmem:[%s339 + $0xc0] sm:$0xff]
      %v400 = vld [vmem:[%s339 + $0xc8] sm:$0xff]
      %v401 = vld [vmem:[%s339 + $0xd0] sm:$0xff]
      %v402 = vld [vmem:[%s339 + $0xd8] sm:$0xff]
      %v403 = vld [vmem:[%s339 + $0xe0] sm:$0xff]
      %v404 = vld [vmem:[%s339 + $0xe8] sm:$0xff]
      %v405 = vld [vmem:[%s339 + $0xf0] sm:$0xff]
      %v406 = vld [vmem:[%s339 + $0xf8] sm:$0xff]
      %v407 = vld [vmem:[%s353] sm:$0xff]
      %v408 = vld [vmem:[%s353 + $0x8] sm:$0xff]
      %p409 = scmp.eq.s32.totalorder %s23, 0
      %s410 = scalar_select %p409, 0.0, 1.0
      %v411 = vstv %s410
      %v412 = vmul.f32 %v407, %v411
      %v413 = vmul.f32 %v408, %v411
      %vm446 = vcmask 1046528
      %v447 = vrot.slane %v375, 1
      %v448 = vrot.slane %v376, 1
      %v449 = vsel %vm446, %v447, %v448
      %v450 = vrot.slane %v377, 1
      %v451 = vrot.slane %v378, 1
      %v452 = vsel %vm446, %v450, %v451
      %v453 = vrot.slane %v379, 1
      %v454 = vrot.slane %v380, 1
      %v455 = vsel %vm446, %v453, %v454
      %v456 = vrot.slane %v381, 1
      %v457 = vrot.slane %v382, 1
      %v458 = vsel %vm446, %v456, %v457
      %v459 = vrot.slane %v383, 1
      %v460 = vrot.slane %v384, 1
      %v461 = vsel %vm446, %v459, %v460
      %v462 = vrot.slane %v385, 1
      %v463 = vrot.slane %v386, 1
      %v464 = vsel %vm446, %v462, %v463
      %v465 = vrot.slane %v387, 1
      %v466 = vrot.slane %v388, 1
      %v467 = vsel %vm446, %v465, %v466
      %v468 = vrot.slane %v389, 1
      %v469 = vrot.slane %v390, 1
      %v470 = vsel %vm446, %v468, %v469
      %v471 = vrot.slane %v391, 1
      %v472 = vrot.slane %v392, 1
      %v473 = vsel %vm446, %v471, %v472
      %v474 = vrot.slane %v393, 1
      %v475 = vrot.slane %v394, 1
      %v476 = vsel %vm446, %v474, %v475
      %v477 = vrot.slane %v395, 1
      %v478 = vrot.slane %v396, 1
      %v479 = vsel %vm446, %v477, %v478
      %v480 = vrot.slane %v397, 1
      %v481 = vrot.slane %v398, 1
      %v482 = vsel %vm446, %v480, %v481
      %v483 = vrot.slane %v399, 1
      %v484 = vrot.slane %v400, 1
      %v485 = vsel %vm446, %v483, %v484
      %v486 = vrot.slane %v401, 1
      %v487 = vrot.slane %v402, 1
      %v488 = vsel %vm446, %v486, %v487
      %v489 = vrot.slane %v403, 1
      %v490 = vrot.slane %v404, 1
      %v491 = vsel %vm446, %v489, %v490
      %v492 = vrot.slane %v405, 1
      %v493 = vrot.slane %v406, 1
      %v494 = vsel %vm446, %v492, %v493
      %v511 = vsel %vm446, %v448, 0.0
      %v512 = vsel %vm446, %v451, 0.0
      %v513 = vsel %vm446, %v454, 0.0
      %v514 = vsel %vm446, %v457, 0.0
      %v515 = vsel %vm446, %v460, 0.0
      %v516 = vsel %vm446, %v463, 0.0
      %v517 = vsel %vm446, %v466, 0.0
      %v518 = vsel %vm446, %v469, 0.0
      %v519 = vsel %vm446, %v472, 0.0
      %v520 = vsel %vm446, %v475, 0.0
      %v521 = vsel %vm446, %v478, 0.0
      %v522 = vsel %vm446, %v481, 0.0
      %v523 = vsel %vm446, %v484, 0.0
      %v524 = vsel %vm446, %v487, 0.0
      %v525 = vsel %vm446, %v490, 0.0
      %v526 = vsel %vm446, %v493, 0.0
      %v529 = vrot.slane %v412, 1
      %v530 = vrot.slane %v413, 1
      %v531 = vsel %vm446, %v529, %v530
      %v533 = vsel %vm446, %v530, 0.0
      %v534 = vld [vmem:[%s2] sm:$0xf]
      %s535 = scalar_lea.vmem %s2, 4
      %v536 = vld [vmem:[%s535] sm:$0xf]
      %vm537 = vcmask 31744
      %v538 = vsel %vm537, %v449, 0
      %v541 = vsel %vm537, %v511, 0
      %v543 = vsel %vm537, %v452, 0
      %v546 = vsel %vm537, %v512, 0
      %v548 = vsel %vm537, %v455, 0
      %v551 = vsel %vm537, %v513, 0
      %v553 = vsel %vm537, %v458, 0
      %v556 = vsel %vm537, %v514, 0
      %v558 = vsel %vm537, %v461, 0
      %v561 = vsel %vm537, %v515, 0
      %v563 = vsel %vm537, %v464, 0
      %v566 = vsel %vm537, %v516, 0
      %v568 = vsel %vm537, %v467, 0
      %v571 = vsel %vm537, %v517, 0
      %v573 = vsel %vm537, %v470, 0
      %v576 = vsel %vm537, %v518, 0
      %v578 = vsel %vm537, %v473, 0
      %v581 = vsel %vm537, %v519, 0
      %v583 = vsel %vm537, %v476, 0
      %v586 = vsel %vm537, %v520, 0
      %v588 = vsel %vm537, %v479, 0
      %v591 = vsel %vm537, %v521, 0
      %v593 = vsel %vm537, %v482, 0
      %v596 = vsel %vm537, %v522, 0
      %v598 = vsel %vm537, %v485, 0
      %v601 = vsel %vm537, %v523, 0
      %v603 = vsel %vm537, %v488, 0
      %v606 = vsel %vm537, %v524, 0
      %v608 = vsel %vm537, %v491, 0
      %v611 = vsel %vm537, %v525, 0
      %v613 = vsel %vm537, %v494, 0
      %v616 = vsel %vm537, %v526, 0
      %vm618 = vcmask 1043456
      %v620 = vsel %vm618, %v536, 0
      %622 = vmatprep.subr.mxu0 0.0
      %623 = vmatpush1.msra.mxu0 %v620
      %624 = vmatprep.subr.mxu0 0.0
      %625 = vmatpush1.msra.mxu0 0.0
      %626 = vmatprep.subr.mxu0 0.0
      %627 = vmatpush1.msra.mxu0 0.0
      %628 = vmatprep.subr.mxu0 0.0
      %629 = vmatpush1.msra.mxu0 0.0
      %630 = vmatprep.subr.mxu0 0.0
      %631 = vmatpush1.msra.mxu0 0.0
      %632 = vmatprep.subr.mxu0 0.0
      %633 = vmatpush1.msra.mxu0 0.0
      %634 = vmatprep.subr.mxu0 0.0
      %635 = vmatpush1.msra.mxu0 0.0
      %636 = vmatprep.subr.mxu0 0.0
      %637 = vmatpush1.msra.mxu0 0.0
      %638 = vmatprep.subr.mxu0 0.0
      %639 = vmatpush1.msra.mxu0 0.0
      %640 = vmatprep.subr.mxu0 0.0
      %641 = vmatpush1.msra.mxu0 0.0
      %642 = vmatprep.subr.mxu0 0.0
      %643 = vmatpush1.msra.mxu0 0.0
      %644 = vmatprep.subr.mxu0 0.0
      %645 = vmatpush1.msra.mxu0 0.0
      %646 = vmatprep.subr.mxu0 0.0
      %647 = vmatpush1.msra.mxu0 0.0
      %648 = vmatprep.subr.mxu0 0.0
      %649 = vmatpush1.msra.mxu0 0.0
      %650 = vmatprep.subr.mxu0 0.0
      %651 = vmatpush1.msra.mxu0 0.0
      %652 = vmatprep.subr.mxu0 0.0
      %653 = vmatpush1.msra.mxu0 0.0
      %654 = vmatprep.subr.mxu0 0.0
      %655 = vmatpush1.msra.mxu0 0.0
      %656 = vmatprep.subr.mxu0 0.0
      %657 = vmatpush1.msra.mxu0 0.0
      %658 = vmatprep.subr.mxu0 0.0
      %659 = vmatpush1.msra.mxu0 0.0
      %660 = vmatprep.subr.mxu0 0.0
      %661 = vmatpush1.msra.mxu0 0.0
      %662 = vmatprep.subr.mxu0 0.0
      %663 = vmatpush1.msra.mxu0 0.0
      %664 = vmatprep.subr.mxu0 0.0
      %665 = vmatpush1.msra.mxu0 0.0
      %666 = vmatprep.subr.mxu0 0.0
      %667 = vmatpush1.msra.mxu0 0.0
      %668 = vmatprep.subr.mxu0 0.0
      %669 = vmatpush1.msra.mxu0 0.0
      %670 = vmatprep.subr.mxu0 0.0
      %671 = vmatpush1.msra.mxu0 0.0
      %672 = vmatprep.subr.mxu0 0.0
      %673 = vmatpush1.msra.mxu0 0.0
      %674 = vmatprep.subr.mxu0 0.0
      %675 = vmatpush1.msra.mxu0 0.0
      %676 = vmatprep.subr.mxu0 0.0
      %677 = vmatpush1.msra.mxu0 0.0
      %678 = vmatprep.subr.mxu0 0.0
      %679 = vmatpush1.msra.mxu0 0.0
      %680 = vmatprep.subr.mxu0 0.0
      %681 = vmatpush1.msra.mxu0 0.0
      %682 = vmatprep.subr.mxu0 0.0
      %683 = vmatpush1.msra.mxu0 0.0
      %684 = vmatprep.subr.mxu0 0.0
      %685 = vmatpush1.msra.mxu0 0.0
      %686 = vmatprep.mubr.f32.mxu0 0.0
      %687 = vmatmul.mubr.f32.gmra.mrb[0].mxu0 %v538
      %v688 = vpop.f32.mrb[0].mxu0
      %v689 = vadd.f32 0.0, %v688
      %v690 = vpop.f32.mrb[0].mxu0
      %691 = vmatprep.mubr.f32.mxu0 0.0
      %692 = vmatmul.mubr.f32.gmra.mrb[0].mxu0 %v541
      %v693 = vpop.f32.mrb[0].mxu0
      %v694 = vadd.f32 0.0, %v693
      %v695 = vpop.f32.mrb[0].mxu0
      %696 = vmatprep.mubr.f32.mxu0 0.0
      %697 = vmatmul.mubr.f32.gmra.mrb[0].mxu0 %v543
      %v698 = vpop.f32.mrb[0].mxu0
      %v699 = vadd.f32 0.0, %v698
      %v700 = vpop.f32.mrb[0].mxu0
      %701 = vmatprep.mubr.f32.mxu0 0.0
      %702 = vmatmul.mubr.f32.gmra.mrb[0].mxu0 %v546
      %v703 = vpop.f32.mrb[0].mxu0
      %v704 = vadd.f32 0.0, %v703
      %v705 = vpop.f32.mrb[0].mxu0
      %706 = vmatprep.mubr.f32.mxu0 0.0
      %707 = vmatmul.mubr.f32.gmra.mrb[0].mxu0 %v548
      %v708 = vpop.f32.mrb[0].mxu0
      %v709 = vadd.f32 0.0, %v708
      %v710 = vpop.f32.mrb[0].mxu0
      %711 = vmatprep.mubr.f32.mxu0 0.0
      %712 = vmatmul.mubr.f32.gmra.mrb[0].mxu0 %v551
      %v713 = vpop.f32.mrb[0].mxu0
      %v714 = vadd.f32 0.0, %v713
      %v715 = vpop.f32.mrb[0].mxu0
      %716 = vmatprep.mubr.f32.mxu0 0.0
      %717 = vmatmul.mubr.f32.gmra.mrb[0].mxu0 %v553
      %v718 = vpop.f32.mrb[0].mxu0
      %v719 = vadd.f32 0.0, %v718
      %v720 = vpop.f32.mrb[0].mxu0
      %721 = vmatprep.mubr.f32.mxu0 0.0
      %722 = vmatmul.mubr.f32.gmra.mrb[0].mxu0 %v556
      %v723 = vpop.f32.mrb[0].mxu0
      %v724 = vadd.f32 0.0, %v723
      %v725 = vpop.f32.mrb[0].mxu0
      %726 = vmatprep.mubr.f32.mxu0 0.0
      %727 = vmatmul.mubr.f32.gmra.mrb[0].mxu0 %v558
      %v728 = vpop.f32.mrb[0].mxu0
      %v729 = vadd.f32 0.0, %v728
      %v730 = vpop.f32.mrb[0].mxu0
      %731 = vmatprep.mubr.f32.mxu0 0.0
      %732 = vmatmul.mubr.f32.gmra.mrb[0].mxu0 %v561
      %v733 = vpop.f32.mrb[0].mxu0
      %v734 = vadd.f32 0.0, %v733
      %v735 = vpop.f32.mrb[0].mxu0
      %736 = vmatprep.mubr.f32.mxu0 0.0
      %737 = vmatmul.mubr.f32.gmra.mrb[0].mxu0 %v563
      %v738 = vpop.f32.mrb[0].mxu0
      %v739 = vadd.f32 0.0, %v738
      %v740 = vpop.f32.mrb[0].mxu0
      %741 = vmatprep.mubr.f32.mxu0 0.0
      %742 = vmatmul.mubr.f32.gmra.mrb[0].mxu0 %v566
      %v743 = vpop.f32.mrb[0].mxu0
      %v744 = vadd.f32 0.0, %v743
      %v745 = vpop.f32.mrb[0].mxu0
      %746 = vmatprep.mubr.f32.mxu0 0.0
      %747 = vmatmul.mubr.f32.gmra.mrb[0].mxu0 %v568
      %v748 = vpop.f32.mrb[0].mxu0
      %v749 = vadd.f32 0.0, %v748
      %v750 = vpop.f32.mrb[0].mxu0
      %751 = vmatprep.mubr.f32.mxu0 0.0
      %752 = vmatmul.mubr.f32.gmra.mrb[0].mxu0 %v571
      %v753 = vpop.f32.mrb[0].mxu0
      %v754 = vadd.f32 0.0, %v753
      %v755 = vpop.f32.mrb[0].mxu0
      %756 = vmatprep.mubr.f32.mxu0 0.0
      %757 = vmatmul.mubr.f32.gmra.mrb[0].mxu0 %v573
      %v758 = vpop.f32.mrb[0].mxu0
      %v759 = vadd.f32 0.0, %v758
      %v760 = vpop.f32.mrb[0].mxu0
      %761 = vmatprep.mubr.f32.mxu0 0.0
      %762 = vmatmul.mubr.f32.gmra.mrb[0].mxu0 %v576
      %v763 = vpop.f32.mrb[0].mxu0
      %v764 = vadd.f32 0.0, %v763
      %v765 = vpop.f32.mrb[0].mxu0
      %766 = vmatprep.mubr.f32.mxu0 0.0
      %767 = vmatmul.mubr.f32.gmra.mrb[0].mxu0 %v578
      %v768 = vpop.f32.mrb[0].mxu0
      %v769 = vadd.f32 0.0, %v768
      %v770 = vpop.f32.mrb[0].mxu0
      %771 = vmatprep.mubr.f32.mxu0 0.0
      %772 = vmatmul.mubr.f32.gmra.mrb[0].mxu0 %v581
      %v773 = vpop.f32.mrb[0].mxu0
      %v774 = vadd.f32 0.0, %v773
      %v775 = vpop.f32.mrb[0].mxu0
      %776 = vmatprep.mubr.f32.mxu0 0.0
      %777 = vmatmul.mubr.f32.gmra.mrb[0].mxu0 %v583
      %v778 = vpop.f32.mrb[0].mxu0
      %v779 = vadd.f32 0.0, %v778
      %v780 = vpop.f32.mrb[0].mxu0
      %781 = vmatprep.mubr.f32.mxu0 0.0
      %782 = vmatmul.mubr.f32.gmra.mrb[0].mxu0 %v586
      %v783 = vpop.f32.mrb[0].mxu0
      %v784 = vadd.f32 0.0, %v783
      %v785 = vpop.f32.mrb[0].mxu0
      %786 = vmatprep.mubr.f32.mxu0 0.0
      %787 = vmatmul.mubr.f32.gmra.mrb[0].mxu0 %v588
      %v788 = vpop.f32.mrb[0].mxu0
      %v789 = vadd.f32 0.0, %v788
      %v790 = vpop.f32.mrb[0].mxu0
      %791 = vmatprep.mubr.f32.mxu0 0.0
      %792 = vmatmul.mubr.f32.gmra.mrb[0].mxu0 %v591
      %v793 = vpop.f32.mrb[0].mxu0
      %v794 = vadd.f32 0.0, %v793
      %v795 = vpop.f32.mrb[0].mxu0
      %796 = vmatprep.mubr.f32.mxu0 0.0
      %797 = vmatmul.mubr.f32.gmra.mrb[0].mxu0 %v593
      %v798 = vpop.f32.mrb[0].mxu0
      %v799 = vadd.f32 0.0, %v798
      %v800 = vpop.f32.mrb[0].mxu0
      %801 = vmatprep.mubr.f32.mxu0 0.0
      %802 = vmatmul.mubr.f32.gmra.mrb[0].mxu0 %v596
      %v803 = vpop.f32.mrb[0].mxu0
      %v804 = vadd.f32 0.0, %v803
      %v805 = vpop.f32.mrb[0].mxu0
      %806 = vmatprep.mubr.f32.mxu0 0.0
      %807 = vmatmul.mubr.f32.gmra.mrb[0].mxu0 %v598
      %v808 = vpop.f32.mrb[0].mxu0
      %v809 = vadd.f32 0.0, %v808
      %v810 = vpop.f32.mrb[0].mxu0
      %811 = vmatprep.mubr.f32.mxu0 0.0
      %812 = vmatmul.mubr.f32.gmra.mrb[0].mxu0 %v601
      %v813 = vpop.f32.mrb[0].mxu0
      %v814 = vadd.f32 0.0, %v813
      %v815 = vpop.f32.mrb[0].mxu0
      %816 = vmatprep.mubr.f32.mxu0 0.0
      %817 = vmatmul.mubr.f32.gmra.mrb[0].mxu0 %v603
      %v818 = vpop.f32.mrb[0].mxu0
      %v819 = vadd.f32 0.0, %v818
      %v820 = vpop.f32.mrb[0].mxu0
      %821 = vmatprep.mubr.f32.mxu0 0.0
      %822 = vmatmul.mubr.f32.gmra.mrb[0].mxu0 %v606
      %v823 = vpop.f32.mrb[0].mxu0
      %v824 = vadd.f32 0.0, %v823
      %v825 = vpop.f32.mrb[0].mxu0
      %826 = vmatprep.mubr.f32.mxu0 0.0
      %827 = vmatmul.mubr.f32.gmra.mrb[0].mxu0 %v608
      %v828 = vpop.f32.mrb[0].mxu0
      %v829 = vadd.f32 0.0, %v828
      %v830 = vpop.f32.mrb[0].mxu0
      %831 = vmatprep.mubr.f32.mxu0 0.0
      %832 = vmatmul.mubr.f32.gmra.mrb[0].mxu0 %v611
      %v833 = vpop.f32.mrb[0].mxu0
      %v834 = vadd.f32 0.0, %v833
      %v835 = vpop.f32.mrb[0].mxu0
      %836 = vmatprep.mubr.f32.mxu0 0.0
      %837 = vmatmul.mubr.f32.gmra.mrb[0].mxu0 %v613
      %v838 = vpop.f32.mrb[0].mxu0
      %v839 = vadd.f32 0.0, %v838
      %v840 = vpop.f32.mrb[0].mxu0
      %841 = vmatprep.mubr.f32.mxu0 0.0
      %842 = vmatmul.mubr.f32.gmra.mrb[0].mxu0 %v616
      %v843 = vpop.f32.mrb[0].mxu0
      %v844 = vadd.f32 0.0, %v843
      %v845 = vpop.f32.mrb[0].mxu0
      %846 = vdwg.mxu0
      %v847 = vsel %vm537, %v375, 0
      %v849 = vsel %vm537, %v376, 0
      %v851 = vsel %vm537, %v377, 0
      %v853 = vsel %vm537, %v378, 0
      %v855 = vsel %vm537, %v379, 0
      %v857 = vsel %vm537, %v380, 0
      %v859 = vsel %vm537, %v381, 0
      %v861 = vsel %vm537, %v382, 0
      %v863 = vsel %vm537, %v383, 0
      %v865 = vsel %vm537, %v384, 0
      %v867 = vsel %vm537, %v385, 0
      %v869 = vsel %vm537, %v386, 0
      %v871 = vsel %vm537, %v387, 0
      %v873 = vsel %vm537, %v388, 0
      %v875 = vsel %vm537, %v389, 0
      %v877 = vsel %vm537, %v390, 0
      %v879 = vsel %vm537, %v391, 0
      %v881 = vsel %vm537, %v392, 0
      %v883 = vsel %vm537, %v393, 0
      %v885 = vsel %vm537, %v394, 0
      %v887 = vsel %vm537, %v395, 0
      %v889 = vsel %vm537, %v396, 0
      %v891 = vsel %vm537, %v397, 0
      %v893 = vsel %vm537, %v398, 0
      %v895 = vsel %vm537, %v399, 0
      %v897 = vsel %vm537, %v400, 0
      %v899 = vsel %vm537, %v401, 0
      %v901 = vsel %vm537, %v402, 0
      %v903 = vsel %vm537, %v403, 0
      %v905 = vsel %vm537, %v404, 0
      %v907 = vsel %vm537, %v405, 0
      %v909 = vsel %vm537, %v406, 0
      %v912 = vsel %vm618, %v534, 0
      %914 = vmatprep.subr.mxu0 0.0
      %915 = vmatpush1.msra.mxu0 %v912
      %916 = vmatprep.subr.mxu0 0.0
      %917 = vmatpush1.msra.mxu0 0.0
      %918 = vmatprep.subr.mxu0 0.0
      %919 = vmatpush1.msra.mxu0 0.0
      %920 = vmatprep.subr.mxu0 0.0
      %921 = vmatpush1.msra.mxu0 0.0
      %922 = vmatprep.subr.mxu0 0.0
      %923 = vmatpush1.msra.mxu0 0.0
      %924 = vmatprep.subr.mxu0 0.0
      %925 = vmatpush1.msra.mxu0 0.0
      %926 = vmatprep.subr.mxu0 0.0
      %927 = vmatpush1.msra.mxu0 0.0
      %928 = vmatprep.subr.mxu0 0.0
      %929 = vmatpush1.msra.mxu0 0.0
      %930 = vmatprep.subr.mxu0 0.0
      %931 = vmatpush1.msra.mxu0 0.0
      %932 = vmatprep.subr.mxu0 0.0
      %933 = vmatpush1.msra.mxu0 0.0
      %934 = vmatprep.subr.mxu0 0.0
      %935 = vmatpush1.msra.mxu0 0.0
      %936 = vmatprep.subr.mxu0 0.0
      %937 = vmatpush1.msra.mxu0 0.0
      %938 = vmatprep.subr.mxu0 0.0
      %939 = vmatpush1.msra.mxu0 0.0
      %940 = vmatprep.subr.mxu0 0.0
      %941 = vmatpush1.msra.mxu0 0.0
      %942 = vmatprep.subr.mxu0 0.0
      %943 = vmatpush1.msra.mxu0 0.0
      %944 = vmatprep.subr.mxu0 0.0
      %945 = vmatpush1.msra.mxu0 0.0
      %946 = vmatprep.subr.mxu0 0.0
      %947 = vmatpush1.msra.mxu0 0.0
      %948 = vmatprep.subr.mxu0 0.0
      %949 = vmatpush1.msra.mxu0 0.0
      %950 = vmatprep.subr.mxu0 0.0
      %951 = vmatpush1.msra.mxu0 0.0
      %952 = vmatprep.subr.mxu0 0.0
      %953 = vmatpush1.msra.mxu0 0.0
      %954 = vmatprep.subr.mxu0 0.0
      %955 = vmatpush1.msra.mxu0 0.0
      %956 = vmatprep.subr.mxu0 0.0
      %957 = vmatpush1.msra.mxu0 0.0
      %958 = vmatprep.subr.mxu0 0.0
      %959 = vmatpush1.msra.mxu0 0.0
      %960 = vmatprep.subr.mxu0 0.0
      %961 = vmatpush1.msra.mxu0 0.0
      %962 = vmatprep.subr.mxu0 0.0
      %963 = vmatpush1.msra.mxu0 0.0
      %964 = vmatprep.subr.mxu0 0.0
      %965 = vmatpush1.msra.mxu0 0.0
      %966 = vmatprep.subr.mxu0 0.0
      %967 = vmatpush1.msra.mxu0 0.0
      %968 = vmatprep.subr.mxu0 0.0
      %969 = vmatpush1.msra.mxu0 0.0
      %970 = vmatprep.subr.mxu0 0.0
      %971 = vmatpush1.msra.mxu0 0.0
      %972 = vmatprep.subr.mxu0 0.0
      %973 = vmatpush1.msra.mxu0 0.0
      %974 = vmatprep.subr.mxu0 0.0
      %975 = vmatpush1.msra.mxu0 0.0
      %976 = vmatprep.subr.mxu0 0.0
      %977 = vmatpush1.msra.mxu0 0.0
      %978 = vmatprep.mubr.f32.mxu0 0.0
      %979 = vmatmul.mubr.f32.gmra.mrb[0].mxu0 %v847
      %v980 = vpop.f32.mrb[0].mxu0
      %v981 = vadd.f32 %v689, %v980
      %v982 = vpop.f32.mrb[0].mxu0
      %983 = vmatprep.mubr.f32.mxu0 0.0
      %984 = vmatmul.mubr.f32.gmra.mrb[0].mxu0 %v849
      %v985 = vpop.f32.mrb[0].mxu0
      %v986 = vadd.f32 %v694, %v985
      %v987 = vpop.f32.mrb[0].mxu0
      %988 = vmatprep.mubr.f32.mxu0 0.0
      %989 = vmatmul.mubr.f32.gmra.mrb[0].mxu0 %v851
      %v990 = vpop.f32.mrb[0].mxu0
      %v991 = vadd.f32 %v699, %v990
      %v992 = vpop.f32.mrb[0].mxu0
      %993 = vmatprep.mubr.f32.mxu0 0.0
      %994 = vmatmul.mubr.f32.gmra.mrb[0].mxu0 %v853
      %v995 = vpop.f32.mrb[0].mxu0
      %v996 = vadd.f32 %v704, %v995
      %v997 = vpop.f32.mrb[0].mxu0
      %998 = vmatprep.mubr.f32.mxu0 0.0
      %999 = vmatmul.mubr.f32.gmra.mrb[0].mxu0 %v855
      %v1000 = vpop.f32.mrb[0].mxu0
      %v1001 = vadd.f32 %v709, %v1000
      %v1002 = vpop.f32.mrb[0].mxu0
      %1003 = vmatprep.mubr.f32.mxu0 0.0
      %1004 = vmatmul.mubr.f32.gmra.mrb[0].mxu0 %v857
      %v1005 = vpop.f32.mrb[0].mxu0
      %v1006 = vadd.f32 %v714, %v1005
      %v1007 = vpop.f32.mrb[0].mxu0
      %1008 = vmatprep.mubr.f32.mxu0 0.0
      %1009 = vmatmul.mubr.f32.gmra.mrb[0].mxu0 %v859
      %v1010 = vpop.f32.mrb[0].mxu0
      %v1011 = vadd.f32 %v719, %v1010
      %v1012 = vpop.f32.mrb[0].mxu0
      %1013 = vmatprep.mubr.f32.mxu0 0.0
      %1014 = vmatmul.mubr.f32.gmra.mrb[0].mxu0 %v861
      %v1015 = vpop.f32.mrb[0].mxu0
      %v1016 = vadd.f32 %v724, %v1015
      %v1017 = vpop.f32.mrb[0].mxu0
      %1018 = vmatprep.mubr.f32.mxu0 0.0
      %1019 = vmatmul.mubr.f32.gmra.mrb[0].mxu0 %v863
      %v1020 = vpop.f32.mrb[0].mxu0
      %v1021 = vadd.f32 %v729, %v1020
      %v1022 = vpop.f32.mrb[0].mxu0
      %1023 = vmatprep.mubr.f32.mxu0 0.0
      %1024 = vmatmul.mubr.f32.gmra.mrb[0].mxu0 %v865
      %v1025 = vpop.f32.mrb[0].mxu0
      %v1026 = vadd.f32 %v734, %v1025
      %v1027 = vpop.f32.mrb[0].mxu0
      %1028 = vmatprep.mubr.f32.mxu0 0.0
      %1029 = vmatmul.mubr.f32.gmra.mrb[0].mxu0 %v867
      %v1030 = vpop.f32.mrb[0].mxu0
      %v1031 = vadd.f32 %v739, %v1030
      %v1032 = vpop.f32.mrb[0].mxu0
      %1033 = vmatprep.mubr.f32.mxu0 0.0
      %1034 = vmatmul.mubr.f32.gmra.mrb[0].mxu0 %v869
      %v1035 = vpop.f32.mrb[0].mxu0
      %v1036 = vadd.f32 %v744, %v1035
      %v1037 = vpop.f32.mrb[0].mxu0
      %1038 = vmatprep.mubr.f32.mxu0 0.0
      %1039 = vmatmul.mubr.f32.gmra.mrb[0].mxu0 %v871
      %v1040 = vpop.f32.mrb[0].mxu0
      %v1041 = vadd.f32 %v749, %v1040
      %v1042 = vpop.f32.mrb[0].mxu0
      %1043 = vmatprep.mubr.f32.mxu0 0.0
      %1044 = vmatmul.mubr.f32.gmra.mrb[0].mxu0 %v873
      %v1045 = vpop.f32.mrb[0].mxu0
      %v1046 = vadd.f32 %v754, %v1045
      %v1047 = vpop.f32.mrb[0].mxu0
      %1048 = vmatprep.mubr.f32.mxu0 0.0
      %1049 = vmatmul.mubr.f32.gmra.mrb[0].mxu0 %v875
      %v1050 = vpop.f32.mrb[0].mxu0
      %v1051 = vadd.f32 %v759, %v1050
      %v1052 = vpop.f32.mrb[0].mxu0
      %1053 = vmatprep.mubr.f32.mxu0 0.0
      %1054 = vmatmul.mubr.f32.gmra.mrb[0].mxu0 %v877
      %v1055 = vpop.f32.mrb[0].mxu0
      %v1056 = vadd.f32 %v764, %v1055
      %v1057 = vpop.f32.mrb[0].mxu0
      %1058 = vmatprep.mubr.f32.mxu0 0.0
      %1059 = vmatmul.mubr.f32.gmra.mrb[0].mxu0 %v879
      %v1060 = vpop.f32.mrb[0].mxu0
      %v1061 = vadd.f32 %v769, %v1060
      %v1062 = vpop.f32.mrb[0].mxu0
      %1063 = vmatprep.mubr.f32.mxu0 0.0
      %1064 = vmatmul.mubr.f32.gmra.mrb[0].mxu0 %v881
      %v1065 = vpop.f32.mrb[0].mxu0
      %v1066 = vadd.f32 %v774, %v1065
      %v1067 = vpop.f32.mrb[0].mxu0
      %1068 = vmatprep.mubr.f32.mxu0 0.0
      %1069 = vmatmul.mubr.f32.gmra.mrb[0].mxu0 %v883
      %v1070 = vpop.f32.mrb[0].mxu0
      %v1071 = vadd.f32 %v779, %v1070
      %v1072 = vpop.f32.mrb[0].mxu0
      %1073 = vmatprep.mubr.f32.mxu0 0.0
      %1074 = vmatmul.mubr.f32.gmra.mrb[0].mxu0 %v885
      %v1075 = vpop.f32.mrb[0].mxu0
      %v1076 = vadd.f32 %v784, %v1075
      %v1077 = vpop.f32.mrb[0].mxu0
      %1078 = vmatprep.mubr.f32.mxu0 0.0
      %1079 = vmatmul.mubr.f32.gmra.mrb[0].mxu0 %v887
      %v1080 = vpop.f32.mrb[0].mxu0
      %v1081 = vadd.f32 %v789, %v1080
      %v1082 = vpop.f32.mrb[0].mxu0
      %1083 = vmatprep.mubr.f32.mxu0 0.0
      %1084 = vmatmul.mubr.f32.gmra.mrb[0].mxu0 %v889
      %v1085 = vpop.f32.mrb[0].mxu0
      %v1086 = vadd.f32 %v794, %v1085
      %v1087 = vpop.f32.mrb[0].mxu0
      %1088 = vmatprep.mubr.f32.mxu0 0.0
      %1089 = vmatmul.mubr.f32.gmra.mrb[0].mxu0 %v891
      %v1090 = vpop.f32.mrb[0].mxu0
      %v1091 = vadd.f32 %v799, %v1090
      %v1092 = vpop.f32.mrb[0].mxu0
      %1093 = vmatprep.mubr.f32.mxu0 0.0
      %1094 = vmatmul.mubr.f32.gmra.mrb[0].mxu0 %v893
      %v1095 = vpop.f32.mrb[0].mxu0
      %v1096 = vadd.f32 %v804, %v1095
      %v1097 = vpop.f32.mrb[0].mxu0
      %1098 = vmatprep.mubr.f32.mxu0 0.0
      %1099 = vmatmul.mubr.f32.gmra.mrb[0].mxu0 %v895
      %v1100 = vpop.f32.mrb[0].mxu0
      %v1101 = vadd.f32 %v809, %v1100
      %v1102 = vpop.f32.mrb[0].mxu0
      %1103 = vmatprep.mubr.f32.mxu0 0.0
      %1104 = vmatmul.mubr.f32.gmra.mrb[0].mxu0 %v897
      %v1105 = vpop.f32.mrb[0].mxu0
      %v1106 = vadd.f32 %v814, %v1105
      %v1107 = vpop.f32.mrb[0].mxu0
      %1108 = vmatprep.mubr.f32.mxu0 0.0
      %1109 = vmatmul.mubr.f32.gmra.mrb[0].mxu0 %v899
      %v1110 = vpop.f32.mrb[0].mxu0
      %v1111 = vadd.f32 %v819, %v1110
      %v1112 = vpop.f32.mrb[0].mxu0
      %1113 = vmatprep.mubr.f32.mxu0 0.0
      %1114 = vmatmul.mubr.f32.gmra.mrb[0].mxu0 %v901
      %v1115 = vpop.f32.mrb[0].mxu0
      %v1116 = vadd.f32 %v824, %v1115
      %v1117 = vpop.f32.mrb[0].mxu0
      %1118 = vmatprep.mubr.f32.mxu0 0.0
      %1119 = vmatmul.mubr.f32.gmra.mrb[0].mxu0 %v903
      %v1120 = vpop.f32.mrb[0].mxu0
      %v1121 = vadd.f32 %v829, %v1120
      %v1122 = vpop.f32.mrb[0].mxu0
      %1123 = vmatprep.mubr.f32.mxu0 0.0
      %1124 = vmatmul.mubr.f32.gmra.mrb[0].mxu0 %v905
      %v1125 = vpop.f32.mrb[0].mxu0
      %v1126 = vadd.f32 %v834, %v1125
      %v1127 = vpop.f32.mrb[0].mxu0
      %1128 = vmatprep.mubr.f32.mxu0 0.0
      %1129 = vmatmul.mubr.f32.gmra.mrb[0].mxu0 %v907
      %v1130 = vpop.f32.mrb[0].mxu0
      %v1131 = vadd.f32 %v839, %v1130
      %v1132 = vpop.f32.mrb[0].mxu0
      %1133 = vmatprep.mubr.f32.mxu0 0.0
      %1134 = vmatmul.mubr.f32.gmra.mrb[0].mxu0 %v909
      %v1135 = vpop.f32.mrb[0].mxu0
      %v1136 = vadd.f32 %v844, %v1135
      %v1137 = vpop.f32.mrb[0].mxu0
      %1138 = vdwg.mxu0
      %v1139 = vld [vmem:[%s3] sm:$0xf]
      %s1140 = scalar_lea.vmem %s3, 4
      %v1141 = vld [vmem:[%s1140] sm:$0xf]
      %v1143 = vsel %vm618, %v1141, 0
      %1145 = vmatprep.subr.mxu0 0.0
      %1146 = vmatpush1.msra.mxu0 %v1143
      %1147 = vmatprep.subr.mxu0 0.0
      %1148 = vmatpush1.msra.mxu0 0.0
      %1149 = vmatprep.subr.mxu0 0.0
      %1150 = vmatpush1.msra.mxu0 0.0
      %1151 = vmatprep.subr.mxu0 0.0
      %1152 = vmatpush1.msra.mxu0 0.0
      %1153 = vmatprep.subr.mxu0 0.0
      %1154 = vmatpush1.msra.mxu0 0.0
      %1155 = vmatprep.subr.mxu0 0.0
      %1156 = vmatpush1.msra.mxu0 0.0
      %1157 = vmatprep.subr.mxu0 0.0
      %1158 = vmatpush1.msra.mxu0 0.0
      %1159 = vmatprep.subr.mxu0 0.0
      %1160 = vmatpush1.msra.mxu0 0.0
      %1161 = vmatprep.subr.mxu0 0.0
      %1162 = vmatpush1.msra.mxu0 0.0
      %1163 = vmatprep.subr.mxu0 0.0
      %1164 = vmatpush1.msra.mxu0 0.0
      %1165 = vmatprep.subr.mxu0 0.0
      %1166 = vmatpush1.msra.mxu0 0.0
      %1167 = vmatprep.subr.mxu0 0.0
      %1168 = vmatpush1.msra.mxu0 0.0
      %1169 = vmatprep.subr.mxu0 0.0
      %1170 = vmatpush1.msra.mxu0 0.0
      %1171 = vmatprep.subr.mxu0 0.0
      %1172 = vmatpush1.msra.mxu0 0.0
      %1173 = vmatprep.subr.mxu0 0.0
      %1174 = vmatpush1.msra.mxu0 0.0
      %1175 = vmatprep.subr.mxu0 0.0
      %1176 = vmatpush1.msra.mxu0 0.0
      %1177 = vmatprep.subr.mxu0 0.0
      %1178 = vmatpush1.msra.mxu0 0.0
      %1179 = vmatprep.subr.mxu0 0.0
      %1180 = vmatpush1.msra.mxu0 0.0
      %1181 = vmatprep.subr.mxu0 0.0
      %1182 = vmatpush1.msra.mxu0 0.0
      %1183 = vmatprep.subr.mxu0 0.0
      %1184 = vmatpush1.msra.mxu0 0.0
      %1185 = vmatprep.subr.mxu0 0.0
      %1186 = vmatpush1.msra.mxu0 0.0
      %1187 = vmatprep.subr.mxu0 0.0
      %1188 = vmatpush1.msra.mxu0 0.0
      %1189 = vmatprep.subr.mxu0 0.0
      %1190 = vmatpush1.msra.mxu0 0.0
      %1191 = vmatprep.subr.mxu0 0.0
      %1192 = vmatpush1.msra.mxu0 0.0
      %1193 = vmatprep.subr.mxu0 0.0
      %1194 = vmatpush1.msra.mxu0 0.0
      %1195 = vmatprep.subr.mxu0 0.0
      %1196 = vmatpush1.msra.mxu0 0.0
      %1197 = vmatprep.subr.mxu0 0.0
      %1198 = vmatpush1.msra.mxu0 0.0
      %1199 = vmatprep.subr.mxu0 0.0
      %1200 = vmatpush1.msra.mxu0 0.0
      %1201 = vmatprep.subr.mxu0 0.0
      %1202 = vmatpush1.msra.mxu0 0.0
      %1203 = vmatprep.subr.mxu0 0.0
      %1204 = vmatpush1.msra.mxu0 0.0
      %1205 = vmatprep.subr.mxu0 0.0
      %1206 = vmatpush1.msra.mxu0 0.0
      %1207 = vmatprep.subr.mxu0 0.0
      %1208 = vmatpush1.msra.mxu0 0.0
      %1209 = vmatprep.mubr.f32.mxu0 0.0
      %1210 = vmatmul.mubr.f32.gmra.mrb[0].mxu0 %v538
      %v1211 = vpop.f32.mrb[0].mxu0
      %v1212 = vadd.f32 0.0, %v1211
      %v1213 = vpop.f32.mrb[0].mxu0
      %1214 = vmatprep.mubr.f32.mxu0 0.0
      %1215 = vmatmul.mubr.f32.gmra.mrb[0].mxu0 %v541
      %v1216 = vpop.f32.mrb[0].mxu0
      %v1217 = vadd.f32 0.0, %v1216
      %v1218 = vpop.f32.mrb[0].mxu0
      %1219 = vmatprep.mubr.f32.mxu0 0.0
      %1220 = vmatmul.mubr.f32.gmra.mrb[0].mxu0 %v543
      %v1221 = vpop.f32.mrb[0].mxu0
      %v1222 = vadd.f32 0.0, %v1221
      %v1223 = vpop.f32.mrb[0].mxu0
      %1224 = vmatprep.mubr.f32.mxu0 0.0
      %1225 = vmatmul.mubr.f32.gmra.mrb[0].mxu0 %v546
      %v1226 = vpop.f32.mrb[0].mxu0
      %v1227 = vadd.f32 0.0, %v1226
      %v1228 = vpop.f32.mrb[0].mxu0
      %1229 = vmatprep.mubr.f32.mxu0 0.0
      %1230 = vmatmul.mubr.f32.gmra.mrb[0].mxu0 %v548
      %v1231 = vpop.f32.mrb[0].mxu0
      %v1232 = vadd.f32 0.0, %v1231
      %v1233 = vpop.f32.mrb[0].mxu0
      %1234 = vmatprep.mubr.f32.mxu0 0.0
      %1235 = vmatmul.mubr.f32.gmra.mrb[0].mxu0 %v551
      %v1236 = vpop.f32.mrb[0].mxu0
      %v1237 = vadd.f32 0.0, %v1236
      %v1238 = vpop.f32.mrb[0].mxu0
      %1239 = vmatprep.mubr.f32.mxu0 0.0
      %1240 = vmatmul.mubr.f32.gmra.mrb[0].mxu0 %v553
      %v1241 = vpop.f32.mrb[0].mxu0
      %v1242 = vadd.f32 0.0, %v1241
      %v1243 = vpop.f32.mrb[0].mxu0
      %1244 = vmatprep.mubr.f32.mxu0 0.0
      %1245 = vmatmul.mubr.f32.gmra.mrb[0].mxu0 %v556
      %v1246 = vpop.f32.mrb[0].mxu0
      %v1247 = vadd.f32 0.0, %v1246
      %v1248 = vpop.f32.mrb[0].mxu0
      %1249 = vmatprep.mubr.f32.mxu0 0.0
      %1250 = vmatmul.mubr.f32.gmra.mrb[0].mxu0 %v558
      %v1251 = vpop.f32.mrb[0].mxu0
      %v1252 = vadd.f32 0.0, %v1251
      %v1253 = vpop.f32.mrb[0].mxu0
      %1254 = vmatprep.mubr.f32.mxu0 0.0
      %1255 = vmatmul.mubr.f32.gmra.mrb[0].mxu0 %v561
      %v1256 = vpop.f32.mrb[0].mxu0
      %v1257 = vadd.f32 0.0, %v1256
      %v1258 = vpop.f32.mrb[0].mxu0
      %1259 = vmatprep.mubr.f32.mxu0 0.0
      %1260 = vmatmul.mubr.f32.gmra.mrb[0].mxu0 %v563
      %v1261 = vpop.f32.mrb[0].mxu0
      %v1262 = vadd.f32 0.0, %v1261
      %v1263 = vpop.f32.mrb[0].mxu0
      %1264 = vmatprep.mubr.f32.mxu0 0.0
      %1265 = vmatmul.mubr.f32.gmra.mrb[0].mxu0 %v566
      %v1266 = vpop.f32.mrb[0].mxu0
      %v1267 = vadd.f32 0.0, %v1266
      %v1268 = vpop.f32.mrb[0].mxu0
      %1269 = vmatprep.mubr.f32.mxu0 0.0
      %1270 = vmatmul.mubr.f32.gmra.mrb[0].mxu0 %v568
      %v1271 = vpop.f32.mrb[0].mxu0
      %v1272 = vadd.f32 0.0, %v1271
      %v1273 = vpop.f32.mrb[0].mxu0
      %1274 = vmatprep.mubr.f32.mxu0 0.0
      %1275 = vmatmul.mubr.f32.gmra.mrb[0].mxu0 %v571
      %v1276 = vpop.f32.mrb[0].mxu0
      %v1277 = vadd.f32 0.0, %v1276
      %v1278 = vpop.f32.mrb[0].mxu0
      %1279 = vmatprep.mubr.f32.mxu0 0.0
      %1280 = vmatmul.mubr.f32.gmra.mrb[0].mxu0 %v573
      %v1281 = vpop.f32.mrb[0].mxu0
      %v1282 = vadd.f32 0.0, %v1281
      %v1283 = vpop.f32.mrb[0].mxu0
      %1284 = vmatprep.mubr.f32.mxu0 0.0
      %1285 = vmatmul.mubr.f32.gmra.mrb[0].mxu0 %v576
      %v1286 = vpop.f32.mrb[0].mxu0
      %v1287 = vadd.f32 0.0, %v1286
      %v1288 = vpop.f32.mrb[0].mxu0
      %1289 = vmatprep.mubr.f32.mxu0 0.0
      %1290 = vmatmul.mubr.f32.gmra.mrb[0].mxu0 %v578
      %v1291 = vpop.f32.mrb[0].mxu0
      %v1292 = vadd.f32 0.0, %v1291
      %v1293 = vpop.f32.mrb[0].mxu0
      %1294 = vmatprep.mubr.f32.mxu0 0.0
      %1295 = vmatmul.mubr.f32.gmra.mrb[0].mxu0 %v581
      %v1296 = vpop.f32.mrb[0].mxu0
      %v1297 = vadd.f32 0.0, %v1296
      %v1298 = vpop.f32.mrb[0].mxu0
      %1299 = vmatprep.mubr.f32.mxu0 0.0
      %1300 = vmatmul.mubr.f32.gmra.mrb[0].mxu0 %v583
      %v1301 = vpop.f32.mrb[0].mxu0
      %v1302 = vadd.f32 0.0, %v1301
      %v1303 = vpop.f32.mrb[0].mxu0
      %1304 = vmatprep.mubr.f32.mxu0 0.0
      %1305 = vmatmul.mubr.f32.gmra.mrb[0].mxu0 %v586
      %v1306 = vpop.f32.mrb[0].mxu0
      %v1307 = vadd.f32 0.0, %v1306
      %v1308 = vpop.f32.mrb[0].mxu0
      %1309 = vmatprep.mubr.f32.mxu0 0.0
      %1310 = vmatmul.mubr.f32.gmra.mrb[0].mxu0 %v588
      %v1311 = vpop.f32.mrb[0].mxu0
      %v1312 = vadd.f32 0.0, %v1311
      %v1313 = vpop.f32.mrb[0].mxu0
      %1314 = vmatprep.mubr.f32.mxu0 0.0
      %1315 = vmatmul.mubr.f32.gmra.mrb[0].mxu0 %v591
      %v1316 = vpop.f32.mrb[0].mxu0
      %v1317 = vadd.f32 0.0, %v1316
      %v1318 = vpop.f32.mrb[0].mxu0
      %1319 = vmatprep.mubr.f32.mxu0 0.0
      %1320 = vmatmul.mubr.f32.gmra.mrb[0].mxu0 %v593
      %v1321 = vpop.f32.mrb[0].mxu0
      %v1322 = vadd.f32 0.0, %v1321
      %v1323 = vpop.f32.mrb[0].mxu0
      %1324 = vmatprep.mubr.f32.mxu0 0.0
      %1325 = vmatmul.mubr.f32.gmra.mrb[0].mxu0 %v596
      %v1326 = vpop.f32.mrb[0].mxu0
      %v1327 = vadd.f32 0.0, %v1326
      %v1328 = vpop.f32.mrb[0].mxu0
      %1329 = vmatprep.mubr.f32.mxu0 0.0
      %1330 = vmatmul.mubr.f32.gmra.mrb[0].mxu0 %v598
      %v1331 = vpop.f32.mrb[0].mxu0
      %v1332 = vadd.f32 0.0, %v1331
      %v1333 = vpop.f32.mrb[0].mxu0
      %1334 = vmatprep.mubr.f32.mxu0 0.0
      %1335 = vmatmul.mubr.f32.gmra.mrb[0].mxu0 %v601
      %v1336 = vpop.f32.mrb[0].mxu0
      %v1337 = vadd.f32 0.0, %v1336
      %v1338 = vpop.f32.mrb[0].mxu0
      %1339 = vmatprep.mubr.f32.mxu0 0.0
      %1340 = vmatmul.mubr.f32.gmra.mrb[0].mxu0 %v603
      %v1341 = vpop.f32.mrb[0].mxu0
      %v1342 = vadd.f32 0.0, %v1341
      %v1343 = vpop.f32.mrb[0].mxu0
      %1344 = vmatprep.mubr.f32.mxu0 0.0
      %1345 = vmatmul.mubr.f32.gmra.mrb[0].mxu0 %v606
      %v1346 = vpop.f32.mrb[0].mxu0
      %v1347 = vadd.f32 0.0, %v1346
      %v1348 = vpop.f32.mrb[0].mxu0
      %1349 = vmatprep.mubr.f32.mxu0 0.0
      %1350 = vmatmul.mubr.f32.gmra.mrb[0].mxu0 %v608
      %v1351 = vpop.f32.mrb[0].mxu0
      %v1352 = vadd.f32 0.0, %v1351
      %v1353 = vpop.f32.mrb[0].mxu0
      %1354 = vmatprep.mubr.f32.mxu0 0.0
      %1355 = vmatmul.mubr.f32.gmra.mrb[0].mxu0 %v611
      %v1356 = vpop.f32.mrb[0].mxu0
      %v1357 = vadd.f32 0.0, %v1356
      %v1358 = vpop.f32.mrb[0].mxu0
      %1359 = vmatprep.mubr.f32.mxu0 0.0
      %1360 = vmatmul.mubr.f32.gmra.mrb[0].mxu0 %v613
      %v1361 = vpop.f32.mrb[0].mxu0
      %v1362 = vadd.f32 0.0, %v1361
      %v1363 = vpop.f32.mrb[0].mxu0
      %1364 = vmatprep.mubr.f32.mxu0 0.0
      %1365 = vmatmul.mubr.f32.gmra.mrb[0].mxu0 %v616
      %v1366 = vpop.f32.mrb[0].mxu0
      %v1367 = vadd.f32 0.0, %v1366
      %v1368 = vpop.f32.mrb[0].mxu0
      %1369 = vdwg.mxu0
      %v1371 = vsel %vm618, %v1139, 0
      %1373 = vmatprep.subr.mxu0 0.0
      %1374 = vmatpush1.msra.mxu0 %v1371
      %1375 = vmatprep.subr.mxu0 0.0
      %1376 = vmatpush1.msra.mxu0 0.0
      %1377 = vmatprep.subr.mxu0 0.0
      %1378 = vmatpush1.msra.mxu0 0.0
      %1379 = vmatprep.subr.mxu0 0.0
      %1380 = vmatpush1.msra.mxu0 0.0
      %1381 = vmatprep.subr.mxu0 0.0
      %1382 = vmatpush1.msra.mxu0 0.0
      %1383 = vmatprep.subr.mxu0 0.0
      %1384 = vmatpush1.msra.mxu0 0.0
      %1385 = vmatprep.subr.mxu0 0.0
      %1386 = vmatpush1.msra.mxu0 0.0
      %1387 = vmatprep.subr.mxu0 0.0
      %1388 = vmatpush1.msra.mxu0 0.0
      %1389 = vmatprep.subr.mxu0 0.0
      %1390 = vmatpush1.msra.mxu0 0.0
      %1391 = vmatprep.subr.mxu0 0.0
      %1392 = vmatpush1.msra.mxu0 0.0
      %1393 = vmatprep.subr.mxu0 0.0
      %1394 = vmatpush1.msra.mxu0 0.0
      %1395 = vmatprep.subr.mxu0 0.0
      %1396 = vmatpush1.msra.mxu0 0.0
      %1397 = vmatprep.subr.mxu0 0.0
      %1398 = vmatpush1.msra.mxu0 0.0
      %1399 = vmatprep.subr.mxu0 0.0
      %1400 = vmatpush1.msra.mxu0 0.0
      %1401 = vmatprep.subr.mxu0 0.0
      %1402 = vmatpush1.msra.mxu0 0.0
      %1403 = vmatprep.subr.mxu0 0.0
      %1404 = vmatpush1.msra.mxu0 0.0
      %1405 = vmatprep.subr.mxu0 0.0
      %1406 = vmatpush1.msra.mxu0 0.0
      %1407 = vmatprep.subr.mxu0 0.0
      %1408 = vmatpush1.msra.mxu0 0.0
      %1409 = vmatprep.subr.mxu0 0.0
      %1410 = vmatpush1.msra.mxu0 0.0
      %1411 = vmatprep.subr.mxu0 0.0
      %1412 = vmatpush1.msra.mxu0 0.0
      %1413 = vmatprep.subr.mxu0 0.0
      %1414 = vmatpush1.msra.mxu0 0.0
      %1415 = vmatprep.subr.mxu0 0.0
      %1416 = vmatpush1.msra.mxu0 0.0
      %1417 = vmatprep.subr.mxu0 0.0
      %1418 = vmatpush1.msra.mxu0 0.0
      %1419 = vmatprep.subr.mxu0 0.0
      %1420 = vmatpush1.msra.mxu0 0.0
      %1421 = vmatprep.subr.mxu0 0.0
      %1422 = vmatpush1.msra.mxu0 0.0
      %1423 = vmatprep.subr.mxu0 0.0
      %1424 = vmatpush1.msra.mxu0 0.0
      %1425 = vmatprep.subr.mxu0 0.0
      %1426 = vmatpush1.msra.mxu0 0.0
      %1427 = vmatprep.subr.mxu0 0.0
      %1428 = vmatpush1.msra.mxu0 0.0
      %1429 = vmatprep.subr.mxu0 0.0
      %1430 = vmatpush1.msra.mxu0 0.0
      %1431 = vmatprep.subr.mxu0 0.0
      %1432 = vmatpush1.msra.mxu0 0.0
      %1433 = vmatprep.subr.mxu0 0.0
      %1434 = vmatpush1.msra.mxu0 0.0
      %1435 = vmatprep.subr.mxu0 0.0
      %1436 = vmatpush1.msra.mxu0 0.0
      %1437 = vmatprep.mubr.f32.mxu0 0.0
      %1438 = vmatmul.mubr.f32.gmra.mrb[0].mxu0 %v847
      %v1439 = vpop.f32.mrb[0].mxu0
      %v1440 = vadd.f32 %v1212, %v1439
      %v1441 = vpop.f32.mrb[0].mxu0
      %1442 = vmatprep.mubr.f32.mxu0 0.0
      %1443 = vmatmul.mubr.f32.gmra.mrb[0].mxu0 %v849
      %v1444 = vpop.f32.mrb[0].mxu0
      %v1445 = vadd.f32 %v1217, %v1444
      %v1446 = vpop.f32.mrb[0].mxu0
      %1447 = vmatprep.mubr.f32.mxu0 0.0
      %1448 = vmatmul.mubr.f32.gmra.mrb[0].mxu0 %v851
      %v1449 = vpop.f32.mrb[0].mxu0
      %v1450 = vadd.f32 %v1222, %v1449
      %v1451 = vpop.f32.mrb[0].mxu0
      %1452 = vmatprep.mubr.f32.mxu0 0.0
      %1453 = vmatmul.mubr.f32.gmra.mrb[0].mxu0 %v853
      %v1454 = vpop.f32.mrb[0].mxu0
      %v1455 = vadd.f32 %v1227, %v1454
      %v1456 = vpop.f32.mrb[0].mxu0
      %1457 = vmatprep.mubr.f32.mxu0 0.0
      %1458 = vmatmul.mubr.f32.gmra.mrb[0].mxu0 %v855
      %v1459 = vpop.f32.mrb[0].mxu0
      %v1460 = vadd.f32 %v1232, %v1459
      %v1461 = vpop.f32.mrb[0].mxu0
      %1462 = vmatprep.mubr.f32.mxu0 0.0
      %1463 = vmatmul.mubr.f32.gmra.mrb[0].mxu0 %v857
      %v1464 = vpop.f32.mrb[0].mxu0
      %v1465 = vadd.f32 %v1237, %v1464
      %v1466 = vpop.f32.mrb[0].mxu0
      %1467 = vmatprep.mubr.f32.mxu0 0.0
      %1468 = vmatmul.mubr.f32.gmra.mrb[0].mxu0 %v859
      %v1469 = vpop.f32.mrb[0].mxu0
      %v1470 = vadd.f32 %v1242, %v1469
      %v1471 = vpop.f32.mrb[0].mxu0
      %1472 = vmatprep.mubr.f32.mxu0 0.0
      %1473 = vmatmul.mubr.f32.gmra.mrb[0].mxu0 %v861
      %v1474 = vpop.f32.mrb[0].mxu0
      %v1475 = vadd.f32 %v1247, %v1474
      %v1476 = vpop.f32.mrb[0].mxu0
      %1477 = vmatprep.mubr.f32.mxu0 0.0
      %1478 = vmatmul.mubr.f32.gmra.mrb[0].mxu0 %v863
      %v1479 = vpop.f32.mrb[0].mxu0
      %v1480 = vadd.f32 %v1252, %v1479
      %v1481 = vpop.f32.mrb[0].mxu0
      %1482 = vmatprep.mubr.f32.mxu0 0.0
      %1483 = vmatmul.mubr.f32.gmra.mrb[0].mxu0 %v865
      %v1484 = vpop.f32.mrb[0].mxu0
      %v1485 = vadd.f32 %v1257, %v1484
      %v1486 = vpop.f32.mrb[0].mxu0
      %1487 = vmatprep.mubr.f32.mxu0 0.0
      %1488 = vmatmul.mubr.f32.gmra.mrb[0].mxu0 %v867
      %v1489 = vpop.f32.mrb[0].mxu0
      %v1490 = vadd.f32 %v1262, %v1489
      %v1491 = vpop.f32.mrb[0].mxu0
      %1492 = vmatprep.mubr.f32.mxu0 0.0
      %1493 = vmatmul.mubr.f32.gmra.mrb[0].mxu0 %v869
      %v1494 = vpop.f32.mrb[0].mxu0
      %v1495 = vadd.f32 %v1267, %v1494
      %v1496 = vpop.f32.mrb[0].mxu0
      %1497 = vmatprep.mubr.f32.mxu0 0.0
      %1498 = vmatmul.mubr.f32.gmra.mrb[0].mxu0 %v871
      %v1499 = vpop.f32.mrb[0].mxu0
      %v1500 = vadd.f32 %v1272, %v1499
      %v1501 = vpop.f32.mrb[0].mxu0
      %1502 = vmatprep.mubr.f32.mxu0 0.0
      %1503 = vmatmul.mubr.f32.gmra.mrb[0].mxu0 %v873
      %v1504 = vpop.f32.mrb[0].mxu0
      %v1505 = vadd.f32 %v1277, %v1504
      %v1506 = vpop.f32.mrb[0].mxu0
      %1507 = vmatprep.mubr.f32.mxu0 0.0
      %1508 = vmatmul.mubr.f32.gmra.mrb[0].mxu0 %v875
      %v1509 = vpop.f32.mrb[0].mxu0
      %v1510 = vadd.f32 %v1282, %v1509
      %v1511 = vpop.f32.mrb[0].mxu0
      %1512 = vmatprep.mubr.f32.mxu0 0.0
      %1513 = vmatmul.mubr.f32.gmra.mrb[0].mxu0 %v877
      %v1514 = vpop.f32.mrb[0].mxu0
      %v1515 = vadd.f32 %v1287, %v1514
      %v1516 = vpop.f32.mrb[0].mxu0
      %1517 = vmatprep.mubr.f32.mxu0 0.0
      %1518 = vmatmul.mubr.f32.gmra.mrb[0].mxu0 %v879
      %v1519 = vpop.f32.mrb[0].mxu0
      %v1520 = vadd.f32 %v1292, %v1519
      %v1521 = vpop.f32.mrb[0].mxu0
      %1522 = vmatprep.mubr.f32.mxu0 0.0
      %1523 = vmatmul.mubr.f32.gmra.mrb[0].mxu0 %v881
      %v1524 = vpop.f32.mrb[0].mxu0
      %v1525 = vadd.f32 %v1297, %v1524
      %v1526 = vpop.f32.mrb[0].mxu0
      %1527 = vmatprep.mubr.f32.mxu0 0.0
      %1528 = vmatmul.mubr.f32.gmra.mrb[0].mxu0 %v883
      %v1529 = vpop.f32.mrb[0].mxu0
      %v1530 = vadd.f32 %v1302, %v1529
      %v1531 = vpop.f32.mrb[0].mxu0
      %1532 = vmatprep.mubr.f32.mxu0 0.0
      %1533 = vmatmul.mubr.f32.gmra.mrb[0].mxu0 %v885
      %v1534 = vpop.f32.mrb[0].mxu0
      %v1535 = vadd.f32 %v1307, %v1534
      %v1536 = vpop.f32.mrb[0].mxu0
      %1537 = vmatprep.mubr.f32.mxu0 0.0
      %1538 = vmatmul.mubr.f32.gmra.mrb[0].mxu0 %v887
      %v1539 = vpop.f32.mrb[0].mxu0
      %v1540 = vadd.f32 %v1312, %v1539
      %v1541 = vpop.f32.mrb[0].mxu0
      %1542 = vmatprep.mubr.f32.mxu0 0.0
      %1543 = vmatmul.mubr.f32.gmra.mrb[0].mxu0 %v889
      %v1544 = vpop.f32.mrb[0].mxu0
      %v1545 = vadd.f32 %v1317, %v1544
      %v1546 = vpop.f32.mrb[0].mxu0
      %1547 = vmatprep.mubr.f32.mxu0 0.0
      %1548 = vmatmul.mubr.f32.gmra.mrb[0].mxu0 %v891
      %v1549 = vpop.f32.mrb[0].mxu0
      %v1550 = vadd.f32 %v1322, %v1549
      %v1551 = vpop.f32.mrb[0].mxu0
      %1552 = vmatprep.mubr.f32.mxu0 0.0
      %1553 = vmatmul.mubr.f32.gmra.mrb[0].mxu0 %v893
      %v1554 = vpop.f32.mrb[0].mxu0
      %v1555 = vadd.f32 %v1327, %v1554
      %v1556 = vpop.f32.mrb[0].mxu0
      %1557 = vmatprep.mubr.f32.mxu0 0.0
      %1558 = vmatmul.mubr.f32.gmra.mrb[0].mxu0 %v895
      %v1559 = vpop.f32.mrb[0].mxu0
      %v1560 = vadd.f32 %v1332, %v1559
      %v1561 = vpop.f32.mrb[0].mxu0
      %1562 = vmatprep.mubr.f32.mxu0 0.0
      %1563 = vmatmul.mubr.f32.gmra.mrb[0].mxu0 %v897
      %v1564 = vpop.f32.mrb[0].mxu0
      %v1565 = vadd.f32 %v1337, %v1564
      %v1566 = vpop.f32.mrb[0].mxu0
      %1567 = vmatprep.mubr.f32.mxu0 0.0
      %1568 = vmatmul.mubr.f32.gmra.mrb[0].mxu0 %v899
      %v1569 = vpop.f32.mrb[0].mxu0
      %v1570 = vadd.f32 %v1342, %v1569
      %v1571 = vpop.f32.mrb[0].mxu0
      %1572 = vmatprep.mubr.f32.mxu0 0.0
      %1573 = vmatmul.mubr.f32.gmra.mrb[0].mxu0 %v901
      %v1574 = vpop.f32.mrb[0].mxu0
      %v1575 = vadd.f32 %v1347, %v1574
      %v1576 = vpop.f32.mrb[0].mxu0
      %1577 = vmatprep.mubr.f32.mxu0 0.0
      %1578 = vmatmul.mubr.f32.gmra.mrb[0].mxu0 %v903
      %v1579 = vpop.f32.mrb[0].mxu0
      %v1580 = vadd.f32 %v1352, %v1579
      %v1581 = vpop.f32.mrb[0].mxu0
      %1582 = vmatprep.mubr.f32.mxu0 0.0
      %1583 = vmatmul.mubr.f32.gmra.mrb[0].mxu0 %v905
      %v1584 = vpop.f32.mrb[0].mxu0
      %v1585 = vadd.f32 %v1357, %v1584
      %v1586 = vpop.f32.mrb[0].mxu0
      %1587 = vmatprep.mubr.f32.mxu0 0.0
      %1588 = vmatmul.mubr.f32.gmra.mrb[0].mxu0 %v907
      %v1589 = vpop.f32.mrb[0].mxu0
      %v1590 = vadd.f32 %v1362, %v1589
      %v1591 = vpop.f32.mrb[0].mxu0
      %1592 = vmatprep.mubr.f32.mxu0 0.0
      %1593 = vmatmul.mubr.f32.gmra.mrb[0].mxu0 %v909
      %v1594 = vpop.f32.mrb[0].mxu0
      %v1595 = vadd.f32 %v1367, %v1594
      %v1596 = vpop.f32.mrb[0].mxu0
      %1597 = vdwg.mxu0
      %s1598 = scalar_lea.vmem %s3, 8
      %v1599 = vld [vmem:[%s1598] sm:$0xf]
      %v1600 = vsel %vm537, %v412, 0
      %v1602 = vsel %vm537, %v413, 0
      %v1605 = vsel %vm618, %v1599, 0
      %1607 = vmatprep.subr.mxu0 0.0
      %1608 = vmatpush1.msra.mxu0 %v1605
      %1609 = vmatprep.subr.mxu0 0.0
      %1610 = vmatpush1.msra.mxu0 0.0
      %1611 = vmatprep.subr.mxu0 0.0
      %1612 = vmatpush1.msra.mxu0 0.0
      %1613 = vmatprep.subr.mxu0 0.0
      %1614 = vmatpush1.msra.mxu0 0.0
      %1615 = vmatprep.subr.mxu0 0.0
      %1616 = vmatpush1.msra.mxu0 0.0
      %1617 = vmatprep.subr.mxu0 0.0
      %1618 = vmatpush1.msra.mxu0 0.0
      %1619 = vmatprep.subr.mxu0 0.0
      %1620 = vmatpush1.msra.mxu0 0.0
      %1621 = vmatprep.subr.mxu0 0.0
      %1622 = vmatpush1.msra.mxu0 0.0
      %1623 = vmatprep.subr.mxu0 0.0
      %1624 = vmatpush1.msra.mxu0 0.0
      %1625 = vmatprep.subr.mxu0 0.0
      %1626 = vmatpush1.msra.mxu0 0.0
      %1627 = vmatprep.subr.mxu0 0.0
      %1628 = vmatpush1.msra.mxu0 0.0
      %1629 = vmatprep.subr.mxu0 0.0
      %1630 = vmatpush1.msra.mxu0 0.0
      %1631 = vmatprep.subr.mxu0 0.0
      %1632 = vmatpush1.msra.mxu0 0.0
      %1633 = vmatprep.subr.mxu0 0.0
      %1634 = vmatpush1.msra.mxu0 0.0
      %1635 = vmatprep.subr.mxu0 0.0
      %1636 = vmatpush1.msra.mxu0 0.0
      %1637 = vmatprep.subr.mxu0 0.0
      %1638 = vmatpush1.msra.mxu0 0.0
      %1639 = vmatprep.subr.mxu0 0.0
      %1640 = vmatpush1.msra.mxu0 0.0
      %1641 = vmatprep.subr.mxu0 0.0
      %1642 = vmatpush1.msra.mxu0 0.0
      %1643 = vmatprep.subr.mxu0 0.0
      %1644 = vmatpush1.msra.mxu0 0.0
      %1645 = vmatprep.subr.mxu0 0.0
      %1646 = vmatpush1.msra.mxu0 0.0
      %1647 = vmatprep.subr.mxu0 0.0
      %1648 = vmatpush1.msra.mxu0 0.0
      %1649 = vmatprep.subr.mxu0 0.0
      %1650 = vmatpush1.msra.mxu0 0.0
      %1651 = vmatprep.subr.mxu0 0.0
      %1652 = vmatpush1.msra.mxu0 0.0
      %1653 = vmatprep.subr.mxu0 0.0
      %1654 = vmatpush1.msra.mxu0 0.0
      %1655 = vmatprep.subr.mxu0 0.0
      %1656 = vmatpush1.msra.mxu0 0.0
      %1657 = vmatprep.subr.mxu0 0.0
      %1658 = vmatpush1.msra.mxu0 0.0
      %1659 = vmatprep.subr.mxu0 0.0
      %1660 = vmatpush1.msra.mxu0 0.0
      %1661 = vmatprep.subr.mxu0 0.0
      %1662 = vmatpush1.msra.mxu0 0.0
      %1663 = vmatprep.subr.mxu0 0.0
      %1664 = vmatpush1.msra.mxu0 0.0
      %1665 = vmatprep.subr.mxu0 0.0
      %1666 = vmatpush1.msra.mxu0 0.0
      %1667 = vmatprep.subr.mxu0 0.0
      %1668 = vmatpush1.msra.mxu0 0.0
      %1669 = vmatprep.subr.mxu0 0.0
      %1670 = vmatpush1.msra.mxu0 0.0
      %1671 = vmatprep.mubr.f32.mxu0 0.0
      %1672 = vmatmul.mubr.f32.gmra.mrb[0].mxu0 %v851
      %v1673 = vpop.f32.mrb[0].mxu0
      %v1674 = vadd.f32 0.0, %v1673
      %v1675 = vpop.f32.mrb[0].mxu0
      %1676 = vmatprep.mubr.f32.mxu0 0.0
      %1677 = vmatmul.mubr.f32.gmra.mrb[0].mxu0 %v853
      %v1678 = vpop.f32.mrb[0].mxu0
      %v1679 = vadd.f32 0.0, %v1678
      %v1680 = vpop.f32.mrb[0].mxu0
      %1681 = vmatprep.mubr.f32.mxu0 0.0
      %1682 = vmatmul.mubr.f32.gmra.mrb[0].mxu0 %v855
      %v1683 = vpop.f32.mrb[0].mxu0
      %v1684 = vadd.f32 0.0, %v1683
      %v1685 = vpop.f32.mrb[0].mxu0
      %1686 = vmatprep.mubr.f32.mxu0 0.0
      %1687 = vmatmul.mubr.f32.gmra.mrb[0].mxu0 %v857
      %v1688 = vpop.f32.mrb[0].mxu0
      %v1689 = vadd.f32 0.0, %v1688
      %v1690 = vpop.f32.mrb[0].mxu0
      %1691 = vmatprep.mubr.f32.mxu0 0.0
      %1692 = vmatmul.mubr.f32.gmra.mrb[0].mxu0 %v859
      %v1693 = vpop.f32.mrb[0].mxu0
      %v1694 = vadd.f32 0.0, %v1693
      %v1695 = vpop.f32.mrb[0].mxu0
      %1696 = vmatprep.mubr.f32.mxu0 0.0
      %1697 = vmatmul.mubr.f32.gmra.mrb[0].mxu0 %v861
      %v1698 = vpop.f32.mrb[0].mxu0
      %v1699 = vadd.f32 0.0, %v1698
      %v1700 = vpop.f32.mrb[0].mxu0
      %1701 = vmatprep.mubr.f32.mxu0 0.0
      %1702 = vmatmul.mubr.f32.gmra.mrb[0].mxu0 %v863
      %v1703 = vpop.f32.mrb[0].mxu0
      %v1704 = vadd.f32 0.0, %v1703
      %v1705 = vpop.f32.mrb[0].mxu0
      %1706 = vmatprep.mubr.f32.mxu0 0.0
      %1707 = vmatmul.mubr.f32.gmra.mrb[0].mxu0 %v865
      %v1708 = vpop.f32.mrb[0].mxu0
      %v1709 = vadd.f32 0.0, %v1708
      %v1710 = vpop.f32.mrb[0].mxu0
      %1711 = vmatprep.mubr.f32.mxu0 0.0
      %1712 = vmatmul.mubr.f32.gmra.mrb[0].mxu0 %v867
      %v1713 = vpop.f32.mrb[0].mxu0
      %v1714 = vadd.f32 0.0, %v1713
      %v1715 = vpop.f32.mrb[0].mxu0
      %1716 = vmatprep.mubr.f32.mxu0 0.0
      %1717 = vmatmul.mubr.f32.gmra.mrb[0].mxu0 %v869
      %v1718 = vpop.f32.mrb[0].mxu0
      %v1719 = vadd.f32 0.0, %v1718
      %v1720 = vpop.f32.mrb[0].mxu0
      %1721 = vmatprep.mubr.f32.mxu0 0.0
      %1722 = vmatmul.mubr.f32.gmra.mrb[0].mxu0 %v871
      %v1723 = vpop.f32.mrb[0].mxu0
      %v1724 = vadd.f32 0.0, %v1723
      %v1725 = vpop.f32.mrb[0].mxu0
      %1726 = vmatprep.mubr.f32.mxu0 0.0
      %1727 = vmatmul.mubr.f32.gmra.mrb[0].mxu0 %v873
      %v1728 = vpop.f32.mrb[0].mxu0
      %v1729 = vadd.f32 0.0, %v1728
      %v1730 = vpop.f32.mrb[0].mxu0
      %1731 = vmatprep.mubr.f32.mxu0 0.0
      %1732 = vmatmul.mubr.f32.gmra.mrb[0].mxu0 %v875
      %v1733 = vpop.f32.mrb[0].mxu0
      %v1734 = vadd.f32 0.0, %v1733
      %v1735 = vpop.f32.mrb[0].mxu0
      %1736 = vmatprep.mubr.f32.mxu0 0.0
      %1737 = vmatmul.mubr.f32.gmra.mrb[0].mxu0 %v877
      %v1738 = vpop.f32.mrb[0].mxu0
      %v1739 = vadd.f32 0.0, %v1738
      %v1740 = vpop.f32.mrb[0].mxu0
      %1741 = vmatprep.mubr.f32.mxu0 0.0
      %1742 = vmatmul.mubr.f32.gmra.mrb[0].mxu0 %v879
      %v1743 = vpop.f32.mrb[0].mxu0
      %v1744 = vadd.f32 0.0, %v1743
      %v1745 = vpop.f32.mrb[0].mxu0
      %1746 = vmatprep.mubr.f32.mxu0 0.0
      %1747 = vmatmul.mubr.f32.gmra.mrb[0].mxu0 %v881
      %v1748 = vpop.f32.mrb[0].mxu0
      %v1749 = vadd.f32 0.0, %v1748
      %v1750 = vpop.f32.mrb[0].mxu0
      %1751 = vmatprep.mubr.f32.mxu0 0.0
      %1752 = vmatmul.mubr.f32.gmra.mrb[0].mxu0 %v883
      %v1753 = vpop.f32.mrb[0].mxu0
      %v1754 = vadd.f32 0.0, %v1753
      %v1755 = vpop.f32.mrb[0].mxu0
      %1756 = vmatprep.mubr.f32.mxu0 0.0
      %1757 = vmatmul.mubr.f32.gmra.mrb[0].mxu0 %v885
      %v1758 = vpop.f32.mrb[0].mxu0
      %v1759 = vadd.f32 0.0, %v1758
      %v1760 = vpop.f32.mrb[0].mxu0
      %1761 = vmatprep.mubr.f32.mxu0 0.0
      %1762 = vmatmul.mubr.f32.gmra.mrb[0].mxu0 %v887
      %v1763 = vpop.f32.mrb[0].mxu0
      %v1764 = vadd.f32 0.0, %v1763
      %v1765 = vpop.f32.mrb[0].mxu0
      %1766 = vmatprep.mubr.f32.mxu0 0.0
      %1767 = vmatmul.mubr.f32.gmra.mrb[0].mxu0 %v889
      %v1768 = vpop.f32.mrb[0].mxu0
      %v1769 = vadd.f32 0.0, %v1768
      %v1770 = vpop.f32.mrb[0].mxu0
      %1771 = vmatprep.mubr.f32.mxu0 0.0
      %1772 = vmatmul.mubr.f32.gmra.mrb[0].mxu0 %v891
      %v1773 = vpop.f32.mrb[0].mxu0
      %v1774 = vadd.f32 0.0, %v1773
      %v1775 = vpop.f32.mrb[0].mxu0
      %1776 = vmatprep.mubr.f32.mxu0 0.0
      %1777 = vmatmul.mubr.f32.gmra.mrb[0].mxu0 %v893
      %v1778 = vpop.f32.mrb[0].mxu0
      %v1779 = vadd.f32 0.0, %v1778
      %v1780 = vpop.f32.mrb[0].mxu0
      %1781 = vmatprep.mubr.f32.mxu0 0.0
      %1782 = vmatmul.mubr.f32.gmra.mrb[0].mxu0 %v895
      %v1783 = vpop.f32.mrb[0].mxu0
      %v1784 = vadd.f32 0.0, %v1783
      %v1785 = vpop.f32.mrb[0].mxu0
      %1786 = vmatprep.mubr.f32.mxu0 0.0
      %1787 = vmatmul.mubr.f32.gmra.mrb[0].mxu0 %v897
      %v1788 = vpop.f32.mrb[0].mxu0
      %v1789 = vadd.f32 0.0, %v1788
      %v1790 = vpop.f32.mrb[0].mxu0
      %1791 = vmatprep.mubr.f32.mxu0 0.0
      %1792 = vmatmul.mubr.f32.gmra.mrb[0].mxu0 %v899
      %v1793 = vpop.f32.mrb[0].mxu0
      %v1794 = vadd.f32 0.0, %v1793
      %v1795 = vpop.f32.mrb[0].mxu0
      %1796 = vmatprep.mubr.f32.mxu0 0.0
      %1797 = vmatmul.mubr.f32.gmra.mrb[0].mxu0 %v901
      %v1798 = vpop.f32.mrb[0].mxu0
      %v1799 = vadd.f32 0.0, %v1798
      %v1800 = vpop.f32.mrb[0].mxu0
      %1801 = vmatprep.mubr.f32.mxu0 0.0
      %1802 = vmatmul.mubr.f32.gmra.mrb[0].mxu0 %v903
      %v1803 = vpop.f32.mrb[0].mxu0
      %v1804 = vadd.f32 0.0, %v1803
      %v1805 = vpop.f32.mrb[0].mxu0
      %1806 = vmatprep.mubr.f32.mxu0 0.0
      %1807 = vmatmul.mubr.f32.gmra.mrb[0].mxu0 %v905
      %v1808 = vpop.f32.mrb[0].mxu0
      %v1809 = vadd.f32 0.0, %v1808
      %v1810 = vpop.f32.mrb[0].mxu0
      %1811 = vmatprep.mubr.f32.mxu0 0.0
      %1812 = vmatmul.mubr.f32.gmra.mrb[0].mxu0 %v907
      %v1813 = vpop.f32.mrb[0].mxu0
      %v1814 = vadd.f32 0.0, %v1813
      %v1815 = vpop.f32.mrb[0].mxu0
      %1816 = vmatprep.mubr.f32.mxu0 0.0
      %1817 = vmatmul.mubr.f32.gmra.mrb[0].mxu0 %v909
      %v1818 = vpop.f32.mrb[0].mxu0
      %v1819 = vadd.f32 0.0, %v1818
      %v1820 = vpop.f32.mrb[0].mxu0
      %1821 = vmatprep.mubr.f32.mxu0 0.0
      %1822 = vmatmul.mubr.f32.gmra.mrb[0].mxu0 %v1600
      %v1823 = vpop.f32.mrb[0].mxu0
      %v1824 = vadd.f32 0.0, %v1823
      %v1825 = vpop.f32.mrb[0].mxu0
      %1826 = vmatprep.mubr.f32.mxu0 0.0
      %1827 = vmatmul.mubr.f32.gmra.mrb[0].mxu0 %v1602
      %v1828 = vpop.f32.mrb[0].mxu0
      %v1829 = vadd.f32 0.0, %v1828
      %v1830 = vpop.f32.mrb[0].mxu0
      %1831 = vdwg.mxu0
      %v1832 = vadd.f32 %v1440, %v1674
      %v1833 = vadd.f32 %v1445, %v1679
      %v1834 = vadd.f32 %v1450, %v1684
      %v1835 = vadd.f32 %v1455, %v1689
      %v1836 = vadd.f32 %v1460, %v1694
      %v1837 = vadd.f32 %v1465, %v1699
      %v1838 = vadd.f32 %v1470, %v1704
      %v1839 = vadd.f32 %v1475, %v1709
      %v1840 = vadd.f32 %v1480, %v1714
      %v1841 = vadd.f32 %v1485, %v1719
      %v1842 = vadd.f32 %v1490, %v1724
      %v1843 = vadd.f32 %v1495, %v1729
      %v1844 = vadd.f32 %v1500, %v1734
      %v1845 = vadd.f32 %v1505, %v1739
      %v1846 = vadd.f32 %v1510, %v1744
      %v1847 = vadd.f32 %v1515, %v1749
      %v1848 = vadd.f32 %v1520, %v1754
      %v1849 = vadd.f32 %v1525, %v1759
      %v1850 = vadd.f32 %v1530, %v1764
      %v1851 = vadd.f32 %v1535, %v1769
      %v1852 = vadd.f32 %v1540, %v1774
      %v1853 = vadd.f32 %v1545, %v1779
      %v1854 = vadd.f32 %v1550, %v1784
      %v1855 = vadd.f32 %v1555, %v1789
      %v1856 = vadd.f32 %v1560, %v1794
      %v1857 = vadd.f32 %v1565, %v1799
      %v1858 = vadd.f32 %v1570, %v1804
      %v1859 = vadd.f32 %v1575, %v1809
      %v1860 = vadd.f32 %v1580, %v1814
      %v1861 = vadd.f32 %v1585, %v1819
      %v1862 = vadd.f32 %v1590, %v1824
      %v1863 = vadd.f32 %v1595, %v1829
      %s1864 = scalar_lea.vmem %s3, 12
      %v1865 = vld [vmem:[%s1864] sm:$0xf]
      %v1866 = vsel %vm537, %v531, 0
      %v1869 = vsel %vm537, %v533, 0
      %v1872 = vsel %vm618, %v1865, 0
      %1874 = vmatprep.subr.mxu0 0.0
      %1875 = vmatpush1.msra.mxu0 %v1872
      %1876 = vmatprep.subr.mxu0 0.0
      %1877 = vmatpush1.msra.mxu0 0.0
      %1878 = vmatprep.subr.mxu0 0.0
      %1879 = vmatpush1.msra.mxu0 0.0
      %1880 = vmatprep.subr.mxu0 0.0
      %1881 = vmatpush1.msra.mxu0 0.0
      %1882 = vmatprep.subr.mxu0 0.0
      %1883 = vmatpush1.msra.mxu0 0.0
      %1884 = vmatprep.subr.mxu0 0.0
      %1885 = vmatpush1.msra.mxu0 0.0
      %1886 = vmatprep.subr.mxu0 0.0
      %1887 = vmatpush1.msra.mxu0 0.0
      %1888 = vmatprep.subr.mxu0 0.0
      %1889 = vmatpush1.msra.mxu0 0.0
      %1890 = vmatprep.subr.mxu0 0.0
      %1891 = vmatpush1.msra.mxu0 0.0
      %1892 = vmatprep.subr.mxu0 0.0
      %1893 = vmatpush1.msra.mxu0 0.0
      %1894 = vmatprep.subr.mxu0 0.0
      %1895 = vmatpush1.msra.mxu0 0.0
      %1896 = vmatprep.subr.mxu0 0.0
      %1897 = vmatpush1.msra.mxu0 0.0
      %1898 = vmatprep.subr.mxu0 0.0
      %1899 = vmatpush1.msra.mxu0 0.0
      %1900 = vmatprep.subr.mxu0 0.0
      %1901 = vmatpush1.msra.mxu0 0.0
      %1902 = vmatprep.subr.mxu0 0.0
      %1903 = vmatpush1.msra.mxu0 0.0
      %1904 = vmatprep.subr.mxu0 0.0
      %1905 = vmatpush1.msra.mxu0 0.0
      %1906 = vmatprep.subr.mxu0 0.0
      %1907 = vmatpush1.msra.mxu0 0.0
      %1908 = vmatprep.subr.mxu0 0.0
      %1909 = vmatpush1.msra.mxu0 0.0
      %1910 = vmatprep.subr.mxu0 0.0
      %1911 = vmatpush1.msra.mxu0 0.0
      %1912 = vmatprep.subr.mxu0 0.0
      %1913 = vmatpush1.msra.mxu0 0.0
      %1914 = vmatprep.subr.mxu0 0.0
      %1915 = vmatpush1.msra.mxu0 0.0
      %1916 = vmatprep.subr.mxu0 0.0
      %1917 = vmatpush1.msra.mxu0 0.0
      %1918 = vmatprep.subr.mxu0 0.0
      %1919 = vmatpush1.msra.mxu0 0.0
      %1920 = vmatprep.subr.mxu0 0.0
      %1921 = vmatpush1.msra.mxu0 0.0
      %1922 = vmatprep.subr.mxu0 0.0
      %1923 = vmatpush1.msra.mxu0 0.0
      %1924 = vmatprep.subr.mxu0 0.0
      %1925 = vmatpush1.msra.mxu0 0.0
      %1926 = vmatprep.subr.mxu0 0.0
      %1927 = vmatpush1.msra.mxu0 0.0
      %1928 = vmatprep.subr.mxu0 0.0
      %1929 = vmatpush1.msra.mxu0 0.0
      %1930 = vmatprep.subr.mxu0 0.0
      %1931 = vmatpush1.msra.mxu0 0.0
      %1932 = vmatprep.subr.mxu0 0.0
      %1933 = vmatpush1.msra.mxu0 0.0
      %1934 = vmatprep.subr.mxu0 0.0
      %1935 = vmatpush1.msra.mxu0 0.0
      %1936 = vmatprep.subr.mxu0 0.0
      %1937 = vmatpush1.msra.mxu0 0.0
      %1938 = vmatprep.mubr.f32.mxu0 0.0
      %1939 = vmatmul.mubr.f32.gmra.mrb[0].mxu0 %v543
      %v1940 = vpop.f32.mrb[0].mxu0
      %v1941 = vadd.f32 0.0, %v1940
      %v1942 = vpop.f32.mrb[0].mxu0
      %1943 = vmatprep.mubr.f32.mxu0 0.0
      %1944 = vmatmul.mubr.f32.gmra.mrb[0].mxu0 %v546
      %v1945 = vpop.f32.mrb[0].mxu0
      %v1946 = vadd.f32 0.0, %v1945
      %v1947 = vpop.f32.mrb[0].mxu0
      %1948 = vmatprep.mubr.f32.mxu0 0.0
      %1949 = vmatmul.mubr.f32.gmra.mrb[0].mxu0 %v548
      %v1950 = vpop.f32.mrb[0].mxu0
      %v1951 = vadd.f32 0.0, %v1950
      %v1952 = vpop.f32.mrb[0].mxu0
      %1953 = vmatprep.mubr.f32.mxu0 0.0
      %1954 = vmatmul.mubr.f32.gmra.mrb[0].mxu0 %v551
      %v1955 = vpop.f32.mrb[0].mxu0
      %v1956 = vadd.f32 0.0, %v1955
      %v1957 = vpop.f32.mrb[0].mxu0
      %1958 = vmatprep.mubr.f32.mxu0 0.0
      %1959 = vmatmul.mubr.f32.gmra.mrb[0].mxu0 %v553
      %v1960 = vpop.f32.mrb[0].mxu0
      %v1961 = vadd.f32 0.0, %v1960
      %v1962 = vpop.f32.mrb[0].mxu0
      %1963 = vmatprep.mubr.f32.mxu0 0.0
      %1964 = vmatmul.mubr.f32.gmra.mrb[0].mxu0 %v556
      %v1965 = vpop.f32.mrb[0].mxu0
      %v1966 = vadd.f32 0.0, %v1965
      %v1967 = vpop.f32.mrb[0].mxu0
      %1968 = vmatprep.mubr.f32.mxu0 0.0
      %1969 = vmatmul.mubr.f32.gmra.mrb[0].mxu0 %v558
      %v1970 = vpop.f32.mrb[0].mxu0
      %v1971 = vadd.f32 0.0, %v1970
      %v1972 = vpop.f32.mrb[0].mxu0
      %1973 = vmatprep.mubr.f32.mxu0 0.0
      %1974 = vmatmul.mubr.f32.gmra.mrb[0].mxu0 %v561
      %v1975 = vpop.f32.mrb[0].mxu0
      %v1976 = vadd.f32 0.0, %v1975
      %v1977 = vpop.f32.mrb[0].mxu0
      %1978 = vmatprep.mubr.f32.mxu0 0.0
      %1979 = vmatmul.mubr.f32.gmra.mrb[0].mxu0 %v563
      %v1980 = vpop.f32.mrb[0].mxu0
      %v1981 = vadd.f32 0.0, %v1980
      %v1982 = vpop.f32.mrb[0].mxu0
      %1983 = vmatprep.mubr.f32.mxu0 0.0
      %1984 = vmatmul.mubr.f32.gmra.mrb[0].mxu0 %v566
      %v1985 = vpop.f32.mrb[0].mxu0
      %v1986 = vadd.f32 0.0, %v1985
      %v1987 = vpop.f32.mrb[0].mxu0
      %1988 = vmatprep.mubr.f32.mxu0 0.0
      %1989 = vmatmul.mubr.f32.gmra.mrb[0].mxu0 %v568
      %v1990 = vpop.f32.mrb[0].mxu0
      %v1991 = vadd.f32 0.0, %v1990
      %v1992 = vpop.f32.mrb[0].mxu0
      %1993 = vmatprep.mubr.f32.mxu0 0.0
      %1994 = vmatmul.mubr.f32.gmra.mrb[0].mxu0 %v571
      %v1995 = vpop.f32.mrb[0].mxu0
      %v1996 = vadd.f32 0.0, %v1995
      %v1997 = vpop.f32.mrb[0].mxu0
      %1998 = vmatprep.mubr.f32.mxu0 0.0
      %1999 = vmatmul.mubr.f32.gmra.mrb[0].mxu0 %v573
      %v2000 = vpop.f32.mrb[0].mxu0
      %v2001 = vadd.f32 0.0, %v2000
      %v2002 = vpop.f32.mrb[0].mxu0
      %2003 = vmatprep.mubr.f32.mxu0 0.0
      %2004 = vmatmul.mubr.f32.gmra.mrb[0].mxu0 %v576
      %v2005 = vpop.f32.mrb[0].mxu0
      %v2006 = vadd.f32 0.0, %v2005
      %v2007 = vpop.f32.mrb[0].mxu0
      %2008 = vmatprep.mubr.f32.mxu0 0.0
      %2009 = vmatmul.mubr.f32.gmra.mrb[0].mxu0 %v578
      %v2010 = vpop.f32.mrb[0].mxu0
      %v2011 = vadd.f32 0.0, %v2010
      %v2012 = vpop.f32.mrb[0].mxu0
      %2013 = vmatprep.mubr.f32.mxu0 0.0
      %2014 = vmatmul.mubr.f32.gmra.mrb[0].mxu0 %v581
      %v2015 = vpop.f32.mrb[0].mxu0
      %v2016 = vadd.f32 0.0, %v2015
      %v2017 = vpop.f32.mrb[0].mxu0
      %2018 = vmatprep.mubr.f32.mxu0 0.0
      %2019 = vmatmul.mubr.f32.gmra.mrb[0].mxu0 %v583
      %v2020 = vpop.f32.mrb[0].mxu0
      %v2021 = vadd.f32 0.0, %v2020
      %v2022 = vpop.f32.mrb[0].mxu0
      %2023 = vmatprep.mubr.f32.mxu0 0.0
      %2024 = vmatmul.mubr.f32.gmra.mrb[0].mxu0 %v586
      %v2025 = vpop.f32.mrb[0].mxu0
      %v2026 = vadd.f32 0.0, %v2025
      %v2027 = vpop.f32.mrb[0].mxu0
      %2028 = vmatprep.mubr.f32.mxu0 0.0
      %2029 = vmatmul.mubr.f32.gmra.mrb[0].mxu0 %v588
      %v2030 = vpop.f32.mrb[0].mxu0
      %v2031 = vadd.f32 0.0, %v2030
      %v2032 = vpop.f32.mrb[0].mxu0
      %2033 = vmatprep.mubr.f32.mxu0 0.0
      %2034 = vmatmul.mubr.f32.gmra.mrb[0].mxu0 %v591
      %v2035 = vpop.f32.mrb[0].mxu0
      %v2036 = vadd.f32 0.0, %v2035
      %v2037 = vpop.f32.mrb[0].mxu0
      %2038 = vmatprep.mubr.f32.mxu0 0.0
      %2039 = vmatmul.mubr.f32.gmra.mrb[0].mxu0 %v593
      %v2040 = vpop.f32.mrb[0].mxu0
      %v2041 = vadd.f32 0.0, %v2040
      %v2042 = vpop.f32.mrb[0].mxu0
      %2043 = vmatprep.mubr.f32.mxu0 0.0
      %2044 = vmatmul.mubr.f32.gmra.mrb[0].mxu0 %v596
      %v2045 = vpop.f32.mrb[0].mxu0
      %v2046 = vadd.f32 0.0, %v2045
      %v2047 = vpop.f32.mrb[0].mxu0
      %2048 = vmatprep.mubr.f32.mxu0 0.0
      %2049 = vmatmul.mubr.f32.gmra.mrb[0].mxu0 %v598
      %v2050 = vpop.f32.mrb[0].mxu0
      %v2051 = vadd.f32 0.0, %v2050
      %v2052 = vpop.f32.mrb[0].mxu0
      %2053 = vmatprep.mubr.f32.mxu0 0.0
      %2054 = vmatmul.mubr.f32.gmra.mrb[0].mxu0 %v601
      %v2055 = vpop.f32.mrb[0].mxu0
      %v2056 = vadd.f32 0.0, %v2055
      %v2057 = vpop.f32.mrb[0].mxu0
      %2058 = vmatprep.mubr.f32.mxu0 0.0
      %2059 = vmatmul.mubr.f32.gmra.mrb[0].mxu0 %v603
      %v2060 = vpop.f32.mrb[0].mxu0
      %v2061 = vadd.f32 0.0, %v2060
      %v2062 = vpop.f32.mrb[0].mxu0
      %2063 = vmatprep.mubr.f32.mxu0 0.0
      %2064 = vmatmul.mubr.f32.gmra.mrb[0].mxu0 %v606
      %v2065 = vpop.f32.mrb[0].mxu0
      %v2066 = vadd.f32 0.0, %v2065
      %v2067 = vpop.f32.mrb[0].mxu0
      %2068 = vmatprep.mubr.f32.mxu0 0.0
      %2069 = vmatmul.mubr.f32.gmra.mrb[0].mxu0 %v608
      %v2070 = vpop.f32.mrb[0].mxu0
      %v2071 = vadd.f32 0.0, %v2070
      %v2072 = vpop.f32.mrb[0].mxu0
      %2073 = vmatprep.mubr.f32.mxu0 0.0
      %2074 = vmatmul.mubr.f32.gmra.mrb[0].mxu0 %v611
      %v2075 = vpop.f32.mrb[0].mxu0
      %v2076 = vadd.f32 0.0, %v2075
      %v2077 = vpop.f32.mrb[0].mxu0
      %2078 = vmatprep.mubr.f32.mxu0 0.0
      %2079 = vmatmul.mubr.f32.gmra.mrb[0].mxu0 %v613
      %v2080 = vpop.f32.mrb[0].mxu0
      %v2081 = vadd.f32 0.0, %v2080
      %v2082 = vpop.f32.mrb[0].mxu0
      %2083 = vmatprep.mubr.f32.mxu0 0.0
      %2084 = vmatmul.mubr.f32.gmra.mrb[0].mxu0 %v616
      %v2085 = vpop.f32.mrb[0].mxu0
      %v2086 = vadd.f32 0.0, %v2085
      %v2087 = vpop.f32.mrb[0].mxu0
      %2088 = vmatprep.mubr.f32.mxu0 0.0
      %2089 = vmatmul.mubr.f32.gmra.mrb[0].mxu0 %v1866
      %v2090 = vpop.f32.mrb[0].mxu0
      %v2091 = vadd.f32 0.0, %v2090
      %v2092 = vpop.f32.mrb[0].mxu0
      %2093 = vmatprep.mubr.f32.mxu0 0.0
      %2094 = vmatmul.mubr.f32.gmra.mrb[0].mxu0 %v1869
      %v2095 = vpop.f32.mrb[0].mxu0
      %v2096 = vadd.f32 0.0, %v2095
      %v2097 = vpop.f32.mrb[0].mxu0
      %2098 = vdwg.mxu0
      %v2099 = vadd.f32 %v1832, %v1941
      %v2100 = vadd.f32 %v1833, %v1946
      %v2101 = vadd.f32 %v1834, %v1951
      %v2102 = vadd.f32 %v1835, %v1956
      %v2103 = vadd.f32 %v1836, %v1961
      %v2104 = vadd.f32 %v1837, %v1966
      %v2105 = vadd.f32 %v1838, %v1971
      %v2106 = vadd.f32 %v1839, %v1976
      %v2107 = vadd.f32 %v1840, %v1981
      %v2108 = vadd.f32 %v1841, %v1986
      %v2109 = vadd.f32 %v1842, %v1991
      %v2110 = vadd.f32 %v1843, %v1996
      %v2111 = vadd.f32 %v1844, %v2001
      %v2112 = vadd.f32 %v1845, %v2006
      %v2113 = vadd.f32 %v1846, %v2011
      %v2114 = vadd.f32 %v1847, %v2016
      %v2115 = vadd.f32 %v1848, %v2021
      %v2116 = vadd.f32 %v1849, %v2026
      %v2117 = vadd.f32 %v1850, %v2031
      %v2118 = vadd.f32 %v1851, %v2036
      %v2119 = vadd.f32 %v1852, %v2041
      %v2120 = vadd.f32 %v1853, %v2046
      %v2121 = vadd.f32 %v1854, %v2051
      %v2122 = vadd.f32 %v1855, %v2056
      %v2123 = vadd.f32 %v1856, %v2061
      %v2124 = vadd.f32 %v1857, %v2066
      %v2125 = vadd.f32 %v1858, %v2071
      %v2126 = vadd.f32 %v1859, %v2076
      %v2127 = vadd.f32 %v1860, %v2081
      %v2128 = vadd.f32 %v1861, %v2086
      %v2129 = vadd.f32 %v1862, %v2091
      %v2130 = vadd.f32 %v1863, %v2096
      %vm2131 = vcmask 130048
      %2132 = vst.msk [vmem:[%s367] sm:$0xff] %vm2131, %v981
      %2133 = vst.msk [vmem:[%s367 + $0x8] sm:$0xff] %vm2131, %v986
      %2134 = vst.msk [vmem:[%s367 + $0x20] sm:$0xff] %vm2131, %v991
      %2135 = vst.msk [vmem:[%s367 + $0x28] sm:$0xff] %vm2131, %v996
      %2136 = vst.msk [vmem:[%s367 + $0x40] sm:$0xff] %vm2131, %v1001
      %2137 = vst.msk [vmem:[%s367 + $0x48] sm:$0xff] %vm2131, %v1006
      %2138 = vst.msk [vmem:[%s367 + $0x60] sm:$0xff] %vm2131, %v1011
      %2139 = vst.msk [vmem:[%s367 + $0x68] sm:$0xff] %vm2131, %v1016
      %2140 = vst.msk [vmem:[%s367 + $0x80] sm:$0xff] %vm2131, %v1021
      %2141 = vst.msk [vmem:[%s367 + $0x88] sm:$0xff] %vm2131, %v1026
      %2142 = vst.msk [vmem:[%s367 + $0xa0] sm:$0xff] %vm2131, %v1031
      %2143 = vst.msk [vmem:[%s367 + $0xa8] sm:$0xff] %vm2131, %v1036
      %2144 = vst.msk [vmem:[%s367 + $0xc0] sm:$0xff] %vm2131, %v1041
      %2145 = vst.msk [vmem:[%s367 + $0xc8] sm:$0xff] %vm2131, %v1046
      %2146 = vst.msk [vmem:[%s367 + $0xe0] sm:$0xff] %vm2131, %v1051
      %2147 = vst.msk [vmem:[%s367 + $0xe8] sm:$0xff] %vm2131, %v1056
      %2148 = vst.msk [vmem:[%s367 + $0x100] sm:$0xff] %vm2131, %v1061
      %2149 = vst.msk [vmem:[%s367 + $0x108] sm:$0xff] %vm2131, %v1066
      %2150 = vst.msk [vmem:[%s367 + $0x120] sm:$0xff] %vm2131, %v1071
      %2151 = vst.msk [vmem:[%s367 + $0x128] sm:$0xff] %vm2131, %v1076
      %2152 = vst.msk [vmem:[%s367 + $0x140] sm:$0xff] %vm2131, %v1081
      %2153 = vst.msk [vmem:[%s367 + $0x148] sm:$0xff] %vm2131, %v1086
      %2154 = vst.msk [vmem:[%s367 + $0x160] sm:$0xff] %vm2131, %v1091
      %2155 = vst.msk [vmem:[%s367 + $0x168] sm:$0xff] %vm2131, %v1096
      %2156 = vst.msk [vmem:[%s367 + $0x180] sm:$0xff] %vm2131, %v1101
      %2157 = vst.msk [vmem:[%s367 + $0x188] sm:$0xff] %vm2131, %v1106
      %2158 = vst.msk [vmem:[%s367 + $0x1a0] sm:$0xff] %vm2131, %v1111
      %2159 = vst.msk [vmem:[%s367 + $0x1a8] sm:$0xff] %vm2131, %v1116
      %2160 = vst.msk [vmem:[%s367 + $0x1c0] sm:$0xff] %vm2131, %v1121
      %2161 = vst.msk [vmem:[%s367 + $0x1c8] sm:$0xff] %vm2131, %v1126
      %2162 = vst.msk [vmem:[%s367 + $0x1e0] sm:$0xff] %vm2131, %v1131
      %2163 = vst.msk [vmem:[%s367 + $0x1e8] sm:$0xff] %vm2131, %v1136
      %s2164 = scalar_lea.vmem %s367, 16
      %2165 = vst.msk [vmem:[%s2164] sm:$0xff] %vm2131, %v2099
      %2166 = vst.msk [vmem:[%s2164 + $0x8] sm:$0xff] %vm2131, %v2100
      %2167 = vst.msk [vmem:[%s2164 + $0x20] sm:$0xff] %vm2131, %v2101
      %2168 = vst.msk [vmem:[%s2164 + $0x28] sm:$0xff] %vm2131, %v2102
      %2169 = vst.msk [vmem:[%s2164 + $0x40] sm:$0xff] %vm2131, %v2103
      %2170 = vst.msk [vmem:[%s2164 + $0x48] sm:$0xff] %vm2131, %v2104
      %2171 = vst.msk [vmem:[%s2164 + $0x60] sm:$0xff] %vm2131, %v2105
      %2172 = vst.msk [vmem:[%s2164 + $0x68] sm:$0xff] %vm2131, %v2106
      %2173 = vst.msk [vmem:[%s2164 + $0x80] sm:$0xff] %vm2131, %v2107
      %2174 = vst.msk [vmem:[%s2164 + $0x88] sm:$0xff] %vm2131, %v2108
      %2175 = vst.msk [vmem:[%s2164 + $0xa0] sm:$0xff] %vm2131, %v2109
      %2176 = vst.msk [vmem:[%s2164 + $0xa8] sm:$0xff] %vm2131, %v2110
      %2177 = vst.msk [vmem:[%s2164 + $0xc0] sm:$0xff] %vm2131, %v2111
      %2178 = vst.msk [vmem:[%s2164 + $0xc8] sm:$0xff] %vm2131, %v2112
      %2179 = vst.msk [vmem:[%s2164 + $0xe0] sm:$0xff] %vm2131, %v2113
      %2180 = vst.msk [vmem:[%s2164 + $0xe8] sm:$0xff] %vm2131, %v2114
      %2181 = vst.msk [vmem:[%s2164 + $0x100] sm:$0xff] %vm2131, %v2115
      %2182 = vst.msk [vmem:[%s2164 + $0x108] sm:$0xff] %vm2131, %v2116
      %2183 = vst.msk [vmem:[%s2164 + $0x120] sm:$0xff] %vm2131, %v2117
      %2184 = vst.msk [vmem:[%s2164 + $0x128] sm:$0xff] %vm2131, %v2118
      %2185 = vst.msk [vmem:[%s2164 + $0x140] sm:$0xff] %vm2131, %v2119
      %2186 = vst.msk [vmem:[%s2164 + $0x148] sm:$0xff] %vm2131, %v2120
      %2187 = vst.msk [vmem:[%s2164 + $0x160] sm:$0xff] %vm2131, %v2121
      %2188 = vst.msk [vmem:[%s2164 + $0x168] sm:$0xff] %vm2131, %v2122
      %2189 = vst.msk [vmem:[%s2164 + $0x180] sm:$0xff] %vm2131, %v2123
      %2190 = vst.msk [vmem:[%s2164 + $0x188] sm:$0xff] %vm2131, %v2124
      %2191 = vst.msk [vmem:[%s2164 + $0x1a0] sm:$0xff] %vm2131, %v2125
      %2192 = vst.msk [vmem:[%s2164 + $0x1a8] sm:$0xff] %vm2131, %v2126
      %2193 = vst.msk [vmem:[%s2164 + $0x1c0] sm:$0xff] %vm2131, %v2127
      %2194 = vst.msk [vmem:[%s2164 + $0x1c8] sm:$0xff] %vm2131, %v2128
      %2195 = vst.msk [vmem:[%s2164 + $0x1e0] sm:$0xff] %vm2131, %v2129
      %2196 = vst.msk [vmem:[%s2164 + $0x1e8] sm:$0xff] %vm2131, %v2130
      // Predicated region
      $region37: #{basic2d_trans.2} parent=35 // pred_check
        %p2197 = pneg %p409
      $region38: #{basic2d_trans.2} parent=35 // pred_check_branch
        %2199 = sbr.rel (%p2197) target = $region40
      $region39: #{basic2d_trans.2} parent=35 // pred_region
        %vm2200 = vcmask 122880
        %2201 = vst.msk [vmem:[%s371] sm:$0x1] %vm2200, 0.0
        %2202 = vst.msk [vmem:[%s374] sm:$0x1] %vm2200, 0.0
      $region40: #{basic2d_trans.2} parent=35 // pred_fallthru
        _
      %v2203 = vld [vmem:[%s371] sm:$0x1]
      %v2204 = vsel %vm2131, %v981, 0.0
      %v2205 = vsel %vm2131, %v986, 0.0
      %v2206 = vadd.f32 %v2204, %v2205
      %v2207 = vsel %vm2131, %v991, 0.0
      %v2208 = vadd.f32 %v2206, %v2207
      %v2209 = vsel %vm2131, %v996, 0.0
      %v2210 = vadd.f32 %v2208, %v2209
      %v2211 = vsel %vm2131, %v1001, 0.0
      %v2212 = vadd.f32 %v2210, %v2211
      %v2213 = vsel %vm2131, %v1006, 0.0
      %v2214 = vadd.f32 %v2212, %v2213
      %v2215 = vsel %vm2131, %v1011, 0.0
      %v2216 = vadd.f32 %v2214, %v2215
      %v2217 = vsel %vm2131, %v1016, 0.0
      %v2218 = vadd.f32 %v2216, %v2217
      %v2219 = vsel %vm2131, %v1021, 0.0
      %v2220 = vadd.f32 %v2218, %v2219
      %v2221 = vsel %vm2131, %v1026, 0.0
      %v2222 = vadd.f32 %v2220, %v2221
      %v2223 = vsel %vm2131, %v1031, 0.0
      %v2224 = vadd.f32 %v2222, %v2223
      %v2225 = vsel %vm2131, %v1036, 0.0
      %v2226 = vadd.f32 %v2224, %v2225
      %v2227 = vsel %vm2131, %v1041, 0.0
      %v2228 = vadd.f32 %v2226, %v2227
      %v2229 = vsel %vm2131, %v1046, 0.0
      %v2230 = vadd.f32 %v2228, %v2229
      %v2231 = vsel %vm2131, %v1051, 0.0
      %v2232 = vadd.f32 %v2230, %v2231
      %v2233 = vsel %vm2131, %v1056, 0.0
      %v2234 = vadd.f32 %v2232, %v2233
      %v2235 = vsel %vm2131, %v1061, 0.0
      %v2236 = vadd.f32 %v2234, %v2235
      %v2237 = vsel %vm2131, %v1066, 0.0
      %v2238 = vadd.f32 %v2236, %v2237
      %v2239 = vsel %vm2131, %v1071, 0.0
      %v2240 = vadd.f32 %v2238, %v2239
      %v2241 = vsel %vm2131, %v1076, 0.0
      %v2242 = vadd.f32 %v2240, %v2241
      %v2243 = vsel %vm2131, %v1081, 0.0
      %v2244 = vadd.f32 %v2242, %v2243
      %v2245 = vsel %vm2131, %v1086, 0.0
      %v2246 = vadd.f32 %v2244, %v2245
      %v2247 = vsel %vm2131, %v1091, 0.0
      %v2248 = vadd.f32 %v2246, %v2247
      %v2249 = vsel %vm2131, %v1096, 0.0
      %v2250 = vadd.f32 %v2248, %v2249
      %v2251 = vsel %vm2131, %v1101, 0.0
      %v2252 = vadd.f32 %v2250, %v2251
      %v2253 = vsel %vm2131, %v1106, 0.0
      %v2254 = vadd.f32 %v2252, %v2253
      %v2255 = vsel %vm2131, %v1111, 0.0
      %v2256 = vadd.f32 %v2254, %v2255
      %v2257 = vsel %vm2131, %v1116, 0.0
      %v2258 = vadd.f32 %v2256, %v2257
      %v2259 = vsel %vm2131, %v1121, 0.0
      %v2260 = vadd.f32 %v2258, %v2259
      %v2261 = vsel %vm2131, %v1126, 0.0
      %v2262 = vadd.f32 %v2260, %v2261
      %v2263 = vsel %vm2131, %v1131, 0.0
      %v2264 = vadd.f32 %v2262, %v2263
      %v2265 = vsel %vm2131, %v1136, 0.0
      %v2266 = vadd.f32 %v2264, %v2265
      %v2267 = vrot.slane %v2266, 4
      %v2268 = vadd.f32 %v2266, %v2267
      %v2269 = vrot.slane %v2268, 2
      %v2270 = vadd.f32 %v2268, %v2269
      %v2271 = vrot.slane %v2270, 1
      %v2272 = vadd.f32 %v2270, %v2271
      %v2273 = vsel %vm2131, %v2099, 0.0
      %v2274 = vsel %vm2131, %v2100, 0.0
      %v2275 = vadd.f32 %v2273, %v2274
      %v2276 = vsel %vm2131, %v2101, 0.0
      %v2277 = vadd.f32 %v2275, %v2276
      %v2278 = vsel %vm2131, %v2102, 0.0
      %v2279 = vadd.f32 %v2277, %v2278
      %v2280 = vsel %vm2131, %v2103, 0.0
      %v2281 = vadd.f32 %v2279, %v2280
      %v2282 = vsel %vm2131, %v2104, 0.0
      %v2283 = vadd.f32 %v2281, %v2282
      %v2284 = vsel %vm2131, %v2105, 0.0
      %v2285 = vadd.f32 %v2283, %v2284
      %v2286 = vsel %vm2131, %v2106, 0.0
      %v2287 = vadd.f32 %v2285, %v2286
      %v2288 = vsel %vm2131, %v2107, 0.0
      %v2289 = vadd.f32 %v2287, %v2288
      %v2290 = vsel %vm2131, %v2108, 0.0
      %v2291 = vadd.f32 %v2289, %v2290
      %v2292 = vsel %vm2131, %v2109, 0.0
      %v2293 = vadd.f32 %v2291, %v2292
      %v2294 = vsel %vm2131, %v2110, 0.0
      %v2295 = vadd.f32 %v2293, %v2294
      %v2296 = vsel %vm2131, %v2111, 0.0
      %v2297 = vadd.f32 %v2295, %v2296
      %v2298 = vsel %vm2131, %v2112, 0.0
      %v2299 = vadd.f32 %v2297, %v2298
      %v2300 = vsel %vm2131, %v2113, 0.0
      %v2301 = vadd.f32 %v2299, %v2300
      %v2302 = vsel %vm2131, %v2114, 0.0
      %v2303 = vadd.f32 %v2301, %v2302
      %v2304 = vsel %vm2131, %v2115, 0.0
      %v2305 = vadd.f32 %v2303, %v2304
      %v2306 = vsel %vm2131, %v2116, 0.0
      %v2307 = vadd.f32 %v2305, %v2306
      %v2308 = vsel %vm2131, %v2117, 0.0
      %v2309 = vadd.f32 %v2307, %v2308
      %v2310 = vsel %vm2131, %v2118, 0.0
      %v2311 = vadd.f32 %v2309, %v2310
      %v2312 = vsel %vm2131, %v2119, 0.0
      %v2313 = vadd.f32 %v2311, %v2312
      %v2314 = vsel %vm2131, %v2120, 0.0
      %v2315 = vadd.f32 %v2313, %v2314
      %v2316 = vsel %vm2131, %v2121, 0.0
      %v2317 = vadd.f32 %v2315, %v2316
      %v2318 = vsel %vm2131, %v2122, 0.0
      %v2319 = vadd.f32 %v2317, %v2318
      %v2320 = vsel %vm2131, %v2123, 0.0
      %v2321 = vadd.f32 %v2319, %v2320
      %v2322 = vsel %vm2131, %v2124, 0.0
      %v2323 = vadd.f32 %v2321, %v2322
      %v2324 = vsel %vm2131, %v2125, 0.0
      %v2325 = vadd.f32 %v2323, %v2324
      %v2326 = vsel %vm2131, %v2126, 0.0
      %v2327 = vadd.f32 %v2325, %v2326
      %v2328 = vsel %vm2131, %v2127, 0.0
      %v2329 = vadd.f32 %v2327, %v2328
      %v2330 = vsel %vm2131, %v2128, 0.0
      %v2331 = vadd.f32 %v2329, %v2330
      %v2332 = vsel %vm2131, %v2129, 0.0
      %v2333 = vadd.f32 %v2331, %v2332
      %v2334 = vsel %vm2131, %v2130, 0.0
      %v2335 = vadd.f32 %v2333, %v2334
      %v2336 = vrot.slane %v2335, 4
      %v2337 = vadd.f32 %v2335, %v2336
      %v2338 = vrot.slane %v2337, 2
      %v2339 = vadd.f32 %v2337, %v2338
      %v2340 = vrot.slane %v2339, 1
      %v2341 = vadd.f32 %v2339, %v2340
      %v2342 = vadd.f32 %v2272, %v2341
      %v2343 = vadd.f32 %v2203, %v2342
      %vm2344 = vcmask 122880
      %2345 = vst.msk [vmem:[%s371] sm:$0x1] %vm2344, %v2343
      %v2346 = vld [vmem:[%s374] sm:$0x1]
      %v2347 = vmul.f32 %v981, %v981
      %v2348 = vmul.f32 %v986, %v986
      %v2349 = vmul.f32 %v991, %v991
      %v2350 = vmul.f32 %v996, %v996
      %v2351 = vmul.f32 %v1001, %v1001
      %v2352 = vmul.f32 %v1006, %v1006
      %v2353 = vmul.f32 %v1011, %v1011
      %v2354 = vmul.f32 %v1016, %v1016
      %v2355 = vmul.f32 %v1021, %v1021
      %v2356 = vmul.f32 %v1026, %v1026
      %v2357 = vmul.f32 %v1031, %v1031
      %v2358 = vmul.f32 %v1036, %v1036
      %v2359 = vmul.f32 %v1041, %v1041
      %v2360 = vmul.f32 %v1046, %v1046
      %v2361 = vmul.f32 %v1051, %v1051
      %v2362 = vmul.f32 %v1056, %v1056
      %v2363 = vmul.f32 %v1061, %v1061
      %v2364 = vmul.f32 %v1066, %v1066
      %v2365 = vmul.f32 %v1071, %v1071
      %v2366 = vmul.f32 %v1076, %v1076
      %v2367 = vmul.f32 %v1081, %v1081
      %v2368 = vmul.f32 %v1086, %v1086
      %v2369 = vmul.f32 %v1091, %v1091
      %v2370 = vmul.f32 %v1096, %v1096
      %v2371 = vmul.f32 %v1101, %v1101
      %v2372 = vmul.f32 %v1106, %v1106
      %v2373 = vmul.f32 %v1111, %v1111
      %v2374 = vmul.f32 %v1116, %v1116
      %v2375 = vmul.f32 %v1121, %v1121
      %v2376 = vmul.f32 %v1126, %v1126
      %v2377 = vmul.f32 %v1131, %v1131
      %v2378 = vmul.f32 %v1136, %v1136
      %v2379 = vsel %vm2131, %v2347, 0.0
      %v2380 = vsel %vm2131, %v2348, 0.0
      %v2381 = vadd.f32 %v2379, %v2380
      %v2382 = vsel %vm2131, %v2349, 0.0
      %v2383 = vadd.f32 %v2381, %v2382
      %v2384 = vsel %vm2131, %v2350, 0.0
      %v2385 = vadd.f32 %v2383, %v2384
      %v2386 = vsel %vm2131, %v2351, 0.0
      %v2387 = vadd.f32 %v2385, %v2386
      %v2388 = vsel %vm2131, %v2352, 0.0
      %v2389 = vadd.f32 %v2387, %v2388
      %v2390 = vsel %vm2131, %v2353, 0.0
      %v2391 = vadd.f32 %v2389, %v2390
      %v2392 = vsel %vm2131, %v2354, 0.0
      %v2393 = vadd.f32 %v2391, %v2392
      %v2394 = vsel %vm2131, %v2355, 0.0
      %v2395 = vadd.f32 %v2393, %v2394
      %v2396 = vsel %vm2131, %v2356, 0.0
      %v2397 = vadd.f32 %v2395, %v2396
      %v2398 = vsel %vm2131, %v2357, 0.0
      %v2399 = vadd.f32 %v2397, %v2398
      %v2400 = vsel %vm2131, %v2358, 0.0
      %v2401 = vadd.f32 %v2399, %v2400
      %v2402 = vsel %vm2131, %v2359, 0.0
      %v2403 = vadd.f32 %v2401, %v2402
      %v2404 = vsel %vm2131, %v2360, 0.0
      %v2405 = vadd.f32 %v2403, %v2404
      %v2406 = vsel %vm2131, %v2361, 0.0
      %v2407 = vadd.f32 %v2405, %v2406
      %v2408 = vsel %vm2131, %v2362, 0.0
      %v2409 = vadd.f32 %v2407, %v2408
      %v2410 = vsel %vm2131, %v2363, 0.0
      %v2411 = vadd.f32 %v2409, %v2410
      %v2412 = vsel %vm2131, %v2364, 0.0
      %v2413 = vadd.f32 %v2411, %v2412
      %v2414 = vsel %vm2131, %v2365, 0.0
      %v2415 = vadd.f32 %v2413, %v2414
      %v2416 = vsel %vm2131, %v2366, 0.0
      %v2417 = vadd.f32 %v2415, %v2416
      %v2418 = vsel %vm2131, %v2367, 0.0
      %v2419 = vadd.f32 %v2417, %v2418
      %v2420 = vsel %vm2131, %v2368, 0.0
      %v2421 = vadd.f32 %v2419, %v2420
      %v2422 = vsel %vm2131, %v2369, 0.0
      %v2423 = vadd.f32 %v2421, %v2422
      %v2424 = vsel %vm2131, %v2370, 0.0
      %v2425 = vadd.f32 %v2423, %v2424
      %v2426 = vsel %vm2131, %v2371, 0.0
      %v2427 = vadd.f32 %v2425, %v2426
      %v2428 = vsel %vm2131, %v2372, 0.0
      %v2429 = vadd.f32 %v2427, %v2428
      %v2430 = vsel %vm2131, %v2373, 0.0
      %v2431 = vadd.f32 %v2429, %v2430
      %v2432 = vsel %vm2131, %v2374, 0.0
      %v2433 = vadd.f32 %v2431, %v2432
      %v2434 = vsel %vm2131, %v2375, 0.0
      %v2435 = vadd.f32 %v2433, %v2434
      %v2436 = vsel %vm2131, %v2376, 0.0
      %v2437 = vadd.f32 %v2435, %v2436
      %v2438 = vsel %vm2131, %v2377, 0.0
      %v2439 = vadd.f32 %v2437, %v2438
      %v2440 = vsel %vm2131, %v2378, 0.0
      %v2441 = vadd.f32 %v2439, %v2440
      %v2442 = vrot.slane %v2441, 4
      %v2443 = vadd.f32 %v2441, %v2442
      %v2444 = vrot.slane %v2443, 2
      %v2445 = vadd.f32 %v2443, %v2444
      %v2446 = vrot.slane %v2445, 1
      %v2447 = vadd.f32 %v2445, %v2446
      %v2448 = vmul.f32 %v2099, %v2099
      %v2449 = vmul.f32 %v2100, %v2100
      %v2450 = vmul.f32 %v2101, %v2101
      %v2451 = vmul.f32 %v2102, %v2102
      %v2452 = vmul.f32 %v2103, %v2103
      %v2453 = vmul.f32 %v2104, %v2104
      %v2454 = vmul.f32 %v2105, %v2105
      %v2455 = vmul.f32 %v2106, %v2106
      %v2456 = vmul.f32 %v2107, %v2107
      %v2457 = vmul.f32 %v2108, %v2108
      %v2458 = vmul.f32 %v2109, %v2109
      %v2459 = vmul.f32 %v2110, %v2110
      %v2460 = vmul.f32 %v2111, %v2111
      %v2461 = vmul.f32 %v2112, %v2112
      %v2462 = vmul.f32 %v2113, %v2113
      %v2463 = vmul.f32 %v2114, %v2114
      %v2464 = vmul.f32 %v2115, %v2115
      %v2465 = vmul.f32 %v2116, %v2116
      %v2466 = vmul.f32 %v2117, %v2117
      %v2467 = vmul.f32 %v2118, %v2118
      %v2468 = vmul.f32 %v2119, %v2119
      %v2469 = vmul.f32 %v2120, %v2120
      %v2470 = vmul.f32 %v2121, %v2121
      %v2471 = vmul.f32 %v2122, %v2122
      %v2472 = vmul.f32 %v2123, %v2123
      %v2473 = vmul.f32 %v2124, %v2124
      %v2474 = vmul.f32 %v2125, %v2125
      %v2475 = vmul.f32 %v2126, %v2126
      %v2476 = vmul.f32 %v2127, %v2127
      %v2477 = vmul.f32 %v2128, %v2128
      %v2478 = vmul.f32 %v2129, %v2129
      %v2479 = vmul.f32 %v2130, %v2130
      %v2480 = vsel %vm2131, %v2448, 0.0
      %v2481 = vsel %vm2131, %v2449, 0.0
      %v2482 = vadd.f32 %v2480, %v2481
      %v2483 = vsel %vm2131, %v2450, 0.0
      %v2484 = vadd.f32 %v2482, %v2483
      %v2485 = vsel %vm2131, %v2451, 0.0
      %v2486 = vadd.f32 %v2484, %v2485
      %v2487 = vsel %vm2131, %v2452, 0.0
      %v2488 = vadd.f32 %v2486, %v2487
      %v2489 = vsel %vm2131, %v2453, 0.0
      %v2490 = vadd.f32 %v2488, %v2489
      %v2491 = vsel %vm2131, %v2454, 0.0
      %v2492 = vadd.f32 %v2490, %v2491
      %v2493 = vsel %vm2131, %v2455, 0.0
      %v2494 = vadd.f32 %v2492, %v2493
      %v2495 = vsel %vm2131, %v2456, 0.0
      %v2496 = vadd.f32 %v2494, %v2495
      %v2497 = vsel %vm2131, %v2457, 0.0
      %v2498 = vadd.f32 %v2496, %v2497
      %v2499 = vsel %vm2131, %v2458, 0.0
      %v2500 = vadd.f32 %v2498, %v2499
      %v2501 = vsel %vm2131, %v2459, 0.0
      %v2502 = vadd.f32 %v2500, %v2501
      %v2503 = vsel %vm2131, %v2460, 0.0
      %v2504 = vadd.f32 %v2502, %v2503
      %v2505 = vsel %vm2131, %v2461, 0.0
      %v2506 = vadd.f32 %v2504, %v2505
      %v2507 = vsel %vm2131, %v2462, 0.0
      %v2508 = vadd.f32 %v2506, %v2507
      %v2509 = vsel %vm2131, %v2463, 0.0
      %v2510 = vadd.f32 %v2508, %v2509
      %v2511 = vsel %vm2131, %v2464, 0.0
      %v2512 = vadd.f32 %v2510, %v2511
      %v2513 = vsel %vm2131, %v2465, 0.0
      %v2514 = vadd.f32 %v2512, %v2513
      %v2515 = vsel %vm2131, %v2466, 0.0
      %v2516 = vadd.f32 %v2514, %v2515
      %v2517 = vsel %vm2131, %v2467, 0.0
      %v2518 = vadd.f32 %v2516, %v2517
      %v2519 = vsel %vm2131, %v2468, 0.0
      %v2520 = vadd.f32 %v2518, %v2519
      %v2521 = vsel %vm2131, %v2469, 0.0
      %v2522 = vadd.f32 %v2520, %v2521
      %v2523 = vsel %vm2131, %v2470, 0.0
      %v2524 = vadd.f32 %v2522, %v2523
      %v2525 = vsel %vm2131, %v2471, 0.0
      %v2526 = vadd.f32 %v2524, %v2525
      %v2527 = vsel %vm2131, %v2472, 0.0
      %v2528 = vadd.f32 %v2526, %v2527
      %v2529 = vsel %vm2131, %v2473, 0.0
      %v2530 = vadd.f32 %v2528, %v2529
      %v2531 = vsel %vm2131, %v2474, 0.0
      %v2532 = vadd.f32 %v2530, %v2531
      %v2533 = vsel %vm2131, %v2475, 0.0
      %v2534 = vadd.f32 %v2532, %v2533
      %v2535 = vsel %vm2131, %v2476, 0.0
      %v2536 = vadd.f32 %v2534, %v2535
      %v2537 = vsel %vm2131, %v2477, 0.0
      %v2538 = vadd.f32 %v2536, %v2537
      %v2539 = vsel %vm2131, %v2478, 0.0
      %v2540 = vadd.f32 %v2538, %v2539
      %v2541 = vsel %vm2131, %v2479, 0.0
      %v2542 = vadd.f32 %v2540, %v2541
      %v2543 = vrot.slane %v2542, 4
      %v2544 = vadd.f32 %v2542, %v2543
      %v2545 = vrot.slane %v2544, 2
      %v2546 = vadd.f32 %v2544, %v2545
      %v2547 = vrot.slane %v2546, 1
      %v2548 = vadd.f32 %v2546, %v2547
      %v2549 = vadd.f32 %v2447, %v2548
      %v2550 = vadd.f32 %v2346, %v2549
      %2551 = vst.msk [vmem:[%s374] sm:$0x1] %vm2344, %v2550
      %s2552 = smul.u32 16, %s23
      %p2553 = scmp.lt.s32.totalorder %s22, 1
      %s2554 = scalar_select %p2553, %s22, 1
      %p2555 = scmp.lt.s32.totalorder %s2552, 15
      %s2556 = scalar_select %p2555, %s2552, 15
      %s2557 = smul.addr %s2556, 4
      %s2558 = smul.addr %s2554, 64
      %s2559 = sadd.s32 %s2557, %s2558
      %s2560 = smul.addr %s2559, 8
      %s2561 = scalar_lea.vmem %s4, %s2560
      %p2562 = scmp.lt.s32.totalorder %s22, 1
      %s2563 = scalar_select %p2562, %s22, 1
      %s2564 = scalar_lea.vmem %s5, %s2563
      %p2565 = scmp.lt.s32.totalorder %s22, 1
      %s2566 = scalar_select %p2565, %s22, 1
      %s2567 = scalar_lea.vmem %s6, %s2566
      // Predicated region
      $region41: #{basic2d_trans.2} parent=35 // pred_check
        %p2568 = pneg %p156
      $region42: #{basic2d_trans.2} parent=35 // pred_check_branch
        %2570 = sbr.rel (%p2568) target = $region44
      $region43: #{basic2d_trans.2} parent=35 // pred_region
        %s2571 = smul.u32 16, %s23
      $region44: #{basic2d_trans.2} parent=35 // pred_fallthru
        _
      // Predicated region
      $region45: #{basic2d_trans.2} parent=35 // pred_check
        %p2572 = pneg %p182
      $region46: #{basic2d_trans.2} parent=35 // pred_check_branch
        %2574 = sbr.rel (%p2572) target = $region48
      $region47: #{basic2d_trans.2} parent=35 // pred_region
        _
      $region48: #{basic2d_trans.2} parent=35 // pred_fallthru
        _
      // Predicated region
      $region49: #{basic2d_trans.2} parent=35 // pred_check
        %p2575 = pneg %p208
      $region50: #{basic2d_trans.2} parent=35 // pred_check_branch
        %2577 = sbr.rel (%p2575) target = $region52
      $region51: #{basic2d_trans.2} parent=35 // pred_region
        _
      $region52: #{basic2d_trans.2} parent=35 // pred_fallthru
        _
    $region36: #{basic2d_trans.2} parent=5 // pred_fallthru
      _
    %p2578 = scmp.le.s32.totalorder 2, %s13
    // Predicated region
    $region53: #{basic2d_trans.2} parent=5 // pred_check
      %p2579 = pneg %p2578
    $region54: #{basic2d_trans.2} parent=5 // pred_check_branch
      %2581 = sbr.rel (%p2579) target = $region56
    $region55: #{basic2d_trans.2} parent=5 // pred_region
      %s2582 = ssub.s32 %s13, 2
      // Predicated region
      $region57: #{basic2d_trans.2} parent=55 // pred_check
        %p2583 = pneg %p162
      $region58: #{basic2d_trans.2} parent=55 // pred_check_branch
        %2585 = sbr.rel (%p2583) target = $region60
      $region59: #{basic2d_trans.2} parent=55 // pred_region
        %s2586 = smul.u32 16, %s25
        %p2587 = scmp.lt.s32.totalorder %s24, 1
        %s2588 = scalar_select %p2587, %s24, 1
        %p2589 = scmp.lt.s32.totalorder %s2586, 15
        %s2590 = scalar_select %p2589, %s2586, 15
        %s2591 = smul.addr %s2590, 4
        %s2592 = smul.addr %s2588, 64
        %s2593 = sadd.s32 %s2591, %s2592
        %s2594 = smul.addr %s2593, 8
        %s2595 = scalar_lea.vmem %s4, %s2594
      $region60: #{basic2d_trans.2} parent=55 // pred_fallthru
        _
      // Predicated region
      $region61: #{basic2d_trans.2} parent=55 // pred_check
        %p2596 = pneg %p188
      $region62: #{basic2d_trans.2} parent=55 // pred_check_branch
        %2598 = sbr.rel (%p2596) target = $region64
      $region63: #{basic2d_trans.2} parent=55 // pred_region
        %p2599 = scmp.lt.s32.totalorder %s24, 1
        %s2600 = scalar_select %p2599, %s24, 1
        %s2601 = scalar_lea.vmem %s5, %s2600
      $region64: #{basic2d_trans.2} parent=55 // pred_fallthru
        _
      // Predicated region
      $region65: #{basic2d_trans.2} parent=55 // pred_check
        %p2602 = pneg %p214
      $region66: #{basic2d_trans.2} parent=55 // pred_check_branch
        %2604 = sbr.rel (%p2602) target = $region68
      $region67: #{basic2d_trans.2} parent=55 // pred_region
        %p2605 = scmp.lt.s32.totalorder %s24, 1
        %s2606 = scalar_select %p2605, %s24, 1
        %s2607 = scalar_lea.vmem %s6, %s2606
      $region68: #{basic2d_trans.2} parent=55 // pred_fallthru
        _
    $region56: #{basic2d_trans.2} parent=5 // pred_fallthru
      _
  $region6: #{basic2d_trans.2} parent=0 // loop_footer
    %s17 = sadd.s32 1, %s13
  $region7: #{basic2d_trans.2} parent=0 // loop_footer_branch
    %12 = sbr.rel target = $region3
  $region8: #{basic2d_trans.2} parent=0 // loop_exit
    _

</llo_original>
